<compile_context>
chip_gen: v6e
topology: v6e:2x2x1
jax: 0.10.0
libtpu: 0.0.40
codegen_flags: <defaults>
</compile_context>

<pallas_src>
import functools

import jax
import jax.numpy as jnp
from jax import lax
from jax.experimental import pallas as pl
from jax.experimental.pallas import tpu as pltpu


LRELU_SLOPE = 0.2
BN_EPS = 1e-5


# ---------------------------------------------------------------------------
# Small helpers (static shape logic)
# ---------------------------------------------------------------------------
def _round_up(x, m):
    return (x + m - 1) // m * m


def _pad_last(x, cp):
    c = x.shape[-1]
    if c == cp:
        return x
    pad = [(0, 0)] * (x.ndim - 1) + [(0, cp - c)]
    return jnp.pad(x, pad)


def _pick_row_tile(ho, wo, n, max_rows=1024):
    """Largest divisor of ho with th*wo <= max_rows; keep >=2 grid steps when possible."""
    divs = [d for d in range(1, ho + 1) if ho % d == 0]
    cands = [d for d in divs if d * wo <= max_rows] or [1]
    th = max(cands)
    if n * (ho // th) < 2:
        smaller = [d for d in cands if ho // d >= 2]
        if smaller:
            th = max(smaller)
    return th


def _pick_m_tile(m, max_rows=1024):
    best = 8
    for d in range(8, min(m, max_rows) + 1, 8):
        if m % d == 0:
            best = d
    if m // best < 2:  # give both v7x TensorCores work when possible
        for d in range(best - 8, 7, -8):
            if m % d == 0 and m // d >= 2:
                best = d
                break
    return best


# ---------------------------------------------------------------------------
# Pallas kernels
# ---------------------------------------------------------------------------
def _conv_s2_kernel(x_ee, x_eo, x_oe, x_oo, w_ref, y_ref, sum_ref, sq_ref,
                    *, th, wo, compute_dtype):
    """3x3 stride-2 conv (no bias) on parity-phase-split padded NHWC input.

    Emits the pre-BN output tile plus per-tile channel sum / sum-of-squares
    (fused BatchNorm partial statistics)."""
    h0 = pl.program_id(1) * th                 # first output row of this tile
    cin = w_ref.shape[1]
    phases = ((x_ee, x_eo), (x_oe, x_oo))      # indexed by (kh%2, kw%2)
    acc = None
    for kh in range(3):
        for kw in range(3):
            ph = phases[kh % 2][kw % 2]
            c0 = kw // 2
            tap = ph[pl.ds(h0 + kh // 2, th), c0:c0 + wo, :]   # (th, wo, cin)
            tap = tap.reshape(th * wo, cin).astype(compute_dtype)
            part = jnp.dot(tap, w_ref[kh * 3 + kw],
                           preferred_element_type=jnp.float32)
            acc = part if acc is None else acc + part
    y_ref[...] = acc.astype(y_ref.dtype)
    sum_ref[...] = jnp.sum(acc, axis=0, keepdims=True)[None]
    sq_ref[...] = jnp.sum(acc * acc, axis=0, keepdims=True)[None]


def _conv_s1_bnlrelu_kernel(y1p_ref, scale_ref, shift_ref, w_ref,
                            y_ref, sum_ref, sq_ref, *, th, wo, compute_dtype):
    """Fused BN1-affine + LeakyReLU prologue, then 3x3 stride-1 conv (no bias),
    plus per-tile BN2 partial statistics.

    Note: reflect padding commutes with the elementwise BN/LeakyReLU, so the
    prologue is applied to the reflect-padded pre-BN conv1 output."""
    h0 = pl.program_id(1) * th
    cin = w_ref.shape[1]
    scale = scale_ref[...]                     # (1, cin)
    shift = shift_ref[...]
    acc = None
    for kh in range(3):
        for kw in range(3):
            tap = y1p_ref[pl.ds(h0 + kh, th), kw:kw + wo, :]   # (th, wo, cin) f32
            tap = tap.reshape(th * wo, cin)
            a = tap * scale + shift
            a = jnp.where(a >= 0, a, LRELU_SLOPE * a).astype(compute_dtype)
            part = jnp.dot(a, w_ref[kh * 3 + kw],
                           preferred_element_type=jnp.float32)
            acc = part if acc is None else acc + part
    y_ref[...] = acc.astype(y_ref.dtype)
    sum_ref[...] = jnp.sum(acc, axis=0, keepdims=True)[None]
    sq_ref[...] = jnp.sum(acc * acc, axis=0, keepdims=True)[None]


def _bn_lrelu_kernel(y_ref, scale_ref, shift_ref, o_ref):
    """Final BatchNorm-affine + LeakyReLU; writes only the real output channels."""
    a = y_ref[...] * scale_ref[...] + shift_ref[...]
    a = jnp.where(a >= 0, a, LRELU_SLOPE * a)
    o_ref[...] = a[:, :o_ref.shape[1]].astype(o_ref.dtype)


# ---------------------------------------------------------------------------
# pallas_call wrappers
# ---------------------------------------------------------------------------
def _conv1_call(phases, w1, N, Ho, Wo, th, cin_p, cmid_p):
    n_h = Ho // th
    M = N * Ho * Wo
    Hq, Wq = Ho + 1, Wo + 1                    # parity-phase spatial extents
    kernel = functools.partial(_conv_s2_kernel, th=th, wo=Wo,
                               compute_dtype=w1.dtype)
    phase_spec = pl.BlockSpec((None, Hq, Wq, cin_p), lambda n, h: (n, 0, 0, 0))
    return pl.pallas_call(
        kernel,
        out_shape=(
            jax.ShapeDtypeStruct((M, cmid_p), jnp.float32),
            jax.ShapeDtypeStruct((N * n_h, 1, cmid_p), jnp.float32),
            jax.ShapeDtypeStruct((N * n_h, 1, cmid_p), jnp.float32),
        ),
        grid_spec=pltpu.PrefetchScalarGridSpec(
            num_scalar_prefetch=0,
            grid=(N, n_h),
            in_specs=[phase_spec, phase_spec, phase_spec, phase_spec,
                      pl.BlockSpec((9, cin_p, cmid_p), lambda n, h: (0, 0, 0))],
            out_specs=[
                pl.BlockSpec((th * Wo, cmid_p), lambda n, h: (n * n_h + h, 0)),
                pl.BlockSpec((1, 1, cmid_p), lambda n, h: (n * n_h + h, 0, 0)),
                pl.BlockSpec((1, 1, cmid_p), lambda n, h: (n * n_h + h, 0, 0)),
            ],
        ),
        compiler_params=pltpu.CompilerParams(
            dimension_semantics=("parallel", "parallel")),
    )(*phases, w1)


def _conv2_call(y1p, scale1, shift1, w2, N, Ho, Wo, th, cmid_p, cout_p):
    n_h = Ho // th
    M = N * Ho * Wo
    Hop, Wop = Ho + 2, Wo + 2
    kernel = functools.partial(_conv_s1_bnlrelu_kernel, th=th, wo=Wo,
                               compute_dtype=w2.dtype)
    return pl.pallas_call(
        kernel,
        out_shape=(
            jax.ShapeDtypeStruct((M, cout_p), jnp.float32),
            jax.ShapeDtypeStruct((N * n_h, 1, cout_p), jnp.float32),
            jax.ShapeDtypeStruct((N * n_h, 1, cout_p), jnp.float32),
        ),
        grid_spec=pltpu.PrefetchScalarGridSpec(
            num_scalar_prefetch=0,
            grid=(N, n_h),
            in_specs=[
                pl.BlockSpec((None, Hop, Wop, cmid_p), lambda n, h: (n, 0, 0, 0)),
                pl.BlockSpec((1, cmid_p), lambda n, h: (0, 0)),
                pl.BlockSpec((1, cmid_p), lambda n, h: (0, 0)),
                pl.BlockSpec((9, cmid_p, cout_p), lambda n, h: (0, 0, 0)),
            ],
            out_specs=[
                pl.BlockSpec((th * Wo, cout_p), lambda n, h: (n * n_h + h, 0)),
                pl.BlockSpec((1, 1, cout_p), lambda n, h: (n * n_h + h, 0, 0)),
                pl.BlockSpec((1, 1, cout_p), lambda n, h: (n * n_h + h, 0, 0)),
            ],
        ),
        compiler_params=pltpu.CompilerParams(
            dimension_semantics=("parallel", "parallel")),
    )(y1p, scale1, shift1, w2)


def _bn_lrelu_call(y, scale, shift, cout):
    M, cp = y.shape
    tm = _pick_m_tile(M)
    return pl.pallas_call(
        _bn_lrelu_kernel,
        out_shape=jax.ShapeDtypeStruct((M, cout), jnp.float32),
        grid_spec=pltpu.PrefetchScalarGridSpec(
            num_scalar_prefetch=0,
            grid=(M // tm,),
            in_specs=[
                pl.BlockSpec((tm, cp), lambda i: (i, 0)),
                pl.BlockSpec((1, cp), lambda i: (0, 0)),
                pl.BlockSpec((1, cp), lambda i: (0, 0)),
            ],
            out_specs=pl.BlockSpec((tm, cout), lambda i: (i, 0)),
        ),
        compiler_params=pltpu.CompilerParams(dimension_semantics=("parallel",)),
    )(y, scale, shift)


# ---------------------------------------------------------------------------
# Glue: weight prep, BN finalize (tiny), layout plumbing
# ---------------------------------------------------------------------------
def _prep_weight(w, cin_p, cout_p, dtype):
    """PyTorch conv weight [Cout, Cin, 3, 3] -> per-tap GEMM weights [9, Cin_p, Cout_p]."""
    cout, cin = w.shape[0], w.shape[1]
    w = jnp.transpose(w.astype(jnp.float32), (2, 3, 1, 0))       # (3,3,cin,cout)
    w = jnp.pad(w, ((0, 0), (0, 0), (0, cin_p - cin), (0, cout_p - cout)))
    return w.reshape(9, cin_p, cout_p).astype(dtype)


def _bn_scale_shift(sum_t, sq_t, count, gamma, beta, cp, eps=BN_EPS):
    """Finalize training-mode BN (biased variance) from fused partial stats."""
    s = jnp.sum(sum_t, axis=(0, 1))
    q = jnp.sum(sq_t, axis=(0, 1))
    mean = s / count
    var = jnp.maximum(q / count - mean * mean, 0.0)
    scale = _pad_last(gamma.astype(jnp.float32), cp) / jnp.sqrt(var + eps)
    shift = _pad_last(beta.astype(jnp.float32), cp) - mean * scale
    return scale.reshape(1, cp), shift.reshape(1, cp)


@functools.partial(jax.jit, static_argnames=("compute_dtype",))
def down_forward(x_nchw, params, *, compute_dtype=jnp.float32):
    """Forward pass of `Down`: [N, Cin, H, W] -> [N, Cout, H//2, W//2].

    compute_dtype selects the MXU operand dtype for the conv GEMMs
    (jnp.float32 or jnp.bfloat16); accumulation and BN/LeakyReLU stay f32.
    Conv biases are dropped: they are exactly cancelled by training-mode BN.
    """
    N, Cin, H, W = x_nchw.shape
    Cmid = params["w1"].shape[0]
    Cout = params["w2"].shape[0]
    assert H % 2 == 0 and W % 2 == 0, "H and W must be even"
    Ho, Wo = H // 2, W // 2
    # TODO(synk): support ragged W//2 (not a multiple of 8) via masked tail tiles.
    assert Wo % 8 == 0, "W//2 must be a multiple of 8"
    # TODO(synk): for very large spatial extents, replace the whole-image-resident
    # input blocks with halo row-window manual DMA so VMEM stays bounded on v7x.

    Cin_p = _round_up(Cin, 128)
    Cmid_p = _round_up(Cmid, 128)
    Cout_p = _round_up(Cout, 128)
    M = N * Ho * Wo
    th = _pick_row_tile(Ho, Wo, N)

    # NCHW -> NHWC only at the module boundary (a NHWC-native caller could drop
    # both transposes); channels zero-padded to a lane-dense multiple of 128.
    x = jnp.transpose(x_nchw, (0, 2, 3, 1)).astype(jnp.float32)
    x = _pad_last(x, Cin_p)
    xp = jnp.pad(x, ((0, 0), (1, 1), (1, 1), (0, 0)), mode="reflect")
    # Parity phase split: makes every stride-2 tap a contiguous in-kernel slice.
    phases = (xp[:, 0::2, 0::2, :], xp[:, 0::2, 1::2, :],
              xp[:, 1::2, 0::2, :], xp[:, 1::2, 1::2, :])

    w1 = _prep_weight(params["w1"], Cin_p, Cmid_p, compute_dtype)
    w2 = _prep_weight(params["w2"], Cmid_p, Cout_p, compute_dtype)

    # Conv1 (stride 2, bias cancelled by BN1) + fused BN1 partial statistics.
    y1, s1, q1 = _conv1_call(phases, w1, N, Ho, Wo, th, Cin_p, Cmid_p)
    scale1, shift1 = _bn_scale_shift(s1, q1, M, params["gamma1"], params["beta1"], Cmid_p)

    # Reflect-pad the *pre-BN* conv1 output; BN1+LeakyReLU are applied inside the
    # conv2 kernel prologue (elementwise ops commute with reflect padding).
    y1p = jnp.pad(y1.reshape(N, Ho, Wo, Cmid_p),
                  ((0, 0), (1, 1), (1, 1), (0, 0)), mode="reflect")

    # Conv2 (stride 1) with fused BN1+LeakyReLU prologue + fused BN2 partial stats.
    y2, s2, q2 = _conv2_call(y1p, scale1, shift1, w2, N, Ho, Wo, th, Cmid_p, Cout_p)
    scale2, shift2 = _bn_scale_shift(s2, q2, M, params["gamma2"], params["beta2"], Cout_p)

    # Final BN2 + LeakyReLU (the only remaining standalone elementwise pass).
    out = _bn_lrelu_call(y2, scale2, shift2, Cout)
    out = out.reshape(N, Ho, Wo, Cout)
    return jnp.transpose(out, (0, 3, 1, 2))  # back to NCHW at the module boundary


# ---------------------------------------------------------------------------
# Pure-JAX reference (exact PyTorch semantics, incl. conv bias) for verification
# ---------------------------------------------------------------------------
def _conv_ref(x_nhwc, w, b, stride):
    xpad = jnp.pad(x_nhwc, ((0, 0), (1, 1), (1, 1), (0, 0)), mode="reflect")
    out = lax.conv_general_dilated(
        xpad, jnp.transpose(w, (2, 3, 1, 0)),  # HWIO
        window_strides=(stride, stride), padding="VALID",
        dimension_numbers=("NHWC", "HWIO", "NHWC"))
    return out + b


def _bn_lrelu_ref(x, gamma, beta, eps=BN_EPS):
    mean = jnp.mean(x, axis=(0, 1, 2))
    var = jnp.mean(jnp.square(x - mean), axis=(0, 1, 2))
    y = (x - mean) / jnp.sqrt(var + eps) * gamma + beta
    return jnp.where(y >= 0, y, LRELU_SLOPE * y)


def down_forward_ref(x_nchw, params):
    x = jnp.transpose(x_nchw, (0, 2, 3, 1)).astype(jnp.float32)
    y1 = _conv_ref(x, params["w1"], params["b1"], 2)
    a1 = _bn_lrelu_ref(y1, params["gamma1"], params["beta1"])
    y2 = _conv_ref(a1, params["w2"], params["b2"], 1)
    a2 = _bn_lrelu_ref(y2, params["gamma2"], params["beta2"])
    return jnp.transpose(a2, (0, 3, 1, 2))


# ---------------------------------------------------------------------------
if __name__ == "__main__":
    key = jax.random.PRNGKey(0)
    k_x, k_w1, k_b1, k_w2, k_b2 = jax.random.split(key, 5)

    N, Cin, H, W = 2, 4, 16, 16
    Cout = 8  # mid_channels == out_channels for Down

    x = jax.random.normal(k_x, (N, Cin, H, W), dtype=jnp.float32)
    params = {
        "w1": 0.1 * jax.random.normal(k_w1, (Cout, Cin, 3, 3), dtype=jnp.float32),
        "b1": 0.05 * jax.random.normal(k_b1, (Cout,), dtype=jnp.float32),
        "gamma1": jnp.ones((Cout,), jnp.float32),
        "beta1": jnp.zeros((Cout,), jnp.float32),
        "w2": 0.1 * jax.random.normal(k_w2, (Cout, Cout, 3, 3), dtype=jnp.float32),
        "b2": 0.05 * jax.random.normal(k_b2, (Cout,), dtype=jnp.float32),
        "gamma2": jnp.ones((Cout,), jnp.float32),
        "beta2": jnp.zeros((Cout,), jnp.float32),
    }

    ref = jax.block_until_ready(down_forward_ref(x, params))

    # Exact path (f32 MXU operands): must match the f32 reference tightly.
    out = jax.block_until_ready(down_forward(x, params))
    assert out.shape == (N, Cout, H // 2, W // 2), out.shape
    err = float(jnp.max(jnp.abs(out - ref)))
    assert err < 1e-4, f"f32 path mismatch vs reference: {err}"

    # bf16 MXU-operand path (v6e/v7x perf feedback); looser tolerance purely from
    # bf16 operand rounding — accumulation and BN math remain f32.
    out_bf16 = jax.block_until_ready(
        down_forward(x, params, compute_dtype=jnp.bfloat16))
    err_bf16 = float(jnp.max(jnp.abs(out_bf16 - ref)))
    assert err_bf16 < 1e-1, f"bf16 path mismatch vs reference: {err_bf16}"

    print("KERNEL_OK")
</pallas_src>

<mosaic_0001>
module attributes {stable_mosaic.version = 11 : i64} {
  func.func @_conv_s2_kernel(%arg0: i32, %arg1: i32, %arg2: memref<1x9x9x128xf32, #tpu.memory_space<vmem>>, %arg3: memref<1x9x9x128xf32, #tpu.memory_space<vmem>>, %arg4: memref<1x9x9x128xf32, #tpu.memory_space<vmem>>, %arg5: memref<1x9x9x128xf32, #tpu.memory_space<vmem>>, %arg6: memref<9x128x128xf32, #tpu.memory_space<vmem>>, %arg7: memref<64x128xf32, #tpu.memory_space<vmem>>, %arg8: memref<1x1x128xf32, #tpu.memory_space<vmem>>, %arg9: memref<1x1x128xf32, #tpu.memory_space<vmem>>) attributes {dimension_semantics = [#tpu.dimension_semantics<parallel>, #tpu.dimension_semantics<parallel>], iteration_bounds = array<i64: 2, 1>, scalar_prefetch = 0 : i64, scratch_operands = 0 : i64, tpu.core_type = #tpu.core_type<tc>, window_params = [{transform_indices = @transform_0, window_bounds = array<i64: 1, 9, 9, 128>}, {transform_indices = @transform_1, window_bounds = array<i64: 1, 9, 9, 128>}, {transform_indices = @transform_2, window_bounds = array<i64: 1, 9, 9, 128>}, {transform_indices = @transform_3, window_bounds = array<i64: 1, 9, 9, 128>}, {pipeline_mode = #tpu.pipeline_mode<synchronous>, transform_indices = @transform_4, window_bounds = array<i64: 9, 128, 128>}, {transform_indices = @transform_5, window_bounds = array<i64: 64, 128>}, {transform_indices = @transform_6, window_bounds = array<i64: 1, 1, 128>}, {transform_indices = @transform_7, window_bounds = array<i64: 1, 1, 128>}]} {
    %c8_i32 = arith.constant 8 : i32
    %0 = arith.muli %arg1, %c8_i32 : i32
    %c0_i32 = arith.constant 0 : i32
    %1 = arith.addi %0, %c0_i32 : i32
    %c0 = arith.constant 0 : index
    %2 = arith.index_cast %1 : i32 to index
    %c0_0 = arith.constant 0 : index
    %c0_1 = arith.constant 0 : index
    %3 = vector.load %arg2[%c0, %2, %c0_0, %c0_1] : memref<1x9x9x128xf32, #tpu.memory_space<vmem>>, vector<1x8x8x128xf32>
    %4 = vector.shape_cast %3 : vector<1x8x8x128xf32> to vector<8x8x128xf32>
    %5 = vector.shape_cast %4 : vector<8x8x128xf32> to vector<64x128xf32>
    %c0_2 = arith.constant 0 : index
    %c0_3 = arith.constant 0 : index
    %c0_4 = arith.constant 0 : index
    %6 = vector.load %arg6[%c0_2, %c0_3, %c0_4] : memref<9x128x128xf32, #tpu.memory_space<vmem>>, vector<1x128x128xf32>
    %7 = vector.shape_cast %6 : vector<1x128x128xf32> to vector<128x128xf32>
    %cst = arith.constant dense<0.000000e+00> : vector<64x128xf32>
    %8 = tpu.matmul %5, %7, %cst {dimension_numbers = #tpu.dot_dimension_numbers<[1], [0], [0], [1], [0, 0, 1, 1], [], []>} : vector<64x128xf32>, vector<128x128xf32>, vector<64x128xf32> -> vector<64x128xf32>
    %c0_i32_5 = arith.constant 0 : i32
    %9 = arith.addi %0, %c0_i32_5 : i32
    %c0_6 = arith.constant 0 : index
    %10 = arith.index_cast %9 : i32 to index
    %c0_7 = arith.constant 0 : index
    %c0_8 = arith.constant 0 : index
    %11 = vector.load %arg3[%c0_6, %10, %c0_7, %c0_8] : memref<1x9x9x128xf32, #tpu.memory_space<vmem>>, vector<1x8x8x128xf32>
    %12 = vector.shape_cast %11 : vector<1x8x8x128xf32> to vector<8x8x128xf32>
    %13 = vector.shape_cast %12 : vector<8x8x128xf32> to vector<64x128xf32>
    %c1 = arith.constant 1 : index
    %c0_9 = arith.constant 0 : index
    %c0_10 = arith.constant 0 : index
    %14 = vector.load %arg6[%c1, %c0_9, %c0_10] : memref<9x128x128xf32, #tpu.memory_space<vmem>>, vector<1x128x128xf32>
    %15 = vector.shape_cast %14 : vector<1x128x128xf32> to vector<128x128xf32>
    %cst_11 = arith.constant dense<0.000000e+00> : vector<64x128xf32>
    %16 = tpu.matmul %13, %15, %cst_11 {dimension_numbers = #tpu.dot_dimension_numbers<[1], [0], [0], [1], [0, 0, 1, 1], [], []>} : vector<64x128xf32>, vector<128x128xf32>, vector<64x128xf32> -> vector<64x128xf32>
    %17 = arith.addf %8, %16 : vector<64x128xf32>
    %c0_i32_12 = arith.constant 0 : i32
    %18 = arith.addi %0, %c0_i32_12 : i32
    %c0_13 = arith.constant 0 : index
    %19 = arith.index_cast %18 : i32 to index
    %c1_14 = arith.constant 1 : index
    %c0_15 = arith.constant 0 : index
    %20 = vector.load %arg2[%c0_13, %19, %c1_14, %c0_15] : memref<1x9x9x128xf32, #tpu.memory_space<vmem>>, vector<1x8x8x128xf32>
    %21 = vector.shape_cast %20 : vector<1x8x8x128xf32> to vector<8x8x128xf32>
    %22 = vector.shape_cast %21 : vector<8x8x128xf32> to vector<64x128xf32>
    %c2 = arith.constant 2 : index
    %c0_16 = arith.constant 0 : index
    %c0_17 = arith.constant 0 : index
    %23 = vector.load %arg6[%c2, %c0_16, %c0_17] : memref<9x128x128xf32, #tpu.memory_space<vmem>>, vector<1x128x128xf32>
    %24 = vector.shape_cast %23 : vector<1x128x128xf32> to vector<128x128xf32>
    %cst_18 = arith.constant dense<0.000000e+00> : vector<64x128xf32>
    %25 = tpu.matmul %22, %24, %cst_18 {dimension_numbers = #tpu.dot_dimension_numbers<[1], [0], [0], [1], [0, 0, 1, 1], [], []>} : vector<64x128xf32>, vector<128x128xf32>, vector<64x128xf32> -> vector<64x128xf32>
    %26 = arith.addf %17, %25 : vector<64x128xf32>
    %c0_i32_19 = arith.constant 0 : i32
    %27 = arith.addi %0, %c0_i32_19 : i32
    %c0_20 = arith.constant 0 : index
    %28 = arith.index_cast %27 : i32 to index
    %c0_21 = arith.constant 0 : index
    %c0_22 = arith.constant 0 : index
    %29 = vector.load %arg4[%c0_20, %28, %c0_21, %c0_22] : memref<1x9x9x128xf32, #tpu.memory_space<vmem>>, vector<1x8x8x128xf32>
    %30 = vector.shape_cast %29 : vector<1x8x8x128xf32> to vector<8x8x128xf32>
    %31 = vector.shape_cast %30 : vector<8x8x128xf32> to vector<64x128xf32>
    %c3 = arith.constant 3 : index
    %c0_23 = arith.constant 0 : index
    %c0_24 = arith.constant 0 : index
    %32 = vector.load %arg6[%c3, %c0_23, %c0_24] : memref<9x128x128xf32, #tpu.memory_space<vmem>>, vector<1x128x128xf32>
    %33 = vector.shape_cast %32 : vector<1x128x128xf32> to vector<128x128xf32>
    %cst_25 = arith.constant dense<0.000000e+00> : vector<64x128xf32>
    %34 = tpu.matmul %31, %33, %cst_25 {dimension_numbers = #tpu.dot_dimension_numbers<[1], [0], [0], [1], [0, 0, 1, 1], [], []>} : vector<64x128xf32>, vector<128x128xf32>, vector<64x128xf32> -> vector<64x128xf32>
    %35 = arith.addf %26, %34 : vector<64x128xf32>
    %c0_i32_26 = arith.constant 0 : i32
    %36 = arith.addi %0, %c0_i32_26 : i32
    %c0_27 = arith.constant 0 : index
    %37 = arith.index_cast %36 : i32 to index
    %c0_28 = arith.constant 0 : index
    %c0_29 = arith.constant 0 : index
    %38 = vector.load %arg5[%c0_27, %37, %c0_28, %c0_29] : memref<1x9x9x128xf32, #tpu.memory_space<vmem>>, vector<1x8x8x128xf32>
    %39 = vector.shape_cast %38 : vector<1x8x8x128xf32> to vector<8x8x128xf32>
    %40 = vector.shape_cast %39 : vector<8x8x128xf32> to vector<64x128xf32>
    %c4 = arith.constant 4 : index
    %c0_30 = arith.constant 0 : index
    %c0_31 = arith.constant 0 : index
    %41 = vector.load %arg6[%c4, %c0_30, %c0_31] : memref<9x128x128xf32, #tpu.memory_space<vmem>>, vector<1x128x128xf32>
    %42 = vector.shape_cast %41 : vector<1x128x128xf32> to vector<128x128xf32>
    %cst_32 = arith.constant dense<0.000000e+00> : vector<64x128xf32>
    %43 = tpu.matmul %40, %42, %cst_32 {dimension_numbers = #tpu.dot_dimension_numbers<[1], [0], [0], [1], [0, 0, 1, 1], [], []>} : vector<64x128xf32>, vector<128x128xf32>, vector<64x128xf32> -> vector<64x128xf32>
    %44 = arith.addf %35, %43 : vector<64x128xf32>
    %c0_i32_33 = arith.constant 0 : i32
    %45 = arith.addi %0, %c0_i32_33 : i32
    %c0_34 = arith.constant 0 : index
    %46 = arith.index_cast %45 : i32 to index
    %c1_35 = arith.constant 1 : index
    %c0_36 = arith.constant 0 : index
    %47 = vector.load %arg4[%c0_34, %46, %c1_35, %c0_36] : memref<1x9x9x128xf32, #tpu.memory_space<vmem>>, vector<1x8x8x128xf32>
    %48 = vector.shape_cast %47 : vector<1x8x8x128xf32> to vector<8x8x128xf32>
    %49 = vector.shape_cast %48 : vector<8x8x128xf32> to vector<64x128xf32>
    %c5 = arith.constant 5 : index
    %c0_37 = arith.constant 0 : index
    %c0_38 = arith.constant 0 : index
    %50 = vector.load %arg6[%c5, %c0_37, %c0_38] : memref<9x128x128xf32, #tpu.memory_space<vmem>>, vector<1x128x128xf32>
    %51 = vector.shape_cast %50 : vector<1x128x128xf32> to vector<128x128xf32>
    %cst_39 = arith.constant dense<0.000000e+00> : vector<64x128xf32>
    %52 = tpu.matmul %49, %51, %cst_39 {dimension_numbers = #tpu.dot_dimension_numbers<[1], [0], [0], [1], [0, 0, 1, 1], [], []>} : vector<64x128xf32>, vector<128x128xf32>, vector<64x128xf32> -> vector<64x128xf32>
    %53 = arith.addf %44, %52 : vector<64x128xf32>
    %c1_i32 = arith.constant 1 : i32
    %54 = arith.addi %0, %c1_i32 : i32
    %c0_40 = arith.constant 0 : index
    %55 = arith.index_cast %54 : i32 to index
    %c0_41 = arith.constant 0 : index
    %c0_42 = arith.constant 0 : index
    %56 = vector.load %arg2[%c0_40, %55, %c0_41, %c0_42] : memref<1x9x9x128xf32, #tpu.memory_space<vmem>>, vector<1x8x8x128xf32>
    %57 = vector.shape_cast %56 : vector<1x8x8x128xf32> to vector<8x8x128xf32>
    %58 = vector.shape_cast %57 : vector<8x8x128xf32> to vector<64x128xf32>
    %c6 = arith.constant 6 : index
    %c0_43 = arith.constant 0 : index
    %c0_44 = arith.constant 0 : index
    %59 = vector.load %arg6[%c6, %c0_43, %c0_44] : memref<9x128x128xf32, #tpu.memory_space<vmem>>, vector<1x128x128xf32>
    %60 = vector.shape_cast %59 : vector<1x128x128xf32> to vector<128x128xf32>
    %cst_45 = arith.constant dense<0.000000e+00> : vector<64x128xf32>
    %61 = tpu.matmul %58, %60, %cst_45 {dimension_numbers = #tpu.dot_dimension_numbers<[1], [0], [0], [1], [0, 0, 1, 1], [], []>} : vector<64x128xf32>, vector<128x128xf32>, vector<64x128xf32> -> vector<64x128xf32>
    %62 = arith.addf %53, %61 : vector<64x128xf32>
    %c1_i32_46 = arith.constant 1 : i32
    %63 = arith.addi %0, %c1_i32_46 : i32
    %c0_47 = arith.constant 0 : index
    %64 = arith.index_cast %63 : i32 to index
    %c0_48 = arith.constant 0 : index
    %c0_49 = arith.constant 0 : index
    %65 = vector.load %arg3[%c0_47, %64, %c0_48, %c0_49] : memref<1x9x9x128xf32, #tpu.memory_space<vmem>>, vector<1x8x8x128xf32>
    %66 = vector.shape_cast %65 : vector<1x8x8x128xf32> to vector<8x8x128xf32>
    %67 = vector.shape_cast %66 : vector<8x8x128xf32> to vector<64x128xf32>
    %c7 = arith.constant 7 : index
    %c0_50 = arith.constant 0 : index
    %c0_51 = arith.constant 0 : index
    %68 = vector.load %arg6[%c7, %c0_50, %c0_51] : memref<9x128x128xf32, #tpu.memory_space<vmem>>, vector<1x128x128xf32>
    %69 = vector.shape_cast %68 : vector<1x128x128xf32> to vector<128x128xf32>
    %cst_52 = arith.constant dense<0.000000e+00> : vector<64x128xf32>
    %70 = tpu.matmul %67, %69, %cst_52 {dimension_numbers = #tpu.dot_dimension_numbers<[1], [0], [0], [1], [0, 0, 1, 1], [], []>} : vector<64x128xf32>, vector<128x128xf32>, vector<64x128xf32> -> vector<64x128xf32>
    %71 = arith.addf %62, %70 : vector<64x128xf32>
    %c1_i32_53 = arith.constant 1 : i32
    %72 = arith.addi %0, %c1_i32_53 : i32
    %c0_54 = arith.constant 0 : index
    %73 = arith.index_cast %72 : i32 to index
    %c1_55 = arith.constant 1 : index
    %c0_56 = arith.constant 0 : index
    %74 = vector.load %arg2[%c0_54, %73, %c1_55, %c0_56] : memref<1x9x9x128xf32, #tpu.memory_space<vmem>>, vector<1x8x8x128xf32>
    %75 = vector.shape_cast %74 : vector<1x8x8x128xf32> to vector<8x8x128xf32>
    %76 = vector.shape_cast %75 : vector<8x8x128xf32> to vector<64x128xf32>
    %c8 = arith.constant 8 : index
    %c0_57 = arith.constant 0 : index
    %c0_58 = arith.constant 0 : index
    %77 = vector.load %arg6[%c8, %c0_57, %c0_58] : memref<9x128x128xf32, #tpu.memory_space<vmem>>, vector<1x128x128xf32>
    %78 = vector.shape_cast %77 : vector<1x128x128xf32> to vector<128x128xf32>
    %cst_59 = arith.constant dense<0.000000e+00> : vector<64x128xf32>
    %79 = tpu.matmul %76, %78, %cst_59 {dimension_numbers = #tpu.dot_dimension_numbers<[1], [0], [0], [1], [0, 0, 1, 1], [], []>} : vector<64x128xf32>, vector<128x128xf32>, vector<64x128xf32> -> vector<64x128xf32>
    %80 = arith.addf %71, %79 : vector<64x128xf32>
    %c0_60 = arith.constant 0 : index
    %c0_61 = arith.constant 0 : index
    %81 = vector.load %arg7[%c0_60, %c0_61] : memref<64x128xf32, #tpu.memory_space<vmem>>, vector<64x128xf32>
    tpu.vector_store %arg7[%c0_60, %c0_61], %80 {strides = array<i32>} : memref<64x128xf32, #tpu.memory_space<vmem>>, vector<64x128xf32>,
    %cst_62 = arith.constant dense<0.000000e+00> : vector<128xf32>
    %82 = vector.multi_reduction <add>, %80, %cst_62 [0] : vector<64x128xf32> to vector<128xf32>
    %83 = vector.shape_cast %82 : vector<128xf32> to vector<1x128xf32>
    %84 = vector.shape_cast %83 : vector<1x128xf32> to vector<1x1x128xf32>
    %c0_63 = arith.constant 0 : index
    %c0_64 = arith.constant 0 : index
    %c0_65 = arith.constant 0 : index
    %85 = vector.load %arg8[%c0_63, %c0_64, %c0_65] : memref<1x1x128xf32, #tpu.memory_space<vmem>>, vector<1x1x128xf32>
    tpu.vector_store %arg8[%c0_63, %c0_64, %c0_65], %84 {strides = array<i32>} : memref<1x1x128xf32, #tpu.memory_space<vmem>>, vector<1x1x128xf32>,
    %86 = arith.mulf %80, %80 : vector<64x128xf32>
    %cst_66 = arith.constant dense<0.000000e+00> : vector<128xf32>
    %87 = vector.multi_reduction <add>, %86, %cst_66 [0] : vector<64x128xf32> to vector<128xf32>
    %88 = vector.shape_cast %87 : vector<128xf32> to vector<1x128xf32>
    %89 = vector.shape_cast %88 : vector<1x128xf32> to vector<1x1x128xf32>
    %c0_67 = arith.constant 0 : index
    %c0_68 = arith.constant 0 : index
    %c0_69 = arith.constant 0 : index
    %90 = vector.load %arg9[%c0_67, %c0_68, %c0_69] : memref<1x1x128xf32, #tpu.memory_space<vmem>>, vector<1x1x128xf32>
    tpu.vector_store %arg9[%c0_67, %c0_68, %c0_69], %89 {strides = array<i32>} : memref<1x1x128xf32, #tpu.memory_space<vmem>>, vector<1x1x128xf32>,
    return
  }
  func.func @transform_0(%arg0: i32, %arg1: i32) -> (i32, i32, i32, i32) {
    %c0_i32 = arith.constant 0 : i32
    %c0_i32_0 = arith.constant 0 : i32
    %c0_i32_1 = arith.constant 0 : i32
    %c0_i32_2 = arith.constant 0 : i32
    return %arg0, %c0_i32, %c0_i32_0, %c0_i32_1 : i32, i32, i32, i32
  }
  func.func @transform_1(%arg0: i32, %arg1: i32) -> (i32, i32, i32, i32) {
    %c0_i32 = arith.constant 0 : i32
    %c0_i32_0 = arith.constant 0 : i32
    %c0_i32_1 = arith.constant 0 : i32
    %c0_i32_2 = arith.constant 0 : i32
    return %arg0, %c0_i32, %c0_i32_0, %c0_i32_1 : i32, i32, i32, i32
  }
  func.func @transform_2(%arg0: i32, %arg1: i32) -> (i32, i32, i32, i32) {
    %c0_i32 = arith.constant 0 : i32
    %c0_i32_0 = arith.constant 0 : i32
    %c0_i32_1 = arith.constant 0 : i32
    %c0_i32_2 = arith.constant 0 : i32
    return %arg0, %c0_i32, %c0_i32_0, %c0_i32_1 : i32, i32, i32, i32
  }
  func.func @transform_3(%arg0: i32, %arg1: i32) -> (i32, i32, i32, i32) {
    %c0_i32 = arith.constant 0 : i32
    %c0_i32_0 = arith.constant 0 : i32
    %c0_i32_1 = arith.constant 0 : i32
    %c0_i32_2 = arith.constant 0 : i32
    return %arg0, %c0_i32, %c0_i32_0, %c0_i32_1 : i32, i32, i32, i32
  }
  func.func @transform_4(%arg0: i32, %arg1: i32) -> (i32, i32, i32) {
    %c0_i32 = arith.constant 0 : i32
    %c0_i32_0 = arith.constant 0 : i32
    %c0_i32_1 = arith.constant 0 : i32
    %c0_i32_2 = arith.constant 0 : i32
    return %c0_i32, %c0_i32_0, %c0_i32_1 : i32, i32, i32
  }
  func.func @transform_5(%arg0: i32, %arg1: i32) -> (i32, i32) {
    %c1_i32 = arith.constant 1 : i32
    %0 = arith.muli %arg0, %c1_i32 : i32
    %1 = arith.addi %0, %arg1 : i32
    %c0_i32 = arith.constant 0 : i32
    %c0_i32_0 = arith.constant 0 : i32
    return %1, %c0_i32 : i32, i32
  }
  func.func @transform_6(%arg0: i32, %arg1: i32) -> (i32, i32, i32) {
    %c1_i32 = arith.constant 1 : i32
    %0 = arith.muli %arg0, %c1_i32 : i32
    %1 = arith.addi %0, %arg1 : i32
    %c0_i32 = arith.constant 0 : i32
    %c0_i32_0 = arith.constant 0 : i32
    %c0_i32_1 = arith.constant 0 : i32
    return %1, %c0_i32, %c0_i32_0 : i32, i32, i32
  }
  func.func @transform_7(%arg0: i32, %arg1: i32) -> (i32, i32, i32) {
    %c1_i32 = arith.constant 1 : i32
    %0 = arith.muli %arg0, %c1_i32 : i32
    %1 = arith.addi %0, %arg1 : i32
    %c0_i32 = arith.constant 0 : i32
    %c0_i32_0 = arith.constant 0 : i32
    %c0_i32_1 = arith.constant 0 : i32
    return %1, %c0_i32, %c0_i32_0 : i32, i32, i32
  }
}

module attributes {stable_mosaic.version = 11 : i64} {
  func.func @_conv_s1_bnlrelu_kernel(%arg0: i32, %arg1: i32, %arg2: memref<1x10x10x128xf32, #tpu.memory_space<vmem>>, %arg3: memref<1x128xf32, #tpu.memory_space<vmem>>, %arg4: memref<1x128xf32, #tpu.memory_space<vmem>>, %arg5: memref<9x128x128xf32, #tpu.memory_space<vmem>>, %arg6: memref<64x128xf32, #tpu.memory_space<vmem>>, %arg7: memref<1x1x128xf32, #tpu.memory_space<vmem>>, %arg8: memref<1x1x128xf32, #tpu.memory_space<vmem>>) attributes {dimension_semantics = [#tpu.dimension_semantics<parallel>, #tpu.dimension_semantics<parallel>], iteration_bounds = array<i64: 2, 1>, scalar_prefetch = 0 : i64, scratch_operands = 0 : i64, tpu.core_type = #tpu.core_type<tc>, window_params = [{transform_indices = @transform_0, window_bounds = array<i64: 1, 10, 10, 128>}, {pipeline_mode = #tpu.pipeline_mode<synchronous>, transform_indices = @transform_1, window_bounds = array<i64: 1, 128>}, {pipeline_mode = #tpu.pipeline_mode<synchronous>, transform_indices = @transform_2, window_bounds = array<i64: 1, 128>}, {pipeline_mode = #tpu.pipeline_mode<synchronous>, transform_indices = @transform_3, window_bounds = array<i64: 9, 128, 128>}, {transform_indices = @transform_4, window_bounds = array<i64: 64, 128>}, {transform_indices = @transform_5, window_bounds = array<i64: 1, 1, 128>}, {transform_indices = @transform_6, window_bounds = array<i64: 1, 1, 128>}]} {
    %c8_i32 = arith.constant 8 : i32
    %0 = arith.muli %arg1, %c8_i32 : i32
    %c0 = arith.constant 0 : index
    %c0_0 = arith.constant 0 : index
    %1 = vector.load %arg3[%c0, %c0_0] : memref<1x128xf32, #tpu.memory_space<vmem>>, vector<1x128xf32>
    %c0_1 = arith.constant 0 : index
    %c0_2 = arith.constant 0 : index
    %2 = vector.load %arg4[%c0_1, %c0_2] : memref<1x128xf32, #tpu.memory_space<vmem>>, vector<1x128xf32>
    %c0_i32 = arith.constant 0 : i32
    %3 = arith.addi %0, %c0_i32 : i32
    %c0_3 = arith.constant 0 : index
    %4 = arith.index_cast %3 : i32 to index
    %c0_4 = arith.constant 0 : index
    %c0_5 = arith.constant 0 : index
    %5 = vector.load %arg2[%c0_3, %4, %c0_4, %c0_5] : memref<1x10x10x128xf32, #tpu.memory_space<vmem>>, vector<1x8x8x128xf32>
    %6 = vector.shape_cast %5 : vector<1x8x8x128xf32> to vector<8x8x128xf32>
    %7 = vector.shape_cast %6 : vector<8x8x128xf32> to vector<64x128xf32>
    %8 = vector.broadcast %1 : vector<1x128xf32> to vector<64x128xf32>
    %9 = arith.mulf %7, %8 : vector<64x128xf32>
    %10 = vector.broadcast %2 : vector<1x128xf32> to vector<64x128xf32>
    %11 = arith.addf %9, %10 : vector<64x128xf32>
    %cst = arith.constant 0.000000e+00 : f32
    %12 = vector.broadcast %cst : f32 to vector<64x128xf32>
    %13 = arith.cmpf oge, %11, %12 : vector<64x128xf32>
    %cst_6 = arith.constant 2.000000e-01 : f32
    %14 = vector.broadcast %cst_6 : f32 to vector<64x128xf32>
    %15 = arith.mulf %14, %11 : vector<64x128xf32>
    %16 = arith.select %13, %11, %15 : vector<64x128xi1>, vector<64x128xf32>
    %c0_7 = arith.constant 0 : index
    %c0_8 = arith.constant 0 : index
    %c0_9 = arith.constant 0 : index
    %17 = vector.load %arg5[%c0_7, %c0_8, %c0_9] : memref<9x128x128xf32, #tpu.memory_space<vmem>>, vector<1x128x128xf32>
    %18 = vector.shape_cast %17 : vector<1x128x128xf32> to vector<128x128xf32>
    %cst_10 = arith.constant dense<0.000000e+00> : vector<64x128xf32>
    %19 = tpu.matmul %16, %18, %cst_10 {dimension_numbers = #tpu.dot_dimension_numbers<[1], [0], [0], [1], [0, 0, 1, 1], [], []>} : vector<64x128xf32>, vector<128x128xf32>, vector<64x128xf32> -> vector<64x128xf32>
    %c0_i32_11 = arith.constant 0 : i32
    %20 = arith.addi %0, %c0_i32_11 : i32
    %c0_12 = arith.constant 0 : index
    %21 = arith.index_cast %20 : i32 to index
    %c1 = arith.constant 1 : index
    %c0_13 = arith.constant 0 : index
    %22 = vector.load %arg2[%c0_12, %21, %c1, %c0_13] : memref<1x10x10x128xf32, #tpu.memory_space<vmem>>, vector<1x8x8x128xf32>
    %23 = vector.shape_cast %22 : vector<1x8x8x128xf32> to vector<8x8x128xf32>
    %24 = vector.shape_cast %23 : vector<8x8x128xf32> to vector<64x128xf32>
    %25 = vector.broadcast %1 : vector<1x128xf32> to vector<64x128xf32>
    %26 = arith.mulf %24, %25 : vector<64x128xf32>
    %27 = vector.broadcast %2 : vector<1x128xf32> to vector<64x128xf32>
    %28 = arith.addf %26, %27 : vector<64x128xf32>
    %cst_14 = arith.constant 0.000000e+00 : f32
    %29 = vector.broadcast %cst_14 : f32 to vector<64x128xf32>
    %30 = arith.cmpf oge, %28, %29 : vector<64x128xf32>
    %cst_15 = arith.constant 2.000000e-01 : f32
    %31 = vector.broadcast %cst_15 : f32 to vector<64x128xf32>
    %32 = arith.mulf %31, %28 : vector<64x128xf32>
    %33 = arith.select %30, %28, %32 : vector<64x128xi1>, vector<64x128xf32>
    %c1_16 = arith.constant 1 : index
    %c0_17 = arith.constant 0 : index
    %c0_18 = arith.constant 0 : index
    %34 = vector.load %arg5[%c1_16, %c0_17, %c0_18] : memref<9x128x128xf32, #tpu.memory_space<vmem>>, vector<1x128x128xf32>
    %35 = vector.shape_cast %34 : vector<1x128x128xf32> to vector<128x128xf32>
    %cst_19 = arith.constant dense<0.000000e+00> : vector<64x128xf32>
    %36 = tpu.matmul %33, %35, %cst_19 {dimension_numbers = #tpu.dot_dimension_numbers<[1], [0], [0], [1], [0, 0, 1, 1], [], []>} : vector<64x128xf32>, vector<128x128xf32>, vector<64x128xf32> -> vector<64x128xf32>
    %37 = arith.addf %19, %36 : vector<64x128xf32>
    %c0_i32_20 = arith.constant 0 : i32
    %38 = arith.addi %0, %c0_i32_20 : i32
    %c0_21 = arith.constant 0 : index
    %39 = arith.index_cast %38 : i32 to index
    %c2 = arith.constant 2 : index
    %c0_22 = arith.constant 0 : index
    %40 = vector.load %arg2[%c0_21, %39, %c2, %c0_22] : memref<1x10x10x128xf32, #tpu.memory_space<vmem>>, vector<1x8x8x128xf32>
    %41 = vector.shape_cast %40 : vector<1x8x8x128xf32> to vector<8x8x128xf32>
    %42 = vector.shape_cast %41 : vector<8x8x128xf32> to vector<64x128xf32>
    %43 = vector.broadcast %1 : vector<1x128xf32> to vector<64x128xf32>
    %44 = arith.mulf %42, %43 : vector<64x128xf32>
    %45 = vector.broadcast %2 : vector<1x128xf32> to vector<64x128xf32>
    %46 = arith.addf %44, %45 : vector<64x128xf32>
    %cst_23 = arith.constant 0.000000e+00 : f32
    %47 = vector.broadcast %cst_23 : f32 to vector<64x128xf32>
    %48 = arith.cmpf oge, %46, %47 : vector<64x128xf32>
    %cst_24 = arith.constant 2.000000e-01 : f32
    %49 = vector.broadcast %cst_24 : f32 to vector<64x128xf32>
    %50 = arith.mulf %49, %46 : vector<64x128xf32>
    %51 = arith.select %48, %46, %50 : vector<64x128xi1>, vector<64x128xf32>
    %c2_25 = arith.constant 2 : index
    %c0_26 = arith.constant 0 : index
    %c0_27 = arith.constant 0 : index
    %52 = vector.load %arg5[%c2_25, %c0_26, %c0_27] : memref<9x128x128xf32, #tpu.memory_space<vmem>>, vector<1x128x128xf32>
    %53 = vector.shape_cast %52 : vector<1x128x128xf32> to vector<128x128xf32>
    %cst_28 = arith.constant dense<0.000000e+00> : vector<64x128xf32>
    %54 = tpu.matmul %51, %53, %cst_28 {dimension_numbers = #tpu.dot_dimension_numbers<[1], [0], [0], [1], [0, 0, 1, 1], [], []>} : vector<64x128xf32>, vector<128x128xf32>, vector<64x128xf32> -> vector<64x128xf32>
    %55 = arith.addf %37, %54 : vector<64x128xf32>
    %c1_i32 = arith.constant 1 : i32
    %56 = arith.addi %0, %c1_i32 : i32
    %c0_29 = arith.constant 0 : index
    %57 = arith.index_cast %56 : i32 to index
    %c0_30 = arith.constant 0 : index
    %c0_31 = arith.constant 0 : index
    %58 = vector.load %arg2[%c0_29, %57, %c0_30, %c0_31] : memref<1x10x10x128xf32, #tpu.memory_space<vmem>>, vector<1x8x8x128xf32>
    %59 = vector.shape_cast %58 : vector<1x8x8x128xf32> to vector<8x8x128xf32>
    %60 = vector.shape_cast %59 : vector<8x8x128xf32> to vector<64x128xf32>
    %61 = vector.broadcast %1 : vector<1x128xf32> to vector<64x128xf32>
    %62 = arith.mulf %60, %61 : vector<64x128xf32>
    %63 = vector.broadcast %2 : vector<1x128xf32> to vector<64x128xf32>
    %64 = arith.addf %62, %63 : vector<64x128xf32>
    %cst_32 = arith.constant 0.000000e+00 : f32
    %65 = vector.broadcast %cst_32 : f32 to vector<64x128xf32>
    %66 = arith.cmpf oge, %64, %65 : vector<64x128xf32>
    %cst_33 = arith.constant 2.000000e-01 : f32
    %67 = vector.broadcast %cst_33 : f32 to vector<64x128xf32>
    %68 = arith.mulf %67, %64 : vector<64x128xf32>
    %69 = arith.select %66, %64, %68 : vector<64x128xi1>, vector<64x128xf32>
    %c3 = arith.constant 3 : index
    %c0_34 = arith.constant 0 : index
    %c0_35 = arith.constant 0 : index
    %70 = vector.load %arg5[%c3, %c0_34, %c0_35] : memref<9x128x128xf32, #tpu.memory_space<vmem>>, vector<1x128x128xf32>
    %71 = vector.shape_cast %70 : vector<1x128x128xf32> to vector<128x128xf32>
    %cst_36 = arith.constant dense<0.000000e+00> : vector<64x128xf32>
    %72 = tpu.matmul %69, %71, %cst_36 {dimension_numbers = #tpu.dot_dimension_numbers<[1], [0], [0], [1], [0, 0, 1, 1], [], []>} : vector<64x128xf32>, vector<128x128xf32>, vector<64x128xf32> -> vector<64x128xf32>
    %73 = arith.addf %55, %72 : vector<64x128xf32>
    %c1_i32_37 = arith.constant 1 : i32
    %74 = arith.addi %0, %c1_i32_37 : i32
    %c0_38 = arith.constant 0 : index
    %75 = arith.index_cast %74 : i32 to index
    %c1_39 = arith.constant 1 : index
    %c0_40 = arith.constant 0 : index
    %76 = vector.load %arg2[%c0_38, %75, %c1_39, %c0_40] : memref<1x10x10x128xf32, #tpu.memory_space<vmem>>, vector<1x8x8x128xf32>
    %77 = vector.shape_cast %76 : vector<1x8x8x128xf32> to vector<8x8x128xf32>
    %78 = vector.shape_cast %77 : vector<8x8x128xf32> to vector<64x128xf32>
    %79 = vector.broadcast %1 : vector<1x128xf32> to vector<64x128xf32>
    %80 = arith.mulf %78, %79 : vector<64x128xf32>
    %81 = vector.broadcast %2 : vector<1x128xf32> to vector<64x128xf32>
    %82 = arith.addf %80, %81 : vector<64x128xf32>
    %cst_41 = arith.constant 0.000000e+00 : f32
    %83 = vector.broadcast %cst_41 : f32 to vector<64x128xf32>
    %84 = arith.cmpf oge, %82, %83 : vector<64x128xf32>
    %cst_42 = arith.constant 2.000000e-01 : f32
    %85 = vector.broadcast %cst_42 : f32 to vector<64x128xf32>
    %86 = arith.mulf %85, %82 : vector<64x128xf32>
    %87 = arith.select %84, %82, %86 : vector<64x128xi1>, vector<64x128xf32>
    %c4 = arith.constant 4 : index
    %c0_43 = arith.constant 0 : index
    %c0_44 = arith.constant 0 : index
    %88 = vector.load %arg5[%c4, %c0_43, %c0_44] : memref<9x128x128xf32, #tpu.memory_space<vmem>>, vector<1x128x128xf32>
    %89 = vector.shape_cast %88 : vector<1x128x128xf32> to vector<128x128xf32>
    %cst_45 = arith.constant dense<0.000000e+00> : vector<64x128xf32>
    %90 = tpu.matmul %87, %89, %cst_45 {dimension_numbers = #tpu.dot_dimension_numbers<[1], [0], [0], [1], [0, 0, 1, 1], [], []>} : vector<64x128xf32>, vector<128x128xf32>, vector<64x128xf32> -> vector<64x128xf32>
    %91 = arith.addf %73, %90 : vector<64x128xf32>
    %c1_i32_46 = arith.constant 1 : i32
    %92 = arith.addi %0, %c1_i32_46 : i32
    %c0_47 = arith.constant 0 : index
    %93 = arith.index_cast %92 : i32 to index
    %c2_48 = arith.constant 2 : index
    %c0_49 = arith.constant 0 : index
    %94 = vector.load %arg2[%c0_47, %93, %c2_48, %c0_49] : memref<1x10x10x128xf32, #tpu.memory_space<vmem>>, vector<1x8x8x128xf32>
    %95 = vector.shape_cast %94 : vector<1x8x8x128xf32> to vector<8x8x128xf32>
    %96 = vector.shape_cast %95 : vector<8x8x128xf32> to vector<64x128xf32>
    %97 = vector.broadcast %1 : vector<1x128xf32> to vector<64x128xf32>
    %98 = arith.mulf %96, %97 : vector<64x128xf32>
    %99 = vector.broadcast %2 : vector<1x128xf32> to vector<64x128xf32>
    %100 = arith.addf %98, %99 : vector<64x128xf32>
    %cst_50 = arith.constant 0.000000e+00 : f32
    %101 = vector.broadcast %cst_50 : f32 to vector<64x128xf32>
    %102 = arith.cmpf oge, %100, %101 : vector<64x128xf32>
    %cst_51 = arith.constant 2.000000e-01 : f32
    %103 = vector.broadcast %cst_51 : f32 to vector<64x128xf32>
    %104 = arith.mulf %103, %100 : vector<64x128xf32>
    %105 = arith.select %102, %100, %104 : vector<64x128xi1>, vector<64x128xf32>
    %c5 = arith.constant 5 : index
    %c0_52 = arith.constant 0 : index
    %c0_53 = arith.constant 0 : index
    %106 = vector.load %arg5[%c5, %c0_52, %c0_53] : memref<9x128x128xf32, #tpu.memory_space<vmem>>, vector<1x128x128xf32>
    %107 = vector.shape_cast %106 : vector<1x128x128xf32> to vector<128x128xf32>
    %cst_54 = arith.constant dense<0.000000e+00> : vector<64x128xf32>
    %108 = tpu.matmul %105, %107, %cst_54 {dimension_numbers = #tpu.dot_dimension_numbers<[1], [0], [0], [1], [0, 0, 1, 1], [], []>} : vector<64x128xf32>, vector<128x128xf32>, vector<64x128xf32> -> vector<64x128xf32>
    %109 = arith.addf %91, %108 : vector<64x128xf32>
    %c2_i32 = arith.constant 2 : i32
    %110 = arith.addi %0, %c2_i32 : i32
    %c0_55 = arith.constant 0 : index
    %111 = arith.index_cast %110 : i32 to index
    %c0_56 = arith.constant 0 : index
    %c0_57 = arith.constant 0 : index
    %112 = vector.load %arg2[%c0_55, %111, %c0_56, %c0_57] : memref<1x10x10x128xf32, #tpu.memory_space<vmem>>, vector<1x8x8x128xf32>
    %113 = vector.shape_cast %112 : vector<1x8x8x128xf32> to vector<8x8x128xf32>
    %114 = vector.shape_cast %113 : vector<8x8x128xf32> to vector<64x128xf32>
    %115 = vector.broadcast %1 : vector<1x128xf32> to vector<64x128xf32>
    %116 = arith.mulf %114, %115 : vector<64x128xf32>
    %117 = vector.broadcast %2 : vector<1x128xf32> to vector<64x128xf32>
    %118 = arith.addf %116, %117 : vector<64x128xf32>
    %cst_58 = arith.constant 0.000000e+00 : f32
    %119 = vector.broadcast %cst_58 : f32 to vector<64x128xf32>
    %120 = arith.cmpf oge, %118, %119 : vector<64x128xf32>
    %cst_59 = arith.constant 2.000000e-01 : f32
    %121 = vector.broadcast %cst_59 : f32 to vector<64x128xf32>
    %122 = arith.mulf %121, %118 : vector<64x128xf32>
    %123 = arith.select %120, %118, %122 : vector<64x128xi1>, vector<64x128xf32>
    %c6 = arith.constant 6 : index
    %c0_60 = arith.constant 0 : index
    %c0_61 = arith.constant 0 : index
    %124 = vector.load %arg5[%c6, %c0_60, %c0_61] : memref<9x128x128xf32, #tpu.memory_space<vmem>>, vector<1x128x128xf32>
    %125 = vector.shape_cast %124 : vector<1x128x128xf32> to vector<128x128xf32>
    %cst_62 = arith.constant dense<0.000000e+00> : vector<64x128xf32>
    %126 = tpu.matmul %123, %125, %cst_62 {dimension_numbers = #tpu.dot_dimension_numbers<[1], [0], [0], [1], [0, 0, 1, 1], [], []>} : vector<64x128xf32>, vector<128x128xf32>, vector<64x128xf32> -> vector<64x128xf32>
    %127 = arith.addf %109, %126 : vector<64x128xf32>
    %c2_i32_63 = arith.constant 2 : i32
    %128 = arith.addi %0, %c2_i32_63 : i32
    %c0_64 = arith.constant 0 : index
    %129 = arith.index_cast %128 : i32 to index
    %c1_65 = arith.constant 1 : index
    %c0_66 = arith.constant 0 : index
    %130 = vector.load %arg2[%c0_64, %129, %c1_65, %c0_66] : memref<1x10x10x128xf32, #tpu.memory_space<vmem>>, vector<1x8x8x128xf32>
    %131 = vector.shape_cast %130 : vector<1x8x8x128xf32> to vector<8x8x128xf32>
    %132 = vector.shape_cast %131 : vector<8x8x128xf32> to vector<64x128xf32>
    %133 = vector.broadcast %1 : vector<1x128xf32> to vector<64x128xf32>
    %134 = arith.mulf %132, %133 : vector<64x128xf32>
    %135 = vector.broadcast %2 : vector<1x128xf32> to vector<64x128xf32>
    %136 = arith.addf %134, %135 : vector<64x128xf32>
    %cst_67 = arith.constant 0.000000e+00 : f32
    %137 = vector.broadcast %cst_67 : f32 to vector<64x128xf32>
    %138 = arith.cmpf oge, %136, %137 : vector<64x128xf32>
    %cst_68 = arith.constant 2.000000e-01 : f32
    %139 = vector.broadcast %cst_68 : f32 to vector<64x128xf32>
    %140 = arith.mulf %139, %136 : vector<64x128xf32>
    %141 = arith.select %138, %136, %140 : vector<64x128xi1>, vector<64x128xf32>
    %c7 = arith.constant 7 : index
    %c0_69 = arith.constant 0 : index
    %c0_70 = arith.constant 0 : index
    %142 = vector.load %arg5[%c7, %c0_69, %c0_70] : memref<9x128x128xf32, #tpu.memory_space<vmem>>, vector<1x128x128xf32>
    %143 = vector.shape_cast %142 : vector<1x128x128xf32> to vector<128x128xf32>
    %cst_71 = arith.constant dense<0.000000e+00> : vector<64x128xf32>
    %144 = tpu.matmul %141, %143, %cst_71 {dimension_numbers = #tpu.dot_dimension_numbers<[1], [0], [0], [1], [0, 0, 1, 1], [], []>} : vector<64x128xf32>, vector<128x128xf32>, vector<64x128xf32> -> vector<64x128xf32>
    %145 = arith.addf %127, %144 : vector<64x128xf32>
    %c2_i32_72 = arith.constant 2 : i32
    %146 = arith.addi %0, %c2_i32_72 : i32
    %c0_73 = arith.constant 0 : index
    %147 = arith.index_cast %146 : i32 to index
    %c2_74 = arith.constant 2 : index
    %c0_75 = arith.constant 0 : index
    %148 = vector.load %arg2[%c0_73, %147, %c2_74, %c0_75] : memref<1x10x10x128xf32, #tpu.memory_space<vmem>>, vector<1x8x8x128xf32>
    %149 = vector.shape_cast %148 : vector<1x8x8x128xf32> to vector<8x8x128xf32>
    %150 = vector.shape_cast %149 : vector<8x8x128xf32> to vector<64x128xf32>
    %151 = vector.broadcast %1 : vector<1x128xf32> to vector<64x128xf32>
    %152 = arith.mulf %150, %151 : vector<64x128xf32>
    %153 = vector.broadcast %2 : vector<1x128xf32> to vector<64x128xf32>
    %154 = arith.addf %152, %153 : vector<64x128xf32>
    %cst_76 = arith.constant 0.000000e+00 : f32
    %155 = vector.broadcast %cst_76 : f32 to vector<64x128xf32>
    %156 = arith.cmpf oge, %154, %155 : vector<64x128xf32>
    %cst_77 = arith.constant 2.000000e-01 : f32
    %157 = vector.broadcast %cst_77 : f32 to vector<64x128xf32>
    %158 = arith.mulf %157, %154 : vector<64x128xf32>
    %159 = arith.select %156, %154, %158 : vector<64x128xi1>, vector<64x128xf32>
    %c8 = arith.constant 8 : index
    %c0_78 = arith.constant 0 : index
    %c0_79 = arith.constant 0 : index
    %160 = vector.load %arg5[%c8, %c0_78, %c0_79] : memref<9x128x128xf32, #tpu.memory_space<vmem>>, vector<1x128x128xf32>
    %161 = vector.shape_cast %160 : vector<1x128x128xf32> to vector<128x128xf32>
    %cst_80 = arith.constant dense<0.000000e+00> : vector<64x128xf32>
    %162 = tpu.matmul %159, %161, %cst_80 {dimension_numbers = #tpu.dot_dimension_numbers<[1], [0], [0], [1], [0, 0, 1, 1], [], []>} : vector<64x128xf32>, vector<128x128xf32>, vector<64x128xf32> -> vector<64x128xf32>
    %163 = arith.addf %145, %162 : vector<64x128xf32>
    %c0_81 = arith.constant 0 : index
    %c0_82 = arith.constant 0 : index
    %164 = vector.load %arg6[%c0_81, %c0_82] : memref<64x128xf32, #tpu.memory_space<vmem>>, vector<64x128xf32>
    tpu.vector_store %arg6[%c0_81, %c0_82], %163 {strides = array<i32>} : memref<64x128xf32, #tpu.memory_space<vmem>>, vector<64x128xf32>,
    %cst_83 = arith.constant dense<0.000000e+00> : vector<128xf32>
    %165 = vector.multi_reduction <add>, %163, %cst_83 [0] : vector<64x128xf32> to vector<128xf32>
    %166 = vector.shape_cast %165 : vector<128xf32> to vector<1x128xf32>
    %167 = vector.shape_cast %166 : vector<1x128xf32> to vector<1x1x128xf32>
    %c0_84 = arith.constant 0 : index
    %c0_85 = arith.constant 0 : index
    %c0_86 = arith.constant 0 : index
    %168 = vector.load %arg7[%c0_84, %c0_85, %c0_86] : memref<1x1x128xf32, #tpu.memory_space<vmem>>, vector<1x1x128xf32>
    tpu.vector_store %arg7[%c0_84, %c0_85, %c0_86], %167 {strides = array<i32>} : memref<1x1x128xf32, #tpu.memory_space<vmem>>, vector<1x1x128xf32>,
    %169 = arith.mulf %163, %163 : vector<64x128xf32>
    %cst_87 = arith.constant dense<0.000000e+00> : vector<128xf32>
    %170 = vector.multi_reduction <add>, %169, %cst_87 [0] : vector<64x128xf32> to vector<128xf32>
    %171 = vector.shape_cast %170 : vector<128xf32> to vector<1x128xf32>
    %172 = vector.shape_cast %171 : vector<1x128xf32> to vector<1x1x128xf32>
    %c0_88 = arith.constant 0 : index
    %c0_89 = arith.constant 0 : index
    %c0_90 = arith.constant 0 : index
    %173 = vector.load %arg8[%c0_88, %c0_89, %c0_90] : memref<1x1x128xf32, #tpu.memory_space<vmem>>, vector<1x1x128xf32>
    tpu.vector_store %arg8[%c0_88, %c0_89, %c0_90], %172 {strides = array<i32>} : memref<1x1x128xf32, #tpu.memory_space<vmem>>, vector<1x1x128xf32>,
    return
  }
  func.func @transform_0(%arg0: i32, %arg1: i32) -> (i32, i32, i32, i32) {
    %c0_i32 = arith.constant 0 : i32
    %c0_i32_0 = arith.constant 0 : i32
    %c0_i32_1 = arith.constant 0 : i32
    %c0_i32_2 = arith.constant 0 : i32
    return %arg0, %c0_i32, %c0_i32_0, %c0_i32_1 : i32, i32, i32, i32
  }
  func.func @transform_1(%arg0: i32, %arg1: i32) -> (i32, i32) {
    %c0_i32 = arith.constant 0 : i32
    %c0_i32_0 = arith.constant 0 : i32
    %c0_i32_1 = arith.constant 0 : i32
    return %c0_i32, %c0_i32_0 : i32, i32
  }
  func.func @transform_2(%arg0: i32, %arg1: i32) -> (i32, i32) {
    %c0_i32 = arith.constant 0 : i32
    %c0_i32_0 = arith.constant 0 : i32
    %c0_i32_1 = arith.constant 0 : i32
    return %c0_i32, %c0_i32_0 : i32, i32
  }
  func.func @transform_3(%arg0: i32, %arg1: i32) -> (i32, i32, i32) {
    %c0_i32 = arith.constant 0 : i32
    %c0_i32_0 = arith.constant 0 : i32
    %c0_i32_1 = arith.constant 0 : i32
    %c0_i32_2 = arith.constant 0 : i32
    return %c0_i32, %c0_i32_0, %c0_i32_1 : i32, i32, i32
  }
  func.func @transform_4(%arg0: i32, %arg1: i32) -> (i32, i32) {
    %c1_i32 = arith.constant 1 : i32
    %0 = arith.muli %arg0, %c1_i32 : i32
    %1 = arith.addi %0, %arg1 : i32
    %c0_i32 = arith.constant 0 : i32
    %c0_i32_0 = arith.constant 0 : i32
    return %1, %c0_i32 : i32, i32
  }
  func.func @transform_5(%arg0: i32, %arg1: i32) -> (i32, i32, i32) {
    %c1_i32 = arith.constant 1 : i32
    %0 = arith.muli %arg0, %c1_i32 : i32
    %1 = arith.addi %0, %arg1 : i32
    %c0_i32 = arith.constant 0 : i32
    %c0_i32_0 = arith.constant 0 : i32
    %c0_i32_1 = arith.constant 0 : i32
    return %1, %c0_i32, %c0_i32_0 : i32, i32, i32
  }
  func.func @transform_6(%arg0: i32, %arg1: i32) -> (i32, i32, i32) {
    %c1_i32 = arith.constant 1 : i32
    %0 = arith.muli %arg0, %c1_i32 : i32
    %1 = arith.addi %0, %arg1 : i32
    %c0_i32 = arith.constant 0 : i32
    %c0_i32_0 = arith.constant 0 : i32
    %c0_i32_1 = arith.constant 0 : i32
    return %1, %c0_i32, %c0_i32_0 : i32, i32, i32
  }
}

module attributes {stable_mosaic.version = 11 : i64} {
  func.func @_bn_lrelu_kernel(%arg0: i32, %arg1: memref<64x128xf32, #tpu.memory_space<vmem>>, %arg2: memref<1x128xf32, #tpu.memory_space<vmem>>, %arg3: memref<1x128xf32, #tpu.memory_space<vmem>>, %arg4: memref<64x8xf32, #tpu.memory_space<vmem>>) attributes {dimension_semantics = [#tpu.dimension_semantics<parallel>], iteration_bounds = array<i64: 2>, scalar_prefetch = 0 : i64, scratch_operands = 0 : i64, tpu.core_type = #tpu.core_type<tc>, window_params = [{transform_indices = @transform_0, window_bounds = array<i64: 64, 128>}, {pipeline_mode = #tpu.pipeline_mode<synchronous>, transform_indices = @transform_1, window_bounds = array<i64: 1, 128>}, {pipeline_mode = #tpu.pipeline_mode<synchronous>, transform_indices = @transform_2, window_bounds = array<i64: 1, 128>}, {transform_indices = @transform_3, window_bounds = array<i64: 64, 8>}]} {
    %c0 = arith.constant 0 : index
    %c0_0 = arith.constant 0 : index
    %0 = vector.load %arg1[%c0, %c0_0] : memref<64x128xf32, #tpu.memory_space<vmem>>, vector<64x128xf32>
    %c0_1 = arith.constant 0 : index
    %c0_2 = arith.constant 0 : index
    %1 = vector.load %arg2[%c0_1, %c0_2] : memref<1x128xf32, #tpu.memory_space<vmem>>, vector<1x128xf32>
    %2 = vector.broadcast %1 : vector<1x128xf32> to vector<64x128xf32>
    %3 = arith.mulf %0, %2 : vector<64x128xf32>
    %c0_3 = arith.constant 0 : index
    %c0_4 = arith.constant 0 : index
    %4 = vector.load %arg3[%c0_3, %c0_4] : memref<1x128xf32, #tpu.memory_space<vmem>>, vector<1x128xf32>
    %5 = vector.broadcast %4 : vector<1x128xf32> to vector<64x128xf32>
    %6 = arith.addf %3, %5 : vector<64x128xf32>
    %cst = arith.constant 0.000000e+00 : f32
    %7 = vector.broadcast %cst : f32 to vector<64x128xf32>
    %8 = arith.cmpf oge, %6, %7 : vector<64x128xf32>
    %cst_5 = arith.constant 2.000000e-01 : f32
    %9 = vector.broadcast %cst_5 : f32 to vector<64x128xf32>
    %10 = arith.mulf %9, %6 : vector<64x128xf32>
    %11 = arith.select %8, %6, %10 : vector<64x128xi1>, vector<64x128xf32>
    %12 = vector.extract_strided_slice %11 {offsets = [0, 0], sizes = [64, 8], strides = [1, 1]} : vector<64x128xf32> to vector<64x8xf32>
    %c0_6 = arith.constant 0 : index
    %c0_7 = arith.constant 0 : index
    %13 = vector.load %arg4[%c0_6, %c0_7] : memref<64x8xf32, #tpu.memory_space<vmem>>, vector<64x8xf32>
    tpu.vector_store %arg4[%c0_6, %c0_7], %12 {strides = array<i32>} : memref<64x8xf32, #tpu.memory_space<vmem>>, vector<64x8xf32>,
    return
  }
  func.func @transform_0(%arg0: i32) -> (i32, i32) {
    %c0_i32 = arith.constant 0 : i32
    %c0_i32_0 = arith.constant 0 : i32
    return %arg0, %c0_i32 : i32, i32
  }
  func.func @transform_1(%arg0: i32) -> (i32, i32) {
    %c0_i32 = arith.constant 0 : i32
    %c0_i32_0 = arith.constant 0 : i32
    %c0_i32_1 = arith.constant 0 : i32
    return %c0_i32, %c0_i32_0 : i32, i32
  }
  func.func @transform_2(%arg0: i32) -> (i32, i32) {
    %c0_i32 = arith.constant 0 : i32
    %c0_i32_0 = arith.constant 0 : i32
    %c0_i32_1 = arith.constant 0 : i32
    return %c0_i32, %c0_i32_0 : i32, i32
  }
  func.func @transform_3(%arg0: i32) -> (i32, i32) {
    %c0_i32 = arith.constant 0 : i32
    %c0_i32_0 = arith.constant 0 : i32
    return %arg0, %c0_i32 : i32, i32
  }
}

</mosaic_0001>

<llo_original>
// kernel: down_forward.5
$region0: #{down_forward.5}
  #allocation0 [shape = 'u32[]', space=smem, size = 0x4, offset = 0x4, fixed_abs, tag = 'smem constant byte address 0x4 - core index']
  #allocation1 [shape = 'u32[144,128]{1,0:T(1,128)}', space=vmem, size = 0x12000, scoped, tag = 'internal scratch']
  %s0 = inlined_call_operand.vmem [shape: f32[128,128], index: 0, kind: input, shape index: {}]
  %s1 = inlined_call_operand.vmem [shape: f32[1,128], index: 1, kind: input, shape index: {}]
  %s2 = inlined_call_operand.vmem [shape: f32[1,128], index: 2, kind: input, shape index: {}]
  %s3 = inlined_call_operand.vmem [shape: f32[128,8], index: 3, kind: output, shape index: {}]
  %s4 = sld [smem:[#allocation0]]
  $region45: #{down_forward.5} parent=0
    _
  %s6 = ssub.s32 1, %s4
  %s7 = scalar_select 0, %s6, %s4
  loop: start=0, step=1, limit=4
  $region2: #{down_forward.5} parent=0 // loop_pre_header
    _
  $region3: #{down_forward.5} parent=0 // loop_header
    %s9 = sphi 0, %s13
    %p10 = scmp.ge.s32.totalorder %s9, 4
    %s19 = sphi 0, %s21
    %s22 = sphi 0, %s19
    %s23 = sphi 0, %s22
    %s39 = sphi 0, %s23
    %s43 = sphi 0, %s43
    %s45 = sphi 0, %s43
    %s46 = sphi 0, %s45
    %s60 = sphi 0, %s46
    %s64 = sphi 0, %s64
    %s66 = sphi 0, %s64
    %s67 = sphi 0, %s66
    %s81 = sphi 0, %s67
    %s87 = sphi 0, %s89
    %s90 = sphi 0, %s87
    %s91 = sphi 0, %s90
    %s107 = sphi 0, %s91
  $region4: #{down_forward.5} parent=0 // loop_header_branch
    %12 = sbr.rel (%p10) target = $region8
  $region5: #{down_forward.5} parent=0 // loop_body
    %s14 = ssub.s32 %s9, 1
    %s15 = ssub.s32 %s9, 2
    %s16 = sadd.s32 %s9, 1
    %s17 = ssub.s32 %s9, %s16
    %p18 = scmp.eq.s32.totalorder %s17, 0
    %s20 = sadd.s32 %s19, 1
    %s21 = scalar_select %p18, %s19, %s20
    %p24 = pneg %p18
    %p25 = scmp.eq.s32.totalorder %s9, 1
    %p26 = por %p24, %p25
    %p27 = scmp.ne.s32.totalorder %s19, %s22
    %p28 = scmp.eq.s32.totalorder %s9, 0
    %p29 = por %p27, %p28
    %p30 = scmp.ne.s32.totalorder %s19, %s22
    %p31 = scmp.eq.s32.totalorder %s14, 1
    %p32 = por %p30, %p31
    %p33 = scmp.ne.s32.totalorder %s22, %s23
    %p34 = scmp.eq.s32.totalorder %s14, 0
    %p35 = por %p33, %p34
    %p36 = scmp.ne.s32.totalorder %s22, %s23
    %p37 = scmp.eq.s32.totalorder %s15, 1
    %p38 = por %p36, %p37
    %p40 = scmp.ne.s32.totalorder %s23, %s39
    %p41 = scmp.eq.s32.totalorder %s15, 0
    %p42 = por %p40, %p41
    %s44 = sadd.s32 %s43, 1
    %p47 = scmp.eq.s32.totalorder %s9, 1
    %p48 = scmp.ne.s32.totalorder %s43, %s45
    %p49 = scmp.eq.s32.totalorder %s9, 0
    %p50 = por %p48, %p49
    %p51 = scmp.ne.s32.totalorder %s43, %s45
    %p52 = scmp.eq.s32.totalorder %s14, 1
    %p53 = por %p51, %p52
    %p54 = scmp.ne.s32.totalorder %s45, %s46
    %p55 = scmp.eq.s32.totalorder %s14, 0
    %p56 = por %p54, %p55
    %p57 = scmp.ne.s32.totalorder %s45, %s46
    %p58 = scmp.eq.s32.totalorder %s15, 1
    %p59 = por %p57, %p58
    %p61 = scmp.ne.s32.totalorder %s46, %s60
    %p62 = scmp.eq.s32.totalorder %s15, 0
    %p63 = por %p61, %p62
    %s65 = sadd.s32 %s64, 1
    %p68 = scmp.eq.s32.totalorder %s9, 1
    %p69 = scmp.ne.s32.totalorder %s64, %s66
    %p70 = scmp.eq.s32.totalorder %s9, 0
    %p71 = por %p69, %p70
    %p72 = scmp.ne.s32.totalorder %s64, %s66
    %p73 = scmp.eq.s32.totalorder %s14, 1
    %p74 = por %p72, %p73
    %p75 = scmp.ne.s32.totalorder %s66, %s67
    %p76 = scmp.eq.s32.totalorder %s14, 0
    %p77 = por %p75, %p76
    %p78 = scmp.ne.s32.totalorder %s66, %s67
    %p79 = scmp.eq.s32.totalorder %s15, 1
    %p80 = por %p78, %p79
    %p82 = scmp.ne.s32.totalorder %s67, %s81
    %p83 = scmp.eq.s32.totalorder %s15, 0
    %p84 = por %p82, %p83
    %s85 = ssub.s32 %s9, %s16
    %p86 = scmp.eq.s32.totalorder %s85, 0
    %s88 = sadd.s32 %s87, 1
    %s89 = scalar_select %p86, %s87, %s88
    %p92 = pneg %p86
    %p93 = scmp.eq.s32.totalorder %s9, 1
    %p94 = por %p92, %p93
    %p95 = scmp.ne.s32.totalorder %s87, %s90
    %p96 = scmp.eq.s32.totalorder %s9, 0
    %p97 = por %p95, %p96
    %p98 = scmp.ne.s32.totalorder %s87, %s90
    %p99 = scmp.eq.s32.totalorder %s14, 1
    %p100 = por %p98, %p99
    %p101 = scmp.ne.s32.totalorder %s90, %s91
    %p102 = scmp.eq.s32.totalorder %s14, 0
    %p103 = por %p101, %p102
    %p104 = scmp.ne.s32.totalorder %s90, %s91
    %p105 = scmp.eq.s32.totalorder %s15, 1
    %p106 = por %p104, %p105
    %p108 = scmp.ne.s32.totalorder %s91, %s107
    %p109 = scmp.eq.s32.totalorder %s15, 0
    %p110 = por %p108, %p109
    %p111 = scmp.le.s32.totalorder 1, %s9
    %p112 = scmp.lt.s32.totalorder %s9, 3
    %p113 = pnand %p111, %p112
    %p114 = pneg %p113
    // Predicated region
    $region9: #{down_forward.5} parent=5 // pred_check
      _
    $region10: #{down_forward.5} parent=5 // pred_check_branch
      %116 = sbr.rel (%p113) target = $region12
    $region11: #{down_forward.5} parent=5 // pred_region
      %s117 = ssub.s32 %s9, 1
      // Predicated region
      $region13: #{down_forward.5} parent=11 // pred_check
        %p118 = pneg %p56
      $region14: #{down_forward.5} parent=11 // pred_check_branch
        %120 = sbr.rel (%p118) target = $region16
      $region15: #{down_forward.5} parent=11 // pred_region
        _
      $region16: #{down_forward.5} parent=11 // pred_fallthru
        _
      // Predicated region
      $region17: #{down_forward.5} parent=11 // pred_check
        %p121 = pneg %p77
      $region18: #{down_forward.5} parent=11 // pred_check_branch
        %123 = sbr.rel (%p121) target = $region20
      $region19: #{down_forward.5} parent=11 // pred_region
        _
      $region20: #{down_forward.5} parent=11 // pred_fallthru
        _
    $region12: #{down_forward.5} parent=5 // pred_fallthru
      _
    %p124 = scmp.lt.s32.totalorder %s9, 2
    // Predicated region
    $region21: #{down_forward.5} parent=5 // pred_check
      %p125 = pneg %p124
    $region22: #{down_forward.5} parent=5 // pred_check_branch
      %127 = sbr.rel (%p125) target = $region24
    $region23: #{down_forward.5} parent=5 // pred_region
      // Predicated region
      $region25: #{down_forward.5} parent=23 // pred_check
        %p128 = pneg %p29
      $region26: #{down_forward.5} parent=23 // pred_check_branch
        %130 = sbr.rel (%p128) target = $region28
      $region27: #{down_forward.5} parent=23 // pred_region
        %s131 = smul.u32 8, %s9
        %p132 = scmp.lt.s32.totalorder %s131, 15
        %s133 = scalar_select %p132, %s131, 15
        %s134 = smul.addr %s133, 8
        %s135 = scalar_lea.vmem %s0, %s134
        %s136 = smul.u32 8, %s9
      $region28: #{down_forward.5} parent=23 // pred_fallthru
        _
    $region24: #{down_forward.5} parent=5 // pred_fallthru
      _
    %p137 = scmp.le.s32.totalorder 1, %s9
    %p138 = scmp.lt.s32.totalorder %s9, 3
    %p139 = pnand %p137, %p138
    %p140 = pneg %p139
    // Predicated region
    $region29: #{down_forward.5} parent=5 // pred_check
      _
    $region30: #{down_forward.5} parent=5 // pred_check_branch
      %142 = sbr.rel (%p139) target = $region32
    $region31: #{down_forward.5} parent=5 // pred_region
      %s143 = ssub.s32 %s9, 1
      %s144 = smul.u32 8, %s14
      %p145 = scmp.lt.s32.totalorder %s144, 15
      %s146 = scalar_select %p145, %s144, 15
      %s147 = smul.addr %s146, 8
      %s148 = scalar_lea.vmem %s0, %s147
      %p149 = pneg %p35
      %p150 = pneg %p32
      %p151 = pneg %p56
      %p152 = pneg %p53
      %p153 = pneg %p77
      %p154 = pneg %p74
      %p155 = pneg %p103
      %p156 = pneg %p100
      %s157 = smul.u32 8, %s14
      %p158 = scmp.lt.s32.totalorder %s157, 15
      %s159 = scalar_select %p158, %s157, 15
      %s160 = smul.addr %s159, 8
      %s161 = scalar_lea.vmem %s3, %s160
      %s162 = smul.u32 8, %s14
      %p163 = scmp.lt.s32.totalorder %s162, 15
      %s164 = scalar_select %p163, %s162, 15
      %s165 = smul.addr %s164, 8
      %s166 = scalar_lea.vmem %s0, %s165
      %s167 = smul.u32 8, %s14
      %s168 = smul.u32 8, %s14
      %p169 = scmp.lt.s32.totalorder %s168, 15
      %s170 = scalar_select %p169, %s168, 15
      %s171 = smul.addr %s170, 8
      %s172 = scalar_lea.vmem %s3, %s171
      %s173 = smul.u32 8, %s14
      %v174 = vld [vmem:[%s166] sm:$0xff]
      %v175 = vld [vmem:[%s166 + $0x8] sm:$0xff]
      %v176 = vld [vmem:[%s166 + $0x10] sm:$0xff]
      %v177 = vld [vmem:[%s166 + $0x18] sm:$0xff]
      %v178 = vld [vmem:[%s166 + $0x20] sm:$0xff]
      %v179 = vld [vmem:[%s166 + $0x28] sm:$0xff]
      %v180 = vld [vmem:[%s166 + $0x30] sm:$0xff]
      %v181 = vld [vmem:[%s166 + $0x38] sm:$0xff]
      %v182 = vld [vmem:[%s1] sm:$0x1]
      %v184 = vlaneseq
      %v185 = vshrl.u32 %v184, 7
      %v186 = vsub.s32 0, %v185
      %v187 = vrot.slane %v182, %v186
      %v189 = vmul.f32 %v174, %v187
      %v190 = vmul.f32 %v175, %v187
      %v191 = vmul.f32 %v176, %v187
      %v192 = vmul.f32 %v177, %v187
      %v193 = vmul.f32 %v178, %v187
      %v194 = vmul.f32 %v179, %v187
      %v195 = vmul.f32 %v180, %v187
      %v196 = vmul.f32 %v181, %v187
      %v197 = vld [vmem:[%s2] sm:$0x1]
      %v199 = vlaneseq
      %v200 = vshrl.u32 %v199, 7
      %v201 = vsub.s32 0, %v200
      %v202 = vrot.slane %v197, %v201
      %v204 = vadd.f32 %v189, %v202
      %v205 = vadd.f32 %v190, %v202
      %v206 = vadd.f32 %v191, %v202
      %v207 = vadd.f32 %v192, %v202
      %v208 = vadd.f32 %v193, %v202
      %v209 = vadd.f32 %v194, %v202
      %v210 = vadd.f32 %v195, %v202
      %v211 = vadd.f32 %v196, %v202
      %vm212 = vcmp.ge.f32.partialorder %v204, 0.0
      %vm213 = vcmp.ge.f32.partialorder %v205, 0.0
      %vm214 = vcmp.ge.f32.partialorder %v206, 0.0
      %vm215 = vcmp.ge.f32.partialorder %v207, 0.0
      %vm216 = vcmp.ge.f32.partialorder %v208, 0.0
      %vm217 = vcmp.ge.f32.partialorder %v209, 0.0
      %vm218 = vcmp.ge.f32.partialorder %v210, 0.0
      %vm219 = vcmp.ge.f32.partialorder %v211, 0.0
      %v220 = vmul.f32 %v204, 0.2
      %v221 = vmul.f32 %v205, 0.2
      %v222 = vmul.f32 %v206, 0.2
      %v223 = vmul.f32 %v207, 0.2
      %v224 = vmul.f32 %v208, 0.2
      %v225 = vmul.f32 %v209, 0.2
      %v226 = vmul.f32 %v210, 0.2
      %v227 = vmul.f32 %v211, 0.2
      %v228 = vsel %vm212, %v204, %v220
      %v229 = vsel %vm213, %v205, %v221
      %v230 = vsel %vm214, %v206, %v222
      %v231 = vsel %vm215, %v207, %v223
      %v232 = vsel %vm216, %v208, %v224
      %v233 = vsel %vm217, %v209, %v225
      %v234 = vsel %vm218, %v210, %v226
      %v235 = vsel %vm219, %v211, %v227
      %vm236 = vcmask 64512
      %237 = vst.msk [vmem:[%s172] sm:$0xff] %vm236, %v228
      %238 = vst.msk [vmem:[%s172 + $0x8] sm:$0xff] %vm236, %v229
      %239 = vst.msk [vmem:[%s172 + $0x10] sm:$0xff] %vm236, %v230
      %240 = vst.msk [vmem:[%s172 + $0x18] sm:$0xff] %vm236, %v231
      %241 = vst.msk [vmem:[%s172 + $0x20] sm:$0xff] %vm236, %v232
      %242 = vst.msk [vmem:[%s172 + $0x28] sm:$0xff] %vm236, %v233
      %243 = vst.msk [vmem:[%s172 + $0x30] sm:$0xff] %vm236, %v234
      %244 = vst.msk [vmem:[%s172 + $0x38] sm:$0xff] %vm236, %v235
      %s245 = smul.u32 8, %s14
      %p246 = scmp.lt.s32.totalorder %s245, 15
      %s247 = scalar_select %p246, %s245, 15
      %s248 = smul.addr %s247, 8
      %s249 = scalar_lea.vmem %s3, %s248
      // Predicated region
      $region33: #{down_forward.5} parent=31 // pred_check
        %p250 = pneg %p100
      $region34: #{down_forward.5} parent=31 // pred_check_branch
        %252 = sbr.rel (%p250) target = $region36
      $region35: #{down_forward.5} parent=31 // pred_region
        %s253 = smul.u32 8, %s14
      $region36: #{down_forward.5} parent=31 // pred_fallthru
        _
    $region32: #{down_forward.5} parent=5 // pred_fallthru
      _
    %p254 = scmp.le.s32.totalorder 2, %s9
    // Predicated region
    $region37: #{down_forward.5} parent=5 // pred_check
      %p255 = pneg %p254
    $region38: #{down_forward.5} parent=5 // pred_check_branch
      %257 = sbr.rel (%p255) target = $region40
    $region39: #{down_forward.5} parent=5 // pred_region
      %s258 = ssub.s32 %s9, 2
      // Predicated region
      $region41: #{down_forward.5} parent=39 // pred_check
        %p259 = pneg %p106
      $region42: #{down_forward.5} parent=39 // pred_check_branch
        %261 = sbr.rel (%p259) target = $region44
      $region43: #{down_forward.5} parent=39 // pred_region
        %s262 = smul.u32 8, %s15
        %p263 = scmp.lt.s32.totalorder %s262, 15
        %s264 = scalar_select %p263, %s262, 15
        %s265 = smul.addr %s264, 8
        %s266 = scalar_lea.vmem %s3, %s265
      $region44: #{down_forward.5} parent=39 // pred_fallthru
        _
    $region40: #{down_forward.5} parent=5 // pred_fallthru
      _
  $region6: #{down_forward.5} parent=0 // loop_footer
    %s13 = sadd.s32 1, %s9
  $region7: #{down_forward.5} parent=0 // loop_footer_branch
    %8 = sbr.rel target = $region3
  $region8: #{down_forward.5} parent=0 // loop_exit
    _

// kernel: down_forward.3
$region0: #{down_forward.3}
  #allocation0 [shape = 'u32[]', space=smem, size = 0x4, offset = 0x4, fixed_abs, tag = 'smem constant byte address 0x4 - core index']
  #allocation1 [shape = 'u32[144,128]{1,0:T(1,128)}', space=vmem, size = 0x12000, scoped, tag = 'internal scratch']
  %s0 = inlined_call_operand.vmem [shape: f32[2,9,9,128], index: 0, kind: input, shape index: {}]
  %s1 = inlined_call_operand.vmem [shape: f32[2,9,9,128], index: 1, kind: input, shape index: {}]
  %s2 = inlined_call_operand.vmem [shape: f32[2,9,9,128], index: 2, kind: input, shape index: {}]
  %s3 = inlined_call_operand.vmem [shape: f32[2,9,9,128], index: 3, kind: input, shape index: {}]
  %s4 = inlined_call_operand.vmem [shape: f32[9,128,128], index: 4, kind: input, shape index: {}]
  %s5 = inlined_call_operand.vmem [shape: f32[128,128], index: 5, kind: output, shape index: {0}]
  %s6 = inlined_call_operand.vmem [shape: f32[2,1,128], index: 6, kind: output, shape index: {1}]
  %s7 = inlined_call_operand.vmem [shape: f32[2,1,128], index: 7, kind: output, shape index: {2}]
  %8 = xla_tuple %s5, %s6, %s7
  %s9 = sld [smem:[#allocation0]]
  $region69: #{down_forward.3} parent=0
    _
  %s11 = ssub.s32 1, %s9
  %s12 = scalar_select 0, %s11, %s9
  loop: start=0, step=1, limit=4
  $region2: #{down_forward.3} parent=0 // loop_pre_header
    _
  $region3: #{down_forward.3} parent=0 // loop_header
    %s14 = sphi 0, %s18
    %p15 = scmp.ge.s32.totalorder %s14, 4
    %s21 = sphi 0, %s33
    %s22 = sphi 0, %s29
    %s23 = sphi 0, %s21
    %s24 = sphi 0, %s22
    %s25 = sphi 0, %s23
    %s26 = sphi 0, %s24
    %s36 = sphi 0, %s38
    %s39 = sphi 0, %s36
    %s40 = sphi 0, %s39
    %s56 = sphi 0, %s40
    %s62 = sphi 0, %s64
    %s65 = sphi 0, %s62
    %s66 = sphi 0, %s65
    %s82 = sphi 0, %s66
    %s88 = sphi 0, %s90
    %s91 = sphi 0, %s88
    %s92 = sphi 0, %s91
    %s108 = sphi 0, %s92
    %s114 = sphi 0, %s116
    %s117 = sphi 0, %s114
    %s118 = sphi 0, %s117
    %s134 = sphi 0, %s118
    %s138 = sphi 0, %s138
    %s140 = sphi 0, %s138
    %s141 = sphi 0, %s140
    %s155 = sphi 0, %s141
    %s163 = sphi 0, %s165
    %s166 = sphi 0, %s163
    %s167 = sphi 0, %s166
    %s183 = sphi 0, %s167
    %s191 = sphi 0, %s193
    %s194 = sphi 0, %s191
    %s195 = sphi 0, %s194
    %s211 = sphi 0, %s195
    %s219 = sphi 0, %s221
    %s222 = sphi 0, %s219
    %s223 = sphi 0, %s222
    %s239 = sphi 0, %s223
  $region4: #{down_forward.3} parent=0 // loop_header_branch
    %17 = sbr.rel (%p15) target = $region8
  $region5: #{down_forward.3} parent=0 // loop_body
    %s19 = ssub.s32 %s14, 1
    %s20 = ssub.s32 %s14, 2
    %s27 = sadd.s32 1, %s22
    %p28 = scmp.ge.s32.totalorder %s27, 1
    %s29 = scalar_select %p28, 0, %s27
    %s30 = sadd.s32 1, %s21
    %s31 = scalar_select %p28, %s30, %s21
    %p32 = scmp.ge.s32.totalorder %s31, 2
    %s33 = scalar_select %p32, 0, %s31
    %s34 = ssub.s32 %s21, %s33
    %p35 = scmp.eq.s32.totalorder %s34, 0
    %s37 = sadd.s32 %s36, 1
    %s38 = scalar_select %p35, %s36, %s37
    %p41 = pneg %p35
    %p42 = scmp.eq.s32.totalorder %s14, 1
    %p43 = por %p41, %p42
    %p44 = scmp.ne.s32.totalorder %s36, %s39
    %p45 = scmp.eq.s32.totalorder %s14, 0
    %p46 = por %p44, %p45
    %p47 = scmp.ne.s32.totalorder %s36, %s39
    %p48 = scmp.eq.s32.totalorder %s19, 1
    %p49 = por %p47, %p48
    %p50 = scmp.ne.s32.totalorder %s39, %s40
    %p51 = scmp.eq.s32.totalorder %s19, 0
    %p52 = por %p50, %p51
    %p53 = scmp.ne.s32.totalorder %s39, %s40
    %p54 = scmp.eq.s32.totalorder %s20, 1
    %p55 = por %p53, %p54
    %p57 = scmp.ne.s32.totalorder %s40, %s56
    %p58 = scmp.eq.s32.totalorder %s20, 0
    %p59 = por %p57, %p58
    %s60 = ssub.s32 %s21, %s33
    %p61 = scmp.eq.s32.totalorder %s60, 0
    %s63 = sadd.s32 %s62, 1
    %s64 = scalar_select %p61, %s62, %s63
    %p67 = pneg %p61
    %p68 = scmp.eq.s32.totalorder %s14, 1
    %p69 = por %p67, %p68
    %p70 = scmp.ne.s32.totalorder %s62, %s65
    %p71 = scmp.eq.s32.totalorder %s14, 0
    %p72 = por %p70, %p71
    %p73 = scmp.ne.s32.totalorder %s62, %s65
    %p74 = scmp.eq.s32.totalorder %s19, 1
    %p75 = por %p73, %p74
    %p76 = scmp.ne.s32.totalorder %s65, %s66
    %p77 = scmp.eq.s32.totalorder %s19, 0
    %p78 = por %p76, %p77
    %p79 = scmp.ne.s32.totalorder %s65, %s66
    %p80 = scmp.eq.s32.totalorder %s20, 1
    %p81 = por %p79, %p80
    %p83 = scmp.ne.s32.totalorder %s66, %s82
    %p84 = scmp.eq.s32.totalorder %s20, 0
    %p85 = por %p83, %p84
    %s86 = ssub.s32 %s21, %s33
    %p87 = scmp.eq.s32.totalorder %s86, 0
    %s89 = sadd.s32 %s88, 1
    %s90 = scalar_select %p87, %s88, %s89
    %p93 = pneg %p87
    %p94 = scmp.eq.s32.totalorder %s14, 1
    %p95 = por %p93, %p94
    %p96 = scmp.ne.s32.totalorder %s88, %s91
    %p97 = scmp.eq.s32.totalorder %s14, 0
    %p98 = por %p96, %p97
    %p99 = scmp.ne.s32.totalorder %s88, %s91
    %p100 = scmp.eq.s32.totalorder %s19, 1
    %p101 = por %p99, %p100
    %p102 = scmp.ne.s32.totalorder %s91, %s92
    %p103 = scmp.eq.s32.totalorder %s19, 0
    %p104 = por %p102, %p103
    %p105 = scmp.ne.s32.totalorder %s91, %s92
    %p106 = scmp.eq.s32.totalorder %s20, 1
    %p107 = por %p105, %p106
    %p109 = scmp.ne.s32.totalorder %s92, %s108
    %p110 = scmp.eq.s32.totalorder %s20, 0
    %p111 = por %p109, %p110
    %s112 = ssub.s32 %s21, %s33
    %p113 = scmp.eq.s32.totalorder %s112, 0
    %s115 = sadd.s32 %s114, 1
    %s116 = scalar_select %p113, %s114, %s115
    %p119 = pneg %p113
    %p120 = scmp.eq.s32.totalorder %s14, 1
    %p121 = por %p119, %p120
    %p122 = scmp.ne.s32.totalorder %s114, %s117
    %p123 = scmp.eq.s32.totalorder %s14, 0
    %p124 = por %p122, %p123
    %p125 = scmp.ne.s32.totalorder %s114, %s117
    %p126 = scmp.eq.s32.totalorder %s19, 1
    %p127 = por %p125, %p126
    %p128 = scmp.ne.s32.totalorder %s117, %s118
    %p129 = scmp.eq.s32.totalorder %s19, 0
    %p130 = por %p128, %p129
    %p131 = scmp.ne.s32.totalorder %s117, %s118
    %p132 = scmp.eq.s32.totalorder %s20, 1
    %p133 = por %p131, %p132
    %p135 = scmp.ne.s32.totalorder %s118, %s134
    %p136 = scmp.eq.s32.totalorder %s20, 0
    %p137 = por %p135, %p136
    %s139 = sadd.s32 %s138, 1
    %p142 = scmp.eq.s32.totalorder %s14, 1
    %p143 = scmp.ne.s32.totalorder %s138, %s140
    %p144 = scmp.eq.s32.totalorder %s14, 0
    %p145 = por %p143, %p144
    %p146 = scmp.ne.s32.totalorder %s138, %s140
    %p147 = scmp.eq.s32.totalorder %s19, 1
    %p148 = por %p146, %p147
    %p149 = scmp.ne.s32.totalorder %s140, %s141
    %p150 = scmp.eq.s32.totalorder %s19, 0
    %p151 = por %p149, %p150
    %p152 = scmp.ne.s32.totalorder %s140, %s141
    %p153 = scmp.eq.s32.totalorder %s20, 1
    %p154 = por %p152, %p153
    %p156 = scmp.ne.s32.totalorder %s141, %s155
    %p157 = scmp.eq.s32.totalorder %s20, 0
    %p158 = por %p156, %p157
    %s159 = sadd.s32 %s21, %s22
    %s160 = sadd.s32 %s33, %s29
    %s161 = ssub.s32 %s159, %s160
    %p162 = scmp.eq.s32.totalorder %s161, 0
    %s164 = sadd.s32 %s163, 1
    %s165 = scalar_select %p162, %s163, %s164
    %p168 = pneg %p162
    %p169 = scmp.eq.s32.totalorder %s14, 1
    %p170 = por %p168, %p169
    %p171 = scmp.ne.s32.totalorder %s163, %s166
    %p172 = scmp.eq.s32.totalorder %s14, 0
    %p173 = por %p171, %p172
    %p174 = scmp.ne.s32.totalorder %s163, %s166
    %p175 = scmp.eq.s32.totalorder %s19, 1
    %p176 = por %p174, %p175
    %p177 = scmp.ne.s32.totalorder %s166, %s167
    %p178 = scmp.eq.s32.totalorder %s19, 0
    %p179 = por %p177, %p178
    %p180 = scmp.ne.s32.totalorder %s166, %s167
    %p181 = scmp.eq.s32.totalorder %s20, 1
    %p182 = por %p180, %p181
    %p184 = scmp.ne.s32.totalorder %s167, %s183
    %p185 = scmp.eq.s32.totalorder %s20, 0
    %p186 = por %p184, %p185
    %s187 = sadd.s32 %s21, %s22
    %s188 = sadd.s32 %s33, %s29
    %s189 = ssub.s32 %s187, %s188
    %p190 = scmp.eq.s32.totalorder %s189, 0
    %s192 = sadd.s32 %s191, 1
    %s193 = scalar_select %p190, %s191, %s192
    %p196 = pneg %p190
    %p197 = scmp.eq.s32.totalorder %s14, 1
    %p198 = por %p196, %p197
    %p199 = scmp.ne.s32.totalorder %s191, %s194
    %p200 = scmp.eq.s32.totalorder %s14, 0
    %p201 = por %p199, %p200
    %p202 = scmp.ne.s32.totalorder %s191, %s194
    %p203 = scmp.eq.s32.totalorder %s19, 1
    %p204 = por %p202, %p203
    %p205 = scmp.ne.s32.totalorder %s194, %s195
    %p206 = scmp.eq.s32.totalorder %s19, 0
    %p207 = por %p205, %p206
    %p208 = scmp.ne.s32.totalorder %s194, %s195
    %p209 = scmp.eq.s32.totalorder %s20, 1
    %p210 = por %p208, %p209
    %p212 = scmp.ne.s32.totalorder %s195, %s211
    %p213 = scmp.eq.s32.totalorder %s20, 0
    %p214 = por %p212, %p213
    %s215 = sadd.s32 %s21, %s22
    %s216 = sadd.s32 %s33, %s29
    %s217 = ssub.s32 %s215, %s216
    %p218 = scmp.eq.s32.totalorder %s217, 0
    %s220 = sadd.s32 %s219, 1
    %s221 = scalar_select %p218, %s219, %s220
    %p224 = pneg %p218
    %p225 = scmp.eq.s32.totalorder %s14, 1
    %p226 = por %p224, %p225
    %p227 = scmp.ne.s32.totalorder %s219, %s222
    %p228 = scmp.eq.s32.totalorder %s14, 0
    %p229 = por %p227, %p228
    %p230 = scmp.ne.s32.totalorder %s219, %s222
    %p231 = scmp.eq.s32.totalorder %s19, 1
    %p232 = por %p230, %p231
    %p233 = scmp.ne.s32.totalorder %s222, %s223
    %p234 = scmp.eq.s32.totalorder %s19, 0
    %p235 = por %p233, %p234
    %p236 = scmp.ne.s32.totalorder %s222, %s223
    %p237 = scmp.eq.s32.totalorder %s20, 1
    %p238 = por %p236, %p237
    %p240 = scmp.ne.s32.totalorder %s223, %s239
    %p241 = scmp.eq.s32.totalorder %s20, 0
    %p242 = por %p240, %p241
    %p243 = scmp.le.s32.totalorder 1, %s14
    %p244 = scmp.lt.s32.totalorder %s14, 3
    %p245 = pnand %p243, %p244
    %p246 = pneg %p245
    // Predicated region
    $region9: #{down_forward.3} parent=5 // pred_check
      _
    $region10: #{down_forward.3} parent=5 // pred_check_branch
      %248 = sbr.rel (%p245) target = $region12
    $region11: #{down_forward.3} parent=5 // pred_region
      %s249 = ssub.s32 %s14, 1
      // Predicated region
      $region13: #{down_forward.3} parent=11 // pred_check
        %p250 = pneg %p151
      $region14: #{down_forward.3} parent=11 // pred_check_branch
        %252 = sbr.rel (%p250) target = $region16
      $region15: #{down_forward.3} parent=11 // pred_region
        _
      $region16: #{down_forward.3} parent=11 // pred_fallthru
        _
    $region12: #{down_forward.3} parent=5 // pred_fallthru
      _
    %p253 = scmp.lt.s32.totalorder %s14, 2
    // Predicated region
    $region17: #{down_forward.3} parent=5 // pred_check
      %p254 = pneg %p253
    $region18: #{down_forward.3} parent=5 // pred_check_branch
      %256 = sbr.rel (%p254) target = $region20
    $region19: #{down_forward.3} parent=5 // pred_region
      // Predicated region
      $region21: #{down_forward.3} parent=19 // pred_check
        %p257 = pneg %p46
      $region22: #{down_forward.3} parent=19 // pred_check_branch
        %259 = sbr.rel (%p257) target = $region24
      $region23: #{down_forward.3} parent=19 // pred_region
        %p260 = scmp.lt.s32.totalorder %s21, 1
        %s261 = scalar_select %p260, %s21, 1
        %s262 = smul.addr %s261, 18
        %s263 = smul.addr %s262, 8
        %s264 = scalar_lea.vmem %s0, %s263
      $region24: #{down_forward.3} parent=19 // pred_fallthru
        _
      // Predicated region
      $region25: #{down_forward.3} parent=19 // pred_check
        %p265 = pneg %p72
      $region26: #{down_forward.3} parent=19 // pred_check_branch
        %267 = sbr.rel (%p265) target = $region28
      $region27: #{down_forward.3} parent=19 // pred_region
        %p268 = scmp.lt.s32.totalorder %s21, 1
        %s269 = scalar_select %p268, %s21, 1
        %s270 = smul.addr %s269, 18
        %s271 = smul.addr %s270, 8
        %s272 = scalar_lea.vmem %s1, %s271
      $region28: #{down_forward.3} parent=19 // pred_fallthru
        _
      // Predicated region
      $region29: #{down_forward.3} parent=19 // pred_check
        %p273 = pneg %p98
      $region30: #{down_forward.3} parent=19 // pred_check_branch
        %275 = sbr.rel (%p273) target = $region32
      $region31: #{down_forward.3} parent=19 // pred_region
        %p276 = scmp.lt.s32.totalorder %s21, 1
        %s277 = scalar_select %p276, %s21, 1
        %s278 = smul.addr %s277, 18
        %s279 = smul.addr %s278, 8
        %s280 = scalar_lea.vmem %s2, %s279
      $region32: #{down_forward.3} parent=19 // pred_fallthru
        _
      // Predicated region
      $region33: #{down_forward.3} parent=19 // pred_check
        %p281 = pneg %p124
      $region34: #{down_forward.3} parent=19 // pred_check_branch
        %283 = sbr.rel (%p281) target = $region36
      $region35: #{down_forward.3} parent=19 // pred_region
        %p284 = scmp.lt.s32.totalorder %s21, 1
        %s285 = scalar_select %p284, %s21, 1
        %s286 = smul.addr %s285, 18
        %s287 = smul.addr %s286, 8
        %s288 = scalar_lea.vmem %s3, %s287
      $region36: #{down_forward.3} parent=19 // pred_fallthru
        _
    $region20: #{down_forward.3} parent=5 // pred_fallthru
      _
    %p289 = scmp.le.s32.totalorder 1, %s14
    %p290 = scmp.lt.s32.totalorder %s14, 3
    %p291 = pnand %p289, %p290
    %p292 = pneg %p291
    // Predicated region
    $region37: #{down_forward.3} parent=5 // pred_check
      _
    $region38: #{down_forward.3} parent=5 // pred_check_branch
      %294 = sbr.rel (%p291) target = $region40
    $region39: #{down_forward.3} parent=5 // pred_region
      %s295 = ssub.s32 %s14, 1
      %p296 = scmp.lt.s32.totalorder %s23, 1
      %s297 = scalar_select %p296, %s23, 1
      %s298 = smul.addr %s297, 18
      %s299 = smul.addr %s298, 8
      %s300 = scalar_lea.vmem %s0, %s299
      %p301 = pneg %p52
      %p302 = pneg %p49
      %p303 = scmp.lt.s32.totalorder %s23, 1
      %s304 = scalar_select %p303, %s23, 1
      %s305 = smul.addr %s304, 18
      %s306 = smul.addr %s305, 8
      %s307 = scalar_lea.vmem %s1, %s306
      %p308 = pneg %p78
      %p309 = pneg %p75
      %p310 = scmp.lt.s32.totalorder %s23, 1
      %s311 = scalar_select %p310, %s23, 1
      %s312 = smul.addr %s311, 18
      %s313 = smul.addr %s312, 8
      %s314 = scalar_lea.vmem %s2, %s313
      %p315 = pneg %p104
      %p316 = pneg %p101
      %p317 = scmp.lt.s32.totalorder %s23, 1
      %s318 = scalar_select %p317, %s23, 1
      %s319 = smul.addr %s318, 18
      %s320 = smul.addr %s319, 8
      %s321 = scalar_lea.vmem %s3, %s320
      %p322 = pneg %p130
      %p323 = pneg %p127
      %p324 = pneg %p151
      %p325 = pneg %p148
      %p326 = pneg %p179
      %p327 = pneg %p176
      %s328 = sadd.s32 %s23, %s24
      %s329 = smul.u32 8, %s328
      %p330 = scmp.lt.s32.totalorder %s329, 15
      %s331 = scalar_select %p330, %s329, 15
      %s332 = smul.addr %s331, 8
      %s333 = scalar_lea.vmem %s5, %s332
      %p334 = pneg %p207
      %p335 = pneg %p204
      %s336 = sadd.s32 %s23, %s24
      %p337 = scmp.lt.s32.totalorder %s336, 1
      %s338 = scalar_select %p337, %s336, 1
      %s339 = scalar_lea.vmem %s6, %s338
      %p340 = pneg %p235
      %p341 = pneg %p232
      %s342 = sadd.s32 %s23, %s24
      %p343 = scmp.lt.s32.totalorder %s342, 1
      %s344 = scalar_select %p343, %s342, 1
      %s345 = scalar_lea.vmem %s7, %s344
      %p346 = scmp.lt.s32.totalorder %s23, 1
      %s347 = scalar_select %p346, %s23, 1
      %s348 = smul.addr %s347, 18
      %s349 = smul.addr %s348, 8
      %s350 = scalar_lea.vmem %s0, %s349
      %p351 = scmp.lt.s32.totalorder %s23, 1
      %s352 = scalar_select %p351, %s23, 1
      %s353 = smul.addr %s352, 18
      %s354 = smul.addr %s353, 8
      %s355 = scalar_lea.vmem %s1, %s354
      %p356 = scmp.lt.s32.totalorder %s23, 1
      %s357 = scalar_select %p356, %s23, 1
      %s358 = smul.addr %s357, 18
      %s359 = smul.addr %s358, 8
      %s360 = scalar_lea.vmem %s2, %s359
      %p361 = scmp.lt.s32.totalorder %s23, 1
      %s362 = scalar_select %p361, %s23, 1
      %s363 = smul.addr %s362, 18
      %s364 = smul.addr %s363, 8
      %s365 = scalar_lea.vmem %s3, %s364
      %s366 = sadd.s32 %s23, %s24
      %s367 = smul.u32 8, %s366
      %p368 = scmp.lt.s32.totalorder %s367, 15
      %s369 = scalar_select %p368, %s367, 15
      %s370 = smul.addr %s369, 8
      %s371 = scalar_lea.vmem %s5, %s370
      %s372 = sadd.s32 %s23, %s24
      %s373 = smul.u32 8, %s372
      %s374 = sadd.s32 %s23, %s24
      %p375 = scmp.lt.s32.totalorder %s374, 1
      %s376 = scalar_select %p375, %s374, 1
      %s377 = scalar_lea.vmem %s6, %s376
      %s378 = sadd.s32 %s23, %s24
      %s379 = sadd.s32 %s23, %s24
      %p380 = scmp.lt.s32.totalorder %s379, 1
      %s381 = scalar_select %p380, %s379, 1
      %s382 = scalar_lea.vmem %s7, %s381
      %s383 = sadd.s32 %s23, %s24
      %s384 = smul.u32 %s24, 8
      %s385 = smul.u32 %s384, 16
      %s386 = scalar_lea.vmem %s350, %s385
      %v387 = vld [vmem:[%s386] sm:$0xff]
      %v388 = vld [vmem:[%s386 + $0x10] sm:$0xff]
      %v389 = vld [vmem:[%s386 + $0x20] sm:$0xff]
      %v390 = vld [vmem:[%s386 + $0x30] sm:$0xff]
      %v391 = vld [vmem:[%s386 + $0x40] sm:$0xff]
      %v392 = vld [vmem:[%s386 + $0x50] sm:$0xff]
      %v393 = vld [vmem:[%s386 + $0x60] sm:$0xff]
      %v394 = vld [vmem:[%s386 + $0x70] sm:$0xff]
      %v395 = vld [vmem:[%s4] sm:$0xff]
      %v396 = vld [vmem:[%s4 + $0x8] sm:$0xff]
      %v397 = vld [vmem:[%s4 + $0x10] sm:$0xff]
      %v398 = vld [vmem:[%s4 + $0x18] sm:$0xff]
      %v399 = vld [vmem:[%s4 + $0x20] sm:$0xff]
      %v400 = vld [vmem:[%s4 + $0x28] sm:$0xff]
      %v401 = vld [vmem:[%s4 + $0x30] sm:$0xff]
      %v402 = vld [vmem:[%s4 + $0x38] sm:$0xff]
      %v403 = vld [vmem:[%s4 + $0x40] sm:$0xff]
      %v404 = vld [vmem:[%s4 + $0x48] sm:$0xff]
      %v405 = vld [vmem:[%s4 + $0x50] sm:$0xff]
      %v406 = vld [vmem:[%s4 + $0x58] sm:$0xff]
      %v407 = vld [vmem:[%s4 + $0x60] sm:$0xff]
      %v408 = vld [vmem:[%s4 + $0x68] sm:$0xff]
      %v409 = vld [vmem:[%s4 + $0x70] sm:$0xff]
      %v410 = vld [vmem:[%s4 + $0x78] sm:$0xff]
      %s411 = scalar_lea.vmem %s355, %s385
      %v412 = vld [vmem:[%s411] sm:$0xff]
      %v413 = vld [vmem:[%s411 + $0x10] sm:$0xff]
      %v414 = vld [vmem:[%s411 + $0x20] sm:$0xff]
      %v415 = vld [vmem:[%s411 + $0x30] sm:$0xff]
      %v416 = vld [vmem:[%s411 + $0x40] sm:$0xff]
      %v417 = vld [vmem:[%s411 + $0x50] sm:$0xff]
      %v418 = vld [vmem:[%s411 + $0x60] sm:$0xff]
      %v419 = vld [vmem:[%s411 + $0x70] sm:$0xff]
      %s420 = scalar_lea.vmem %s4, 128
      %v421 = vld [vmem:[%s420] sm:$0xff]
      %v422 = vld [vmem:[%s420 + $0x8] sm:$0xff]
      %v423 = vld [vmem:[%s420 + $0x10] sm:$0xff]
      %v424 = vld [vmem:[%s420 + $0x18] sm:$0xff]
      %v425 = vld [vmem:[%s420 + $0x20] sm:$0xff]
      %v426 = vld [vmem:[%s420 + $0x28] sm:$0xff]
      %v427 = vld [vmem:[%s420 + $0x30] sm:$0xff]
      %v428 = vld [vmem:[%s420 + $0x38] sm:$0xff]
      %v429 = vld [vmem:[%s420 + $0x40] sm:$0xff]
      %v430 = vld [vmem:[%s420 + $0x48] sm:$0xff]
      %v431 = vld [vmem:[%s420 + $0x50] sm:$0xff]
      %v432 = vld [vmem:[%s420 + $0x58] sm:$0xff]
      %v433 = vld [vmem:[%s420 + $0x60] sm:$0xff]
      %v434 = vld [vmem:[%s420 + $0x68] sm:$0xff]
      %v435 = vld [vmem:[%s420 + $0x70] sm:$0xff]
      %v436 = vld [vmem:[%s420 + $0x78] sm:$0xff]
      %437 = vmatprep.subr.mxu0 0.0
      %438 = vmatpush1.msra.mxu0 %v436
      %439 = vmatprep.subr.mxu0 0.0
      %440 = vmatpush1.msra.mxu0 %v435
      %441 = vmatprep.subr.mxu0 0.0
      %442 = vmatpush1.msra.mxu0 %v434
      %443 = vmatprep.subr.mxu0 0.0
      %444 = vmatpush1.msra.mxu0 %v433
      %445 = vmatprep.subr.mxu0 0.0
      %446 = vmatpush1.msra.mxu0 %v432
      %447 = vmatprep.subr.mxu0 0.0
      %448 = vmatpush1.msra.mxu0 %v431
      %449 = vmatprep.subr.mxu0 0.0
      %450 = vmatpush1.msra.mxu0 %v430
      %451 = vmatprep.subr.mxu0 0.0
      %452 = vmatpush1.msra.mxu0 %v429
      %453 = vmatprep.subr.mxu0 0.0
      %454 = vmatpush1.msra.mxu0 %v428
      %455 = vmatprep.subr.mxu0 0.0
      %456 = vmatpush1.msra.mxu0 %v427
      %457 = vmatprep.subr.mxu0 0.0
      %458 = vmatpush1.msra.mxu0 %v426
      %459 = vmatprep.subr.mxu0 0.0
      %460 = vmatpush1.msra.mxu0 %v425
      %461 = vmatprep.subr.mxu0 0.0
      %462 = vmatpush1.msra.mxu0 %v424
      %463 = vmatprep.subr.mxu0 0.0
      %464 = vmatpush1.msra.mxu0 %v423
      %465 = vmatprep.subr.mxu0 0.0
      %466 = vmatpush1.msra.mxu0 %v422
      %467 = vmatprep.subr.mxu0 0.0
      %468 = vmatpush1.msra.mxu0 %v421
      %469 = vmatprep.subr.mxu0 0.0
      %470 = vmatpush2.msra.mxu0 0.0
      %471 = vmatprep.subr.mxu0 0.0
      %472 = vmatpush2.msra.mxu0 0.0
      %473 = vmatprep.subr.mxu0 0.0
      %474 = vmatpush2.msra.mxu0 0.0
      %475 = vmatprep.subr.mxu0 0.0
      %476 = vmatpush2.msra.mxu0 0.0
      %477 = vmatprep.subr.mxu0 0.0
      %478 = vmatpush2.msra.mxu0 0.0
      %479 = vmatprep.subr.mxu0 0.0
      %480 = vmatpush2.msra.mxu0 0.0
      %481 = vmatprep.subr.mxu0 0.0
      %482 = vmatpush2.msra.mxu0 0.0
      %483 = vmatprep.subr.mxu0 0.0
      %484 = vmatpush2.msra.mxu0 0.0
      %485 = vmatprep.subr.mxu0 0.0
      %486 = vmatpush2.msra.mxu0 0.0
      %487 = vmatprep.subr.mxu0 0.0
      %488 = vmatpush2.msra.mxu0 0.0
      %489 = vmatprep.subr.mxu0 0.0
      %490 = vmatpush2.msra.mxu0 0.0
      %491 = vmatprep.subr.mxu0 0.0
      %492 = vmatpush2.msra.mxu0 0.0
      %493 = vmatprep.subr.mxu0 0.0
      %494 = vmatpush2.msra.mxu0 0.0
      %495 = vmatprep.subr.mxu0 0.0
      %496 = vmatpush2.msra.mxu0 0.0
      %497 = vmatprep.subr.mxu0 0.0
      %498 = vmatpush2.msra.mxu0 0.0
      %499 = vmatprep.subr.mxu0 0.0
      %500 = vmatpush2.msra.mxu0 0.0
      %501 = vmatprep.mubr.f32.mxu0 0.0
      %502 = vmatmul.mubr.f32.gmra.mxu0 %v412
      %v503 = vpop.f32.mrf.mxu0
      %v504 = vadd.f32 0.0, %v503
      %v505 = vpop.f32.mrf.mxu0
      %506 = vmatprep.mubr.f32.mxu0 0.0
      %507 = vmatmul.mubr.f32.gmra.mxu0 %v413
      %v508 = vpop.f32.mrf.mxu0
      %v509 = vadd.f32 0.0, %v508
      %v510 = vpop.f32.mrf.mxu0
      %511 = vmatprep.mubr.f32.mxu0 0.0
      %512 = vmatmul.mubr.f32.gmra.mxu0 %v414
      %v513 = vpop.f32.mrf.mxu0
      %v514 = vadd.f32 0.0, %v513
      %v515 = vpop.f32.mrf.mxu0
      %516 = vmatprep.mubr.f32.mxu0 0.0
      %517 = vmatmul.mubr.f32.gmra.mxu0 %v415
      %v518 = vpop.f32.mrf.mxu0
      %v519 = vadd.f32 0.0, %v518
      %v520 = vpop.f32.mrf.mxu0
      %521 = vmatprep.mubr.f32.mxu0 0.0
      %522 = vmatmul.mubr.f32.gmra.mxu0 %v416
      %v523 = vpop.f32.mrf.mxu0
      %v524 = vadd.f32 0.0, %v523
      %v525 = vpop.f32.mrf.mxu0
      %526 = vmatprep.mubr.f32.mxu0 0.0
      %527 = vmatmul.mubr.f32.gmra.mxu0 %v417
      %v528 = vpop.f32.mrf.mxu0
      %v529 = vadd.f32 0.0, %v528
      %v530 = vpop.f32.mrf.mxu0
      %531 = vmatprep.mubr.f32.mxu0 0.0
      %532 = vmatmul.mubr.f32.gmra.mxu0 %v418
      %v533 = vpop.f32.mrf.mxu0
      %v534 = vadd.f32 0.0, %v533
      %v535 = vpop.f32.mrf.mxu0
      %536 = vmatprep.mubr.f32.mxu0 0.0
      %537 = vmatmul.mubr.f32.gmra.mxu0 %v419
      %v538 = vpop.f32.mrf.mxu0
      %v539 = vadd.f32 0.0, %v538
      %v540 = vpop.f32.mrf.mxu0
      %541 = vdwg.mxu0
      %542 = vmatprep.subr.mxu0 0.0
      %543 = vmatpush1.msra.mxu0 %v410
      %544 = vmatprep.subr.mxu0 0.0
      %545 = vmatpush1.msra.mxu0 %v409
      %546 = vmatprep.subr.mxu0 0.0
      %547 = vmatpush1.msra.mxu0 %v408
      %548 = vmatprep.subr.mxu0 0.0
      %549 = vmatpush1.msra.mxu0 %v407
      %550 = vmatprep.subr.mxu0 0.0
      %551 = vmatpush1.msra.mxu0 %v406
      %552 = vmatprep.subr.mxu0 0.0
      %553 = vmatpush1.msra.mxu0 %v405
      %554 = vmatprep.subr.mxu0 0.0
      %555 = vmatpush1.msra.mxu0 %v404
      %556 = vmatprep.subr.mxu0 0.0
      %557 = vmatpush1.msra.mxu0 %v403
      %558 = vmatprep.subr.mxu0 0.0
      %559 = vmatpush1.msra.mxu0 %v402
      %560 = vmatprep.subr.mxu0 0.0
      %561 = vmatpush1.msra.mxu0 %v401
      %562 = vmatprep.subr.mxu0 0.0
      %563 = vmatpush1.msra.mxu0 %v400
      %564 = vmatprep.subr.mxu0 0.0
      %565 = vmatpush1.msra.mxu0 %v399
      %566 = vmatprep.subr.mxu0 0.0
      %567 = vmatpush1.msra.mxu0 %v398
      %568 = vmatprep.subr.mxu0 0.0
      %569 = vmatpush1.msra.mxu0 %v397
      %570 = vmatprep.subr.mxu0 0.0
      %571 = vmatpush1.msra.mxu0 %v396
      %572 = vmatprep.subr.mxu0 0.0
      %573 = vmatpush1.msra.mxu0 %v395
      %574 = vmatprep.subr.mxu0 0.0
      %575 = vmatpush2.msra.mxu0 0.0
      %576 = vmatprep.subr.mxu0 0.0
      %577 = vmatpush2.msra.mxu0 0.0
      %578 = vmatprep.subr.mxu0 0.0
      %579 = vmatpush2.msra.mxu0 0.0
      %580 = vmatprep.subr.mxu0 0.0
      %581 = vmatpush2.msra.mxu0 0.0
      %582 = vmatprep.subr.mxu0 0.0
      %583 = vmatpush2.msra.mxu0 0.0
      %584 = vmatprep.subr.mxu0 0.0
      %585 = vmatpush2.msra.mxu0 0.0
      %586 = vmatprep.subr.mxu0 0.0
      %587 = vmatpush2.msra.mxu0 0.0
      %588 = vmatprep.subr.mxu0 0.0
      %589 = vmatpush2.msra.mxu0 0.0
      %590 = vmatprep.subr.mxu0 0.0
      %591 = vmatpush2.msra.mxu0 0.0
      %592 = vmatprep.subr.mxu0 0.0
      %593 = vmatpush2.msra.mxu0 0.0
      %594 = vmatprep.subr.mxu0 0.0
      %595 = vmatpush2.msra.mxu0 0.0
      %596 = vmatprep.subr.mxu0 0.0
      %597 = vmatpush2.msra.mxu0 0.0
      %598 = vmatprep.subr.mxu0 0.0
      %599 = vmatpush2.msra.mxu0 0.0
      %600 = vmatprep.subr.mxu0 0.0
      %601 = vmatpush2.msra.mxu0 0.0
      %602 = vmatprep.subr.mxu0 0.0
      %603 = vmatpush2.msra.mxu0 0.0
      %604 = vmatprep.subr.mxu0 0.0
      %605 = vmatpush2.msra.mxu0 0.0
      %606 = vmatprep.mubr.f32.mxu0 0.0
      %607 = vmatmul.mubr.f32.gmra.mxu0 %v387
      %v608 = vpop.f32.mrf.mxu0
      %v609 = vadd.f32 %v504, %v608
      %v610 = vpop.f32.mrf.mxu0
      %611 = vmatprep.mubr.f32.mxu0 0.0
      %612 = vmatmul.mubr.f32.gmra.mxu0 %v388
      %v613 = vpop.f32.mrf.mxu0
      %v614 = vadd.f32 %v509, %v613
      %v615 = vpop.f32.mrf.mxu0
      %616 = vmatprep.mubr.f32.mxu0 0.0
      %617 = vmatmul.mubr.f32.gmra.mxu0 %v389
      %v618 = vpop.f32.mrf.mxu0
      %v619 = vadd.f32 %v514, %v618
      %v620 = vpop.f32.mrf.mxu0
      %621 = vmatprep.mubr.f32.mxu0 0.0
      %622 = vmatmul.mubr.f32.gmra.mxu0 %v390
      %v623 = vpop.f32.mrf.mxu0
      %v624 = vadd.f32 %v519, %v623
      %v625 = vpop.f32.mrf.mxu0
      %626 = vmatprep.mubr.f32.mxu0 0.0
      %627 = vmatmul.mubr.f32.gmra.mxu0 %v391
      %v628 = vpop.f32.mrf.mxu0
      %v629 = vadd.f32 %v524, %v628
      %v630 = vpop.f32.mrf.mxu0
      %631 = vmatprep.mubr.f32.mxu0 0.0
      %632 = vmatmul.mubr.f32.gmra.mxu0 %v392
      %v633 = vpop.f32.mrf.mxu0
      %v634 = vadd.f32 %v529, %v633
      %v635 = vpop.f32.mrf.mxu0
      %636 = vmatprep.mubr.f32.mxu0 0.0
      %637 = vmatmul.mubr.f32.gmra.mxu0 %v393
      %v638 = vpop.f32.mrf.mxu0
      %v639 = vadd.f32 %v534, %v638
      %v640 = vpop.f32.mrf.mxu0
      %641 = vmatprep.mubr.f32.mxu0 0.0
      %642 = vmatmul.mubr.f32.gmra.mxu0 %v394
      %v643 = vpop.f32.mrf.mxu0
      %v644 = vadd.f32 %v539, %v643
      %v645 = vpop.f32.mrf.mxu0
      %646 = vdwg.mxu0
      %v647 = vld [vmem:[%s386 + $0x1] sm:$0xff]
      %v648 = vld [vmem:[%s386 + $0x11] sm:$0xff]
      %v649 = vld [vmem:[%s386 + $0x21] sm:$0xff]
      %v650 = vld [vmem:[%s386 + $0x31] sm:$0xff]
      %v651 = vld [vmem:[%s386 + $0x41] sm:$0xff]
      %v652 = vld [vmem:[%s386 + $0x51] sm:$0xff]
      %v653 = vld [vmem:[%s386 + $0x61] sm:$0xff]
      %v654 = vld [vmem:[%s386 + $0x71] sm:$0xff]
      %s655 = scalar_lea.vmem %s4, 256
      %v656 = vld [vmem:[%s655] sm:$0xff]
      %v657 = vld [vmem:[%s655 + $0x8] sm:$0xff]
      %v658 = vld [vmem:[%s655 + $0x10] sm:$0xff]
      %v659 = vld [vmem:[%s655 + $0x18] sm:$0xff]
      %v660 = vld [vmem:[%s655 + $0x20] sm:$0xff]
      %v661 = vld [vmem:[%s655 + $0x28] sm:$0xff]
      %v662 = vld [vmem:[%s655 + $0x30] sm:$0xff]
      %v663 = vld [vmem:[%s655 + $0x38] sm:$0xff]
      %v664 = vld [vmem:[%s655 + $0x40] sm:$0xff]
      %v665 = vld [vmem:[%s655 + $0x48] sm:$0xff]
      %v666 = vld [vmem:[%s655 + $0x50] sm:$0xff]
      %v667 = vld [vmem:[%s655 + $0x58] sm:$0xff]
      %v668 = vld [vmem:[%s655 + $0x60] sm:$0xff]
      %v669 = vld [vmem:[%s655 + $0x68] sm:$0xff]
      %v670 = vld [vmem:[%s655 + $0x70] sm:$0xff]
      %v671 = vld [vmem:[%s655 + $0x78] sm:$0xff]
      %672 = vmatprep.subr.mxu0 0.0
      %673 = vmatpush1.msra.mxu0 %v671
      %674 = vmatprep.subr.mxu0 0.0
      %675 = vmatpush1.msra.mxu0 %v670
      %676 = vmatprep.subr.mxu0 0.0
      %677 = vmatpush1.msra.mxu0 %v669
      %678 = vmatprep.subr.mxu0 0.0
      %679 = vmatpush1.msra.mxu0 %v668
      %680 = vmatprep.subr.mxu0 0.0
      %681 = vmatpush1.msra.mxu0 %v667
      %682 = vmatprep.subr.mxu0 0.0
      %683 = vmatpush1.msra.mxu0 %v666
      %684 = vmatprep.subr.mxu0 0.0
      %685 = vmatpush1.msra.mxu0 %v665
      %686 = vmatprep.subr.mxu0 0.0
      %687 = vmatpush1.msra.mxu0 %v664
      %688 = vmatprep.subr.mxu0 0.0
      %689 = vmatpush1.msra.mxu0 %v663
      %690 = vmatprep.subr.mxu0 0.0
      %691 = vmatpush1.msra.mxu0 %v662
      %692 = vmatprep.subr.mxu0 0.0
      %693 = vmatpush1.msra.mxu0 %v661
      %694 = vmatprep.subr.mxu0 0.0
      %695 = vmatpush1.msra.mxu0 %v660
      %696 = vmatprep.subr.mxu0 0.0
      %697 = vmatpush1.msra.mxu0 %v659
      %698 = vmatprep.subr.mxu0 0.0
      %699 = vmatpush1.msra.mxu0 %v658
      %700 = vmatprep.subr.mxu0 0.0
      %701 = vmatpush1.msra.mxu0 %v657
      %702 = vmatprep.subr.mxu0 0.0
      %703 = vmatpush1.msra.mxu0 %v656
      %704 = vmatprep.subr.mxu0 0.0
      %705 = vmatpush2.msra.mxu0 0.0
      %706 = vmatprep.subr.mxu0 0.0
      %707 = vmatpush2.msra.mxu0 0.0
      %708 = vmatprep.subr.mxu0 0.0
      %709 = vmatpush2.msra.mxu0 0.0
      %710 = vmatprep.subr.mxu0 0.0
      %711 = vmatpush2.msra.mxu0 0.0
      %712 = vmatprep.subr.mxu0 0.0
      %713 = vmatpush2.msra.mxu0 0.0
      %714 = vmatprep.subr.mxu0 0.0
      %715 = vmatpush2.msra.mxu0 0.0
      %716 = vmatprep.subr.mxu0 0.0
      %717 = vmatpush2.msra.mxu0 0.0
      %718 = vmatprep.subr.mxu0 0.0
      %719 = vmatpush2.msra.mxu0 0.0
      %720 = vmatprep.subr.mxu0 0.0
      %721 = vmatpush2.msra.mxu0 0.0
      %722 = vmatprep.subr.mxu0 0.0
      %723 = vmatpush2.msra.mxu0 0.0
      %724 = vmatprep.subr.mxu0 0.0
      %725 = vmatpush2.msra.mxu0 0.0
      %726 = vmatprep.subr.mxu0 0.0
      %727 = vmatpush2.msra.mxu0 0.0
      %728 = vmatprep.subr.mxu0 0.0
      %729 = vmatpush2.msra.mxu0 0.0
      %730 = vmatprep.subr.mxu0 0.0
      %731 = vmatpush2.msra.mxu0 0.0
      %732 = vmatprep.subr.mxu0 0.0
      %733 = vmatpush2.msra.mxu0 0.0
      %734 = vmatprep.subr.mxu0 0.0
      %735 = vmatpush2.msra.mxu0 0.0
      %736 = vmatprep.mubr.f32.mxu0 0.0
      %737 = vmatmul.mubr.f32.gmra.mxu0 %v647
      %v738 = vpop.f32.mrf.mxu0
      %v739 = vadd.f32 0.0, %v738
      %v740 = vpop.f32.mrf.mxu0
      %741 = vmatprep.mubr.f32.mxu0 0.0
      %742 = vmatmul.mubr.f32.gmra.mxu0 %v648
      %v743 = vpop.f32.mrf.mxu0
      %v744 = vadd.f32 0.0, %v743
      %v745 = vpop.f32.mrf.mxu0
      %746 = vmatprep.mubr.f32.mxu0 0.0
      %747 = vmatmul.mubr.f32.gmra.mxu0 %v649
      %v748 = vpop.f32.mrf.mxu0
      %v749 = vadd.f32 0.0, %v748
      %v750 = vpop.f32.mrf.mxu0
      %751 = vmatprep.mubr.f32.mxu0 0.0
      %752 = vmatmul.mubr.f32.gmra.mxu0 %v650
      %v753 = vpop.f32.mrf.mxu0
      %v754 = vadd.f32 0.0, %v753
      %v755 = vpop.f32.mrf.mxu0
      %756 = vmatprep.mubr.f32.mxu0 0.0
      %757 = vmatmul.mubr.f32.gmra.mxu0 %v651
      %v758 = vpop.f32.mrf.mxu0
      %v759 = vadd.f32 0.0, %v758
      %v760 = vpop.f32.mrf.mxu0
      %761 = vmatprep.mubr.f32.mxu0 0.0
      %762 = vmatmul.mubr.f32.gmra.mxu0 %v652
      %v763 = vpop.f32.mrf.mxu0
      %v764 = vadd.f32 0.0, %v763
      %v765 = vpop.f32.mrf.mxu0
      %766 = vmatprep.mubr.f32.mxu0 0.0
      %767 = vmatmul.mubr.f32.gmra.mxu0 %v653
      %v768 = vpop.f32.mrf.mxu0
      %v769 = vadd.f32 0.0, %v768
      %v770 = vpop.f32.mrf.mxu0
      %771 = vmatprep.mubr.f32.mxu0 0.0
      %772 = vmatmul.mubr.f32.gmra.mxu0 %v654
      %v773 = vpop.f32.mrf.mxu0
      %v774 = vadd.f32 0.0, %v773
      %v775 = vpop.f32.mrf.mxu0
      %776 = vdwg.mxu0
      %v777 = vadd.f32 %v609, %v739
      %v778 = vadd.f32 %v614, %v744
      %v779 = vadd.f32 %v619, %v749
      %v780 = vadd.f32 %v624, %v754
      %v781 = vadd.f32 %v629, %v759
      %v782 = vadd.f32 %v634, %v764
      %v783 = vadd.f32 %v639, %v769
      %v784 = vadd.f32 %v644, %v774
      %s785 = scalar_lea.vmem %s360, %s385
      %v786 = vld [vmem:[%s785] sm:$0xff]
      %v787 = vld [vmem:[%s785 + $0x10] sm:$0xff]
      %v788 = vld [vmem:[%s785 + $0x20] sm:$0xff]
      %v789 = vld [vmem:[%s785 + $0x30] sm:$0xff]
      %v790 = vld [vmem:[%s785 + $0x40] sm:$0xff]
      %v791 = vld [vmem:[%s785 + $0x50] sm:$0xff]
      %v792 = vld [vmem:[%s785 + $0x60] sm:$0xff]
      %v793 = vld [vmem:[%s785 + $0x70] sm:$0xff]
      %s794 = scalar_lea.vmem %s4, 384
      %v795 = vld [vmem:[%s794] sm:$0xff]
      %v796 = vld [vmem:[%s794 + $0x8] sm:$0xff]
      %v797 = vld [vmem:[%s794 + $0x10] sm:$0xff]
      %v798 = vld [vmem:[%s794 + $0x18] sm:$0xff]
      %v799 = vld [vmem:[%s794 + $0x20] sm:$0xff]
      %v800 = vld [vmem:[%s794 + $0x28] sm:$0xff]
      %v801 = vld [vmem:[%s794 + $0x30] sm:$0xff]
      %v802 = vld [vmem:[%s794 + $0x38] sm:$0xff]
      %v803 = vld [vmem:[%s794 + $0x40] sm:$0xff]
      %v804 = vld [vmem:[%s794 + $0x48] sm:$0xff]
      %v805 = vld [vmem:[%s794 + $0x50] sm:$0xff]
      %v806 = vld [vmem:[%s794 + $0x58] sm:$0xff]
      %v807 = vld [vmem:[%s794 + $0x60] sm:$0xff]
      %v808 = vld [vmem:[%s794 + $0x68] sm:$0xff]
      %v809 = vld [vmem:[%s794 + $0x70] sm:$0xff]
      %v810 = vld [vmem:[%s794 + $0x78] sm:$0xff]
      %811 = vmatprep.subr.mxu0 0.0
      %812 = vmatpush1.msra.mxu0 %v810
      %813 = vmatprep.subr.mxu0 0.0
      %814 = vmatpush1.msra.mxu0 %v809
      %815 = vmatprep.subr.mxu0 0.0
      %816 = vmatpush1.msra.mxu0 %v808
      %817 = vmatprep.subr.mxu0 0.0
      %818 = vmatpush1.msra.mxu0 %v807
      %819 = vmatprep.subr.mxu0 0.0
      %820 = vmatpush1.msra.mxu0 %v806
      %821 = vmatprep.subr.mxu0 0.0
      %822 = vmatpush1.msra.mxu0 %v805
      %823 = vmatprep.subr.mxu0 0.0
      %824 = vmatpush1.msra.mxu0 %v804
      %825 = vmatprep.subr.mxu0 0.0
      %826 = vmatpush1.msra.mxu0 %v803
      %827 = vmatprep.subr.mxu0 0.0
      %828 = vmatpush1.msra.mxu0 %v802
      %829 = vmatprep.subr.mxu0 0.0
      %830 = vmatpush1.msra.mxu0 %v801
      %831 = vmatprep.subr.mxu0 0.0
      %832 = vmatpush1.msra.mxu0 %v800
      %833 = vmatprep.subr.mxu0 0.0
      %834 = vmatpush1.msra.mxu0 %v799
      %835 = vmatprep.subr.mxu0 0.0
      %836 = vmatpush1.msra.mxu0 %v798
      %837 = vmatprep.subr.mxu0 0.0
      %838 = vmatpush1.msra.mxu0 %v797
      %839 = vmatprep.subr.mxu0 0.0
      %840 = vmatpush1.msra.mxu0 %v796
      %841 = vmatprep.subr.mxu0 0.0
      %842 = vmatpush1.msra.mxu0 %v795
      %843 = vmatprep.subr.mxu0 0.0
      %844 = vmatpush2.msra.mxu0 0.0
      %845 = vmatprep.subr.mxu0 0.0
      %846 = vmatpush2.msra.mxu0 0.0
      %847 = vmatprep.subr.mxu0 0.0
      %848 = vmatpush2.msra.mxu0 0.0
      %849 = vmatprep.subr.mxu0 0.0
      %850 = vmatpush2.msra.mxu0 0.0
      %851 = vmatprep.subr.mxu0 0.0
      %852 = vmatpush2.msra.mxu0 0.0
      %853 = vmatprep.subr.mxu0 0.0
      %854 = vmatpush2.msra.mxu0 0.0
      %855 = vmatprep.subr.mxu0 0.0
      %856 = vmatpush2.msra.mxu0 0.0
      %857 = vmatprep.subr.mxu0 0.0
      %858 = vmatpush2.msra.mxu0 0.0
      %859 = vmatprep.subr.mxu0 0.0
      %860 = vmatpush2.msra.mxu0 0.0
      %861 = vmatprep.subr.mxu0 0.0
      %862 = vmatpush2.msra.mxu0 0.0
      %863 = vmatprep.subr.mxu0 0.0
      %864 = vmatpush2.msra.mxu0 0.0
      %865 = vmatprep.subr.mxu0 0.0
      %866 = vmatpush2.msra.mxu0 0.0
      %867 = vmatprep.subr.mxu0 0.0
      %868 = vmatpush2.msra.mxu0 0.0
      %869 = vmatprep.subr.mxu0 0.0
      %870 = vmatpush2.msra.mxu0 0.0
      %871 = vmatprep.subr.mxu0 0.0
      %872 = vmatpush2.msra.mxu0 0.0
      %873 = vmatprep.subr.mxu0 0.0
      %874 = vmatpush2.msra.mxu0 0.0
      %875 = vmatprep.mubr.f32.mxu0 0.0
      %876 = vmatmul.mubr.f32.gmra.mxu0 %v786
      %v877 = vpop.f32.mrf.mxu0
      %v878 = vadd.f32 0.0, %v877
      %v879 = vpop.f32.mrf.mxu0
      %880 = vmatprep.mubr.f32.mxu0 0.0
      %881 = vmatmul.mubr.f32.gmra.mxu0 %v787
      %v882 = vpop.f32.mrf.mxu0
      %v883 = vadd.f32 0.0, %v882
      %v884 = vpop.f32.mrf.mxu0
      %885 = vmatprep.mubr.f32.mxu0 0.0
      %886 = vmatmul.mubr.f32.gmra.mxu0 %v788
      %v887 = vpop.f32.mrf.mxu0
      %v888 = vadd.f32 0.0, %v887
      %v889 = vpop.f32.mrf.mxu0
      %890 = vmatprep.mubr.f32.mxu0 0.0
      %891 = vmatmul.mubr.f32.gmra.mxu0 %v789
      %v892 = vpop.f32.mrf.mxu0
      %v893 = vadd.f32 0.0, %v892
      %v894 = vpop.f32.mrf.mxu0
      %895 = vmatprep.mubr.f32.mxu0 0.0
      %896 = vmatmul.mubr.f32.gmra.mxu0 %v790
      %v897 = vpop.f32.mrf.mxu0
      %v898 = vadd.f32 0.0, %v897
      %v899 = vpop.f32.mrf.mxu0
      %900 = vmatprep.mubr.f32.mxu0 0.0
      %901 = vmatmul.mubr.f32.gmra.mxu0 %v791
      %v902 = vpop.f32.mrf.mxu0
      %v903 = vadd.f32 0.0, %v902
      %v904 = vpop.f32.mrf.mxu0
      %905 = vmatprep.mubr.f32.mxu0 0.0
      %906 = vmatmul.mubr.f32.gmra.mxu0 %v792
      %v907 = vpop.f32.mrf.mxu0
      %v908 = vadd.f32 0.0, %v907
      %v909 = vpop.f32.mrf.mxu0
      %910 = vmatprep.mubr.f32.mxu0 0.0
      %911 = vmatmul.mubr.f32.gmra.mxu0 %v793
      %v912 = vpop.f32.mrf.mxu0
      %v913 = vadd.f32 0.0, %v912
      %v914 = vpop.f32.mrf.mxu0
      %915 = vdwg.mxu0
      %v916 = vadd.f32 %v777, %v878
      %v917 = vadd.f32 %v778, %v883
      %v918 = vadd.f32 %v779, %v888
      %v919 = vadd.f32 %v780, %v893
      %v920 = vadd.f32 %v781, %v898
      %v921 = vadd.f32 %v782, %v903
      %v922 = vadd.f32 %v783, %v908
      %v923 = vadd.f32 %v784, %v913
      %s924 = scalar_lea.vmem %s365, %s385
      %v925 = vld [vmem:[%s924] sm:$0xff]
      %v926 = vld [vmem:[%s924 + $0x10] sm:$0xff]
      %v927 = vld [vmem:[%s924 + $0x20] sm:$0xff]
      %v928 = vld [vmem:[%s924 + $0x30] sm:$0xff]
      %v929 = vld [vmem:[%s924 + $0x40] sm:$0xff]
      %v930 = vld [vmem:[%s924 + $0x50] sm:$0xff]
      %v931 = vld [vmem:[%s924 + $0x60] sm:$0xff]
      %v932 = vld [vmem:[%s924 + $0x70] sm:$0xff]
      %s933 = scalar_lea.vmem %s4, 512
      %v934 = vld [vmem:[%s933] sm:$0xff]
      %v935 = vld [vmem:[%s933 + $0x8] sm:$0xff]
      %v936 = vld [vmem:[%s933 + $0x10] sm:$0xff]
      %v937 = vld [vmem:[%s933 + $0x18] sm:$0xff]
      %v938 = vld [vmem:[%s933 + $0x20] sm:$0xff]
      %v939 = vld [vmem:[%s933 + $0x28] sm:$0xff]
      %v940 = vld [vmem:[%s933 + $0x30] sm:$0xff]
      %v941 = vld [vmem:[%s933 + $0x38] sm:$0xff]
      %v942 = vld [vmem:[%s933 + $0x40] sm:$0xff]
      %v943 = vld [vmem:[%s933 + $0x48] sm:$0xff]
      %v944 = vld [vmem:[%s933 + $0x50] sm:$0xff]
      %v945 = vld [vmem:[%s933 + $0x58] sm:$0xff]
      %v946 = vld [vmem:[%s933 + $0x60] sm:$0xff]
      %v947 = vld [vmem:[%s933 + $0x68] sm:$0xff]
      %v948 = vld [vmem:[%s933 + $0x70] sm:$0xff]
      %v949 = vld [vmem:[%s933 + $0x78] sm:$0xff]
      %950 = vmatprep.subr.mxu0 0.0
      %951 = vmatpush1.msra.mxu0 %v949
      %952 = vmatprep.subr.mxu0 0.0
      %953 = vmatpush1.msra.mxu0 %v948
      %954 = vmatprep.subr.mxu0 0.0
      %955 = vmatpush1.msra.mxu0 %v947
      %956 = vmatprep.subr.mxu0 0.0
      %957 = vmatpush1.msra.mxu0 %v946
      %958 = vmatprep.subr.mxu0 0.0
      %959 = vmatpush1.msra.mxu0 %v945
      %960 = vmatprep.subr.mxu0 0.0
      %961 = vmatpush1.msra.mxu0 %v944
      %962 = vmatprep.subr.mxu0 0.0
      %963 = vmatpush1.msra.mxu0 %v943
      %964 = vmatprep.subr.mxu0 0.0
      %965 = vmatpush1.msra.mxu0 %v942
      %966 = vmatprep.subr.mxu0 0.0
      %967 = vmatpush1.msra.mxu0 %v941
      %968 = vmatprep.subr.mxu0 0.0
      %969 = vmatpush1.msra.mxu0 %v940
      %970 = vmatprep.subr.mxu0 0.0
      %971 = vmatpush1.msra.mxu0 %v939
      %972 = vmatprep.subr.mxu0 0.0
      %973 = vmatpush1.msra.mxu0 %v938
      %974 = vmatprep.subr.mxu0 0.0
      %975 = vmatpush1.msra.mxu0 %v937
      %976 = vmatprep.subr.mxu0 0.0
      %977 = vmatpush1.msra.mxu0 %v936
      %978 = vmatprep.subr.mxu0 0.0
      %979 = vmatpush1.msra.mxu0 %v935
      %980 = vmatprep.subr.mxu0 0.0
      %981 = vmatpush1.msra.mxu0 %v934
      %982 = vmatprep.subr.mxu0 0.0
      %983 = vmatpush2.msra.mxu0 0.0
      %984 = vmatprep.subr.mxu0 0.0
      %985 = vmatpush2.msra.mxu0 0.0
      %986 = vmatprep.subr.mxu0 0.0
      %987 = vmatpush2.msra.mxu0 0.0
      %988 = vmatprep.subr.mxu0 0.0
      %989 = vmatpush2.msra.mxu0 0.0
      %990 = vmatprep.subr.mxu0 0.0
      %991 = vmatpush2.msra.mxu0 0.0
      %992 = vmatprep.subr.mxu0 0.0
      %993 = vmatpush2.msra.mxu0 0.0
      %994 = vmatprep.subr.mxu0 0.0
      %995 = vmatpush2.msra.mxu0 0.0
      %996 = vmatprep.subr.mxu0 0.0
      %997 = vmatpush2.msra.mxu0 0.0
      %998 = vmatprep.subr.mxu0 0.0
      %999 = vmatpush2.msra.mxu0 0.0
      %1000 = vmatprep.subr.mxu0 0.0
      %1001 = vmatpush2.msra.mxu0 0.0
      %1002 = vmatprep.subr.mxu0 0.0
      %1003 = vmatpush2.msra.mxu0 0.0
      %1004 = vmatprep.subr.mxu0 0.0
      %1005 = vmatpush2.msra.mxu0 0.0
      %1006 = vmatprep.subr.mxu0 0.0
      %1007 = vmatpush2.msra.mxu0 0.0
      %1008 = vmatprep.subr.mxu0 0.0
      %1009 = vmatpush2.msra.mxu0 0.0
      %1010 = vmatprep.subr.mxu0 0.0
      %1011 = vmatpush2.msra.mxu0 0.0
      %1012 = vmatprep.subr.mxu0 0.0
      %1013 = vmatpush2.msra.mxu0 0.0
      %1014 = vmatprep.mubr.f32.mxu0 0.0
      %1015 = vmatmul.mubr.f32.gmra.mxu0 %v925
      %v1016 = vpop.f32.mrf.mxu0
      %v1017 = vadd.f32 0.0, %v1016
      %v1018 = vpop.f32.mrf.mxu0
      %1019 = vmatprep.mubr.f32.mxu0 0.0
      %1020 = vmatmul.mubr.f32.gmra.mxu0 %v926
      %v1021 = vpop.f32.mrf.mxu0
      %v1022 = vadd.f32 0.0, %v1021
      %v1023 = vpop.f32.mrf.mxu0
      %1024 = vmatprep.mubr.f32.mxu0 0.0
      %1025 = vmatmul.mubr.f32.gmra.mxu0 %v927
      %v1026 = vpop.f32.mrf.mxu0
      %v1027 = vadd.f32 0.0, %v1026
      %v1028 = vpop.f32.mrf.mxu0
      %1029 = vmatprep.mubr.f32.mxu0 0.0
      %1030 = vmatmul.mubr.f32.gmra.mxu0 %v928
      %v1031 = vpop.f32.mrf.mxu0
      %v1032 = vadd.f32 0.0, %v1031
      %v1033 = vpop.f32.mrf.mxu0
      %1034 = vmatprep.mubr.f32.mxu0 0.0
      %1035 = vmatmul.mubr.f32.gmra.mxu0 %v929
      %v1036 = vpop.f32.mrf.mxu0
      %v1037 = vadd.f32 0.0, %v1036
      %v1038 = vpop.f32.mrf.mxu0
      %1039 = vmatprep.mubr.f32.mxu0 0.0
      %1040 = vmatmul.mubr.f32.gmra.mxu0 %v930
      %v1041 = vpop.f32.mrf.mxu0
      %v1042 = vadd.f32 0.0, %v1041
      %v1043 = vpop.f32.mrf.mxu0
      %1044 = vmatprep.mubr.f32.mxu0 0.0
      %1045 = vmatmul.mubr.f32.gmra.mxu0 %v931
      %v1046 = vpop.f32.mrf.mxu0
      %v1047 = vadd.f32 0.0, %v1046
      %v1048 = vpop.f32.mrf.mxu0
      %1049 = vmatprep.mubr.f32.mxu0 0.0
      %1050 = vmatmul.mubr.f32.gmra.mxu0 %v932
      %v1051 = vpop.f32.mrf.mxu0
      %v1052 = vadd.f32 0.0, %v1051
      %v1053 = vpop.f32.mrf.mxu0
      %1054 = vdwg.mxu0
      %v1055 = vadd.f32 %v916, %v1017
      %v1056 = vadd.f32 %v917, %v1022
      %v1057 = vadd.f32 %v918, %v1027
      %v1058 = vadd.f32 %v919, %v1032
      %v1059 = vadd.f32 %v920, %v1037
      %v1060 = vadd.f32 %v921, %v1042
      %v1061 = vadd.f32 %v922, %v1047
      %v1062 = vadd.f32 %v923, %v1052
      %v1063 = vld [vmem:[%s785 + $0x1] sm:$0xff]
      %v1064 = vld [vmem:[%s785 + $0x11] sm:$0xff]
      %v1065 = vld [vmem:[%s785 + $0x21] sm:$0xff]
      %v1066 = vld [vmem:[%s785 + $0x31] sm:$0xff]
      %v1067 = vld [vmem:[%s785 + $0x41] sm:$0xff]
      %v1068 = vld [vmem:[%s785 + $0x51] sm:$0xff]
      %v1069 = vld [vmem:[%s785 + $0x61] sm:$0xff]
      %v1070 = vld [vmem:[%s785 + $0x71] sm:$0xff]
      %s1071 = scalar_lea.vmem %s4, 640
      %v1072 = vld [vmem:[%s1071] sm:$0xff]
      %v1073 = vld [vmem:[%s1071 + $0x8] sm:$0xff]
      %v1074 = vld [vmem:[%s1071 + $0x10] sm:$0xff]
      %v1075 = vld [vmem:[%s1071 + $0x18] sm:$0xff]
      %v1076 = vld [vmem:[%s1071 + $0x20] sm:$0xff]
      %v1077 = vld [vmem:[%s1071 + $0x28] sm:$0xff]
      %v1078 = vld [vmem:[%s1071 + $0x30] sm:$0xff]
      %v1079 = vld [vmem:[%s1071 + $0x38] sm:$0xff]
      %v1080 = vld [vmem:[%s1071 + $0x40] sm:$0xff]
      %v1081 = vld [vmem:[%s1071 + $0x48] sm:$0xff]
      %v1082 = vld [vmem:[%s1071 + $0x50] sm:$0xff]
      %v1083 = vld [vmem:[%s1071 + $0x58] sm:$0xff]
      %v1084 = vld [vmem:[%s1071 + $0x60] sm:$0xff]
      %v1085 = vld [vmem:[%s1071 + $0x68] sm:$0xff]
      %v1086 = vld [vmem:[%s1071 + $0x70] sm:$0xff]
      %v1087 = vld [vmem:[%s1071 + $0x78] sm:$0xff]
      %1088 = vmatprep.subr.mxu0 0.0
      %1089 = vmatpush1.msra.mxu0 %v1087
      %1090 = vmatprep.subr.mxu0 0.0
      %1091 = vmatpush1.msra.mxu0 %v1086
      %1092 = vmatprep.subr.mxu0 0.0
      %1093 = vmatpush1.msra.mxu0 %v1085
      %1094 = vmatprep.subr.mxu0 0.0
      %1095 = vmatpush1.msra.mxu0 %v1084
      %1096 = vmatprep.subr.mxu0 0.0
      %1097 = vmatpush1.msra.mxu0 %v1083
      %1098 = vmatprep.subr.mxu0 0.0
      %1099 = vmatpush1.msra.mxu0 %v1082
      %1100 = vmatprep.subr.mxu0 0.0
      %1101 = vmatpush1.msra.mxu0 %v1081
      %1102 = vmatprep.subr.mxu0 0.0
      %1103 = vmatpush1.msra.mxu0 %v1080
      %1104 = vmatprep.subr.mxu0 0.0
      %1105 = vmatpush1.msra.mxu0 %v1079
      %1106 = vmatprep.subr.mxu0 0.0
      %1107 = vmatpush1.msra.mxu0 %v1078
      %1108 = vmatprep.subr.mxu0 0.0
      %1109 = vmatpush1.msra.mxu0 %v1077
      %1110 = vmatprep.subr.mxu0 0.0
      %1111 = vmatpush1.msra.mxu0 %v1076
      %1112 = vmatprep.subr.mxu0 0.0
      %1113 = vmatpush1.msra.mxu0 %v1075
      %1114 = vmatprep.subr.mxu0 0.0
      %1115 = vmatpush1.msra.mxu0 %v1074
      %1116 = vmatprep.subr.mxu0 0.0
      %1117 = vmatpush1.msra.mxu0 %v1073
      %1118 = vmatprep.subr.mxu0 0.0
      %1119 = vmatpush1.msra.mxu0 %v1072
      %1120 = vmatprep.subr.mxu0 0.0
      %1121 = vmatpush2.msra.mxu0 0.0
      %1122 = vmatprep.subr.mxu0 0.0
      %1123 = vmatpush2.msra.mxu0 0.0
      %1124 = vmatprep.subr.mxu0 0.0
      %1125 = vmatpush2.msra.mxu0 0.0
      %1126 = vmatprep.subr.mxu0 0.0
      %1127 = vmatpush2.msra.mxu0 0.0
      %1128 = vmatprep.subr.mxu0 0.0
      %1129 = vmatpush2.msra.mxu0 0.0
      %1130 = vmatprep.subr.mxu0 0.0
      %1131 = vmatpush2.msra.mxu0 0.0
      %1132 = vmatprep.subr.mxu0 0.0
      %1133 = vmatpush2.msra.mxu0 0.0
      %1134 = vmatprep.subr.mxu0 0.0
      %1135 = vmatpush2.msra.mxu0 0.0
      %1136 = vmatprep.subr.mxu0 0.0
      %1137 = vmatpush2.msra.mxu0 0.0
      %1138 = vmatprep.subr.mxu0 0.0
      %1139 = vmatpush2.msra.mxu0 0.0
      %1140 = vmatprep.subr.mxu0 0.0
      %1141 = vmatpush2.msra.mxu0 0.0
      %1142 = vmatprep.subr.mxu0 0.0
      %1143 = vmatpush2.msra.mxu0 0.0
      %1144 = vmatprep.subr.mxu0 0.0
      %1145 = vmatpush2.msra.mxu0 0.0
      %1146 = vmatprep.subr.mxu0 0.0
      %1147 = vmatpush2.msra.mxu0 0.0
      %1148 = vmatprep.subr.mxu0 0.0
      %1149 = vmatpush2.msra.mxu0 0.0
      %1150 = vmatprep.subr.mxu0 0.0
      %1151 = vmatpush2.msra.mxu0 0.0
      %1152 = vmatprep.mubr.f32.mxu0 0.0
      %1153 = vmatmul.mubr.f32.gmra.mxu0 %v1063
      %v1154 = vpop.f32.mrf.mxu0
      %v1155 = vadd.f32 0.0, %v1154
      %v1156 = vpop.f32.mrf.mxu0
      %1157 = vmatprep.mubr.f32.mxu0 0.0
      %1158 = vmatmul.mubr.f32.gmra.mxu0 %v1064
      %v1159 = vpop.f32.mrf.mxu0
      %v1160 = vadd.f32 0.0, %v1159
      %v1161 = vpop.f32.mrf.mxu0
      %1162 = vmatprep.mubr.f32.mxu0 0.0
      %1163 = vmatmul.mubr.f32.gmra.mxu0 %v1065
      %v1164 = vpop.f32.mrf.mxu0
      %v1165 = vadd.f32 0.0, %v1164
      %v1166 = vpop.f32.mrf.mxu0
      %1167 = vmatprep.mubr.f32.mxu0 0.0
      %1168 = vmatmul.mubr.f32.gmra.mxu0 %v1066
      %v1169 = vpop.f32.mrf.mxu0
      %v1170 = vadd.f32 0.0, %v1169
      %v1171 = vpop.f32.mrf.mxu0
      %1172 = vmatprep.mubr.f32.mxu0 0.0
      %1173 = vmatmul.mubr.f32.gmra.mxu0 %v1067
      %v1174 = vpop.f32.mrf.mxu0
      %v1175 = vadd.f32 0.0, %v1174
      %v1176 = vpop.f32.mrf.mxu0
      %1177 = vmatprep.mubr.f32.mxu0 0.0
      %1178 = vmatmul.mubr.f32.gmra.mxu0 %v1068
      %v1179 = vpop.f32.mrf.mxu0
      %v1180 = vadd.f32 0.0, %v1179
      %v1181 = vpop.f32.mrf.mxu0
      %1182 = vmatprep.mubr.f32.mxu0 0.0
      %1183 = vmatmul.mubr.f32.gmra.mxu0 %v1069
      %v1184 = vpop.f32.mrf.mxu0
      %v1185 = vadd.f32 0.0, %v1184
      %v1186 = vpop.f32.mrf.mxu0
      %1187 = vmatprep.mubr.f32.mxu0 0.0
      %1188 = vmatmul.mubr.f32.gmra.mxu0 %v1070
      %v1189 = vpop.f32.mrf.mxu0
      %v1190 = vadd.f32 0.0, %v1189
      %v1191 = vpop.f32.mrf.mxu0
      %1192 = vdwg.mxu0
      %v1193 = vadd.f32 %v1055, %v1155
      %v1194 = vadd.f32 %v1056, %v1160
      %v1195 = vadd.f32 %v1057, %v1165
      %v1196 = vadd.f32 %v1058, %v1170
      %v1197 = vadd.f32 %v1059, %v1175
      %v1198 = vadd.f32 %v1060, %v1180
      %v1199 = vadd.f32 %v1061, %v1185
      %v1200 = vadd.f32 %v1062, %v1190
      %s1201 = sadd.s32 %s384, 1
      %s1202 = smul.u32 %s1201, 16
      %s1203 = scalar_lea.vmem %s350, %s1202
      %v1204 = vld [vmem:[%s1203] sm:$0xff]
      %v1205 = vld [vmem:[%s1203 + $0x10] sm:$0xff]
      %v1206 = vld [vmem:[%s1203 + $0x20] sm:$0xff]
      %v1207 = vld [vmem:[%s1203 + $0x30] sm:$0xff]
      %v1208 = vld [vmem:[%s1203 + $0x40] sm:$0xff]
      %v1209 = vld [vmem:[%s1203 + $0x50] sm:$0xff]
      %v1210 = vld [vmem:[%s1203 + $0x60] sm:$0xff]
      %v1211 = vld [vmem:[%s1203 + $0x70] sm:$0xff]
      %s1212 = scalar_lea.vmem %s4, 768
      %v1213 = vld [vmem:[%s1212] sm:$0xff]
      %v1214 = vld [vmem:[%s1212 + $0x8] sm:$0xff]
      %v1215 = vld [vmem:[%s1212 + $0x10] sm:$0xff]
      %v1216 = vld [vmem:[%s1212 + $0x18] sm:$0xff]
      %v1217 = vld [vmem:[%s1212 + $0x20] sm:$0xff]
      %v1218 = vld [vmem:[%s1212 + $0x28] sm:$0xff]
      %v1219 = vld [vmem:[%s1212 + $0x30] sm:$0xff]
      %v1220 = vld [vmem:[%s1212 + $0x38] sm:$0xff]
      %v1221 = vld [vmem:[%s1212 + $0x40] sm:$0xff]
      %v1222 = vld [vmem:[%s1212 + $0x48] sm:$0xff]
      %v1223 = vld [vmem:[%s1212 + $0x50] sm:$0xff]
      %v1224 = vld [vmem:[%s1212 + $0x58] sm:$0xff]
      %v1225 = vld [vmem:[%s1212 + $0x60] sm:$0xff]
      %v1226 = vld [vmem:[%s1212 + $0x68] sm:$0xff]
      %v1227 = vld [vmem:[%s1212 + $0x70] sm:$0xff]
      %v1228 = vld [vmem:[%s1212 + $0x78] sm:$0xff]
      %1229 = vmatprep.subr.mxu0 0.0
      %1230 = vmatpush1.msra.mxu0 %v1228
      %1231 = vmatprep.subr.mxu0 0.0
      %1232 = vmatpush1.msra.mxu0 %v1227
      %1233 = vmatprep.subr.mxu0 0.0
      %1234 = vmatpush1.msra.mxu0 %v1226
      %1235 = vmatprep.subr.mxu0 0.0
      %1236 = vmatpush1.msra.mxu0 %v1225
      %1237 = vmatprep.subr.mxu0 0.0
      %1238 = vmatpush1.msra.mxu0 %v1224
      %1239 = vmatprep.subr.mxu0 0.0
      %1240 = vmatpush1.msra.mxu0 %v1223
      %1241 = vmatprep.subr.mxu0 0.0
      %1242 = vmatpush1.msra.mxu0 %v1222
      %1243 = vmatprep.subr.mxu0 0.0
      %1244 = vmatpush1.msra.mxu0 %v1221
      %1245 = vmatprep.subr.mxu0 0.0
      %1246 = vmatpush1.msra.mxu0 %v1220
      %1247 = vmatprep.subr.mxu0 0.0
      %1248 = vmatpush1.msra.mxu0 %v1219
      %1249 = vmatprep.subr.mxu0 0.0
      %1250 = vmatpush1.msra.mxu0 %v1218
      %1251 = vmatprep.subr.mxu0 0.0
      %1252 = vmatpush1.msra.mxu0 %v1217
      %1253 = vmatprep.subr.mxu0 0.0
      %1254 = vmatpush1.msra.mxu0 %v1216
      %1255 = vmatprep.subr.mxu0 0.0
      %1256 = vmatpush1.msra.mxu0 %v1215
      %1257 = vmatprep.subr.mxu0 0.0
      %1258 = vmatpush1.msra.mxu0 %v1214
      %1259 = vmatprep.subr.mxu0 0.0
      %1260 = vmatpush1.msra.mxu0 %v1213
      %1261 = vmatprep.subr.mxu0 0.0
      %1262 = vmatpush2.msra.mxu0 0.0
      %1263 = vmatprep.subr.mxu0 0.0
      %1264 = vmatpush2.msra.mxu0 0.0
      %1265 = vmatprep.subr.mxu0 0.0
      %1266 = vmatpush2.msra.mxu0 0.0
      %1267 = vmatprep.subr.mxu0 0.0
      %1268 = vmatpush2.msra.mxu0 0.0
      %1269 = vmatprep.subr.mxu0 0.0
      %1270 = vmatpush2.msra.mxu0 0.0
      %1271 = vmatprep.subr.mxu0 0.0
      %1272 = vmatpush2.msra.mxu0 0.0
      %1273 = vmatprep.subr.mxu0 0.0
      %1274 = vmatpush2.msra.mxu0 0.0
      %1275 = vmatprep.subr.mxu0 0.0
      %1276 = vmatpush2.msra.mxu0 0.0
      %1277 = vmatprep.subr.mxu0 0.0
      %1278 = vmatpush2.msra.mxu0 0.0
      %1279 = vmatprep.subr.mxu0 0.0
      %1280 = vmatpush2.msra.mxu0 0.0
      %1281 = vmatprep.subr.mxu0 0.0
      %1282 = vmatpush2.msra.mxu0 0.0
      %1283 = vmatprep.subr.mxu0 0.0
      %1284 = vmatpush2.msra.mxu0 0.0
      %1285 = vmatprep.subr.mxu0 0.0
      %1286 = vmatpush2.msra.mxu0 0.0
      %1287 = vmatprep.subr.mxu0 0.0
      %1288 = vmatpush2.msra.mxu0 0.0
      %1289 = vmatprep.subr.mxu0 0.0
      %1290 = vmatpush2.msra.mxu0 0.0
      %1291 = vmatprep.subr.mxu0 0.0
      %1292 = vmatpush2.msra.mxu0 0.0
      %1293 = vmatprep.mubr.f32.mxu0 0.0
      %1294 = vmatmul.mubr.f32.gmra.mxu0 %v1204
      %v1295 = vpop.f32.mrf.mxu0
      %v1296 = vadd.f32 0.0, %v1295
      %v1297 = vpop.f32.mrf.mxu0
      %1298 = vmatprep.mubr.f32.mxu0 0.0
      %1299 = vmatmul.mubr.f32.gmra.mxu0 %v1205
      %v1300 = vpop.f32.mrf.mxu0
      %v1301 = vadd.f32 0.0, %v1300
      %v1302 = vpop.f32.mrf.mxu0
      %1303 = vmatprep.mubr.f32.mxu0 0.0
      %1304 = vmatmul.mubr.f32.gmra.mxu0 %v1206
      %v1305 = vpop.f32.mrf.mxu0
      %v1306 = vadd.f32 0.0, %v1305
      %v1307 = vpop.f32.mrf.mxu0
      %1308 = vmatprep.mubr.f32.mxu0 0.0
      %1309 = vmatmul.mubr.f32.gmra.mxu0 %v1207
      %v1310 = vpop.f32.mrf.mxu0
      %v1311 = vadd.f32 0.0, %v1310
      %v1312 = vpop.f32.mrf.mxu0
      %1313 = vmatprep.mubr.f32.mxu0 0.0
      %1314 = vmatmul.mubr.f32.gmra.mxu0 %v1208
      %v1315 = vpop.f32.mrf.mxu0
      %v1316 = vadd.f32 0.0, %v1315
      %v1317 = vpop.f32.mrf.mxu0
      %1318 = vmatprep.mubr.f32.mxu0 0.0
      %1319 = vmatmul.mubr.f32.gmra.mxu0 %v1209
      %v1320 = vpop.f32.mrf.mxu0
      %v1321 = vadd.f32 0.0, %v1320
      %v1322 = vpop.f32.mrf.mxu0
      %1323 = vmatprep.mubr.f32.mxu0 0.0
      %1324 = vmatmul.mubr.f32.gmra.mxu0 %v1210
      %v1325 = vpop.f32.mrf.mxu0
      %v1326 = vadd.f32 0.0, %v1325
      %v1327 = vpop.f32.mrf.mxu0
      %1328 = vmatprep.mubr.f32.mxu0 0.0
      %1329 = vmatmul.mubr.f32.gmra.mxu0 %v1211
      %v1330 = vpop.f32.mrf.mxu0
      %v1331 = vadd.f32 0.0, %v1330
      %v1332 = vpop.f32.mrf.mxu0
      %1333 = vdwg.mxu0
      %v1334 = vadd.f32 %v1193, %v1296
      %v1335 = vadd.f32 %v1194, %v1301
      %v1336 = vadd.f32 %v1195, %v1306
      %v1337 = vadd.f32 %v1196, %v1311
      %v1338 = vadd.f32 %v1197, %v1316
      %v1339 = vadd.f32 %v1198, %v1321
      %v1340 = vadd.f32 %v1199, %v1326
      %v1341 = vadd.f32 %v1200, %v1331
      %s1342 = scalar_lea.vmem %s355, %s1202
      %v1343 = vld [vmem:[%s1342] sm:$0xff]
      %v1344 = vld [vmem:[%s1342 + $0x10] sm:$0xff]
      %v1345 = vld [vmem:[%s1342 + $0x20] sm:$0xff]
      %v1346 = vld [vmem:[%s1342 + $0x30] sm:$0xff]
      %v1347 = vld [vmem:[%s1342 + $0x40] sm:$0xff]
      %v1348 = vld [vmem:[%s1342 + $0x50] sm:$0xff]
      %v1349 = vld [vmem:[%s1342 + $0x60] sm:$0xff]
      %v1350 = vld [vmem:[%s1342 + $0x70] sm:$0xff]
      %s1351 = scalar_lea.vmem %s4, 896
      %v1352 = vld [vmem:[%s1351] sm:$0xff]
      %v1353 = vld [vmem:[%s1351 + $0x8] sm:$0xff]
      %v1354 = vld [vmem:[%s1351 + $0x10] sm:$0xff]
      %v1355 = vld [vmem:[%s1351 + $0x18] sm:$0xff]
      %v1356 = vld [vmem:[%s1351 + $0x20] sm:$0xff]
      %v1357 = vld [vmem:[%s1351 + $0x28] sm:$0xff]
      %v1358 = vld [vmem:[%s1351 + $0x30] sm:$0xff]
      %v1359 = vld [vmem:[%s1351 + $0x38] sm:$0xff]
      %v1360 = vld [vmem:[%s1351 + $0x40] sm:$0xff]
      %v1361 = vld [vmem:[%s1351 + $0x48] sm:$0xff]
      %v1362 = vld [vmem:[%s1351 + $0x50] sm:$0xff]
      %v1363 = vld [vmem:[%s1351 + $0x58] sm:$0xff]
      %v1364 = vld [vmem:[%s1351 + $0x60] sm:$0xff]
      %v1365 = vld [vmem:[%s1351 + $0x68] sm:$0xff]
      %v1366 = vld [vmem:[%s1351 + $0x70] sm:$0xff]
      %v1367 = vld [vmem:[%s1351 + $0x78] sm:$0xff]
      %1368 = vmatprep.subr.mxu0 0.0
      %1369 = vmatpush1.msra.mxu0 %v1367
      %1370 = vmatprep.subr.mxu0 0.0
      %1371 = vmatpush1.msra.mxu0 %v1366
      %1372 = vmatprep.subr.mxu0 0.0
      %1373 = vmatpush1.msra.mxu0 %v1365
      %1374 = vmatprep.subr.mxu0 0.0
      %1375 = vmatpush1.msra.mxu0 %v1364
      %1376 = vmatprep.subr.mxu0 0.0
      %1377 = vmatpush1.msra.mxu0 %v1363
      %1378 = vmatprep.subr.mxu0 0.0
      %1379 = vmatpush1.msra.mxu0 %v1362
      %1380 = vmatprep.subr.mxu0 0.0
      %1381 = vmatpush1.msra.mxu0 %v1361
      %1382 = vmatprep.subr.mxu0 0.0
      %1383 = vmatpush1.msra.mxu0 %v1360
      %1384 = vmatprep.subr.mxu0 0.0
      %1385 = vmatpush1.msra.mxu0 %v1359
      %1386 = vmatprep.subr.mxu0 0.0
      %1387 = vmatpush1.msra.mxu0 %v1358
      %1388 = vmatprep.subr.mxu0 0.0
      %1389 = vmatpush1.msra.mxu0 %v1357
      %1390 = vmatprep.subr.mxu0 0.0
      %1391 = vmatpush1.msra.mxu0 %v1356
      %1392 = vmatprep.subr.mxu0 0.0
      %1393 = vmatpush1.msra.mxu0 %v1355
      %1394 = vmatprep.subr.mxu0 0.0
      %1395 = vmatpush1.msra.mxu0 %v1354
      %1396 = vmatprep.subr.mxu0 0.0
      %1397 = vmatpush1.msra.mxu0 %v1353
      %1398 = vmatprep.subr.mxu0 0.0
      %1399 = vmatpush1.msra.mxu0 %v1352
      %1400 = vmatprep.subr.mxu0 0.0
      %1401 = vmatpush2.msra.mxu0 0.0
      %1402 = vmatprep.subr.mxu0 0.0
      %1403 = vmatpush2.msra.mxu0 0.0
      %1404 = vmatprep.subr.mxu0 0.0
      %1405 = vmatpush2.msra.mxu0 0.0
      %1406 = vmatprep.subr.mxu0 0.0
      %1407 = vmatpush2.msra.mxu0 0.0
      %1408 = vmatprep.subr.mxu0 0.0
      %1409 = vmatpush2.msra.mxu0 0.0
      %1410 = vmatprep.subr.mxu0 0.0
      %1411 = vmatpush2.msra.mxu0 0.0
      %1412 = vmatprep.subr.mxu0 0.0
      %1413 = vmatpush2.msra.mxu0 0.0
      %1414 = vmatprep.subr.mxu0 0.0
      %1415 = vmatpush2.msra.mxu0 0.0
      %1416 = vmatprep.subr.mxu0 0.0
      %1417 = vmatpush2.msra.mxu0 0.0
      %1418 = vmatprep.subr.mxu0 0.0
      %1419 = vmatpush2.msra.mxu0 0.0
      %1420 = vmatprep.subr.mxu0 0.0
      %1421 = vmatpush2.msra.mxu0 0.0
      %1422 = vmatprep.subr.mxu0 0.0
      %1423 = vmatpush2.msra.mxu0 0.0
      %1424 = vmatprep.subr.mxu0 0.0
      %1425 = vmatpush2.msra.mxu0 0.0
      %1426 = vmatprep.subr.mxu0 0.0
      %1427 = vmatpush2.msra.mxu0 0.0
      %1428 = vmatprep.subr.mxu0 0.0
      %1429 = vmatpush2.msra.mxu0 0.0
      %1430 = vmatprep.subr.mxu0 0.0
      %1431 = vmatpush2.msra.mxu0 0.0
      %1432 = vmatprep.mubr.f32.mxu0 0.0
      %1433 = vmatmul.mubr.f32.gmra.mxu0 %v1343
      %v1434 = vpop.f32.mrf.mxu0
      %v1435 = vadd.f32 0.0, %v1434
      %v1436 = vpop.f32.mrf.mxu0
      %1437 = vmatprep.mubr.f32.mxu0 0.0
      %1438 = vmatmul.mubr.f32.gmra.mxu0 %v1344
      %v1439 = vpop.f32.mrf.mxu0
      %v1440 = vadd.f32 0.0, %v1439
      %v1441 = vpop.f32.mrf.mxu0
      %1442 = vmatprep.mubr.f32.mxu0 0.0
      %1443 = vmatmul.mubr.f32.gmra.mxu0 %v1345
      %v1444 = vpop.f32.mrf.mxu0
      %v1445 = vadd.f32 0.0, %v1444
      %v1446 = vpop.f32.mrf.mxu0
      %1447 = vmatprep.mubr.f32.mxu0 0.0
      %1448 = vmatmul.mubr.f32.gmra.mxu0 %v1346
      %v1449 = vpop.f32.mrf.mxu0
      %v1450 = vadd.f32 0.0, %v1449
      %v1451 = vpop.f32.mrf.mxu0
      %1452 = vmatprep.mubr.f32.mxu0 0.0
      %1453 = vmatmul.mubr.f32.gmra.mxu0 %v1347
      %v1454 = vpop.f32.mrf.mxu0
      %v1455 = vadd.f32 0.0, %v1454
      %v1456 = vpop.f32.mrf.mxu0
      %1457 = vmatprep.mubr.f32.mxu0 0.0
      %1458 = vmatmul.mubr.f32.gmra.mxu0 %v1348
      %v1459 = vpop.f32.mrf.mxu0
      %v1460 = vadd.f32 0.0, %v1459
      %v1461 = vpop.f32.mrf.mxu0
      %1462 = vmatprep.mubr.f32.mxu0 0.0
      %1463 = vmatmul.mubr.f32.gmra.mxu0 %v1349
      %v1464 = vpop.f32.mrf.mxu0
      %v1465 = vadd.f32 0.0, %v1464
      %v1466 = vpop.f32.mrf.mxu0
      %1467 = vmatprep.mubr.f32.mxu0 0.0
      %1468 = vmatmul.mubr.f32.gmra.mxu0 %v1350
      %v1469 = vpop.f32.mrf.mxu0
      %v1470 = vadd.f32 0.0, %v1469
      %v1471 = vpop.f32.mrf.mxu0
      %1472 = vdwg.mxu0
      %v1473 = vadd.f32 %v1334, %v1435
      %v1474 = vadd.f32 %v1335, %v1440
      %v1475 = vadd.f32 %v1336, %v1445
      %v1476 = vadd.f32 %v1337, %v1450
      %v1477 = vadd.f32 %v1338, %v1455
      %v1478 = vadd.f32 %v1339, %v1460
      %v1479 = vadd.f32 %v1340, %v1465
      %v1480 = vadd.f32 %v1341, %v1470
      %v1481 = vld [vmem:[%s1203 + $0x1] sm:$0xff]
      %v1482 = vld [vmem:[%s1203 + $0x11] sm:$0xff]
      %v1483 = vld [vmem:[%s1203 + $0x21] sm:$0xff]
      %v1484 = vld [vmem:[%s1203 + $0x31] sm:$0xff]
      %v1485 = vld [vmem:[%s1203 + $0x41] sm:$0xff]
      %v1486 = vld [vmem:[%s1203 + $0x51] sm:$0xff]
      %v1487 = vld [vmem:[%s1203 + $0x61] sm:$0xff]
      %v1488 = vld [vmem:[%s1203 + $0x71] sm:$0xff]
      %s1489 = scalar_lea.vmem %s4, 1024
      %v1490 = vld [vmem:[%s1489] sm:$0xff]
      %v1491 = vld [vmem:[%s1489 + $0x8] sm:$0xff]
      %v1492 = vld [vmem:[%s1489 + $0x10] sm:$0xff]
      %v1493 = vld [vmem:[%s1489 + $0x18] sm:$0xff]
      %v1494 = vld [vmem:[%s1489 + $0x20] sm:$0xff]
      %v1495 = vld [vmem:[%s1489 + $0x28] sm:$0xff]
      %v1496 = vld [vmem:[%s1489 + $0x30] sm:$0xff]
      %v1497 = vld [vmem:[%s1489 + $0x38] sm:$0xff]
      %v1498 = vld [vmem:[%s1489 + $0x40] sm:$0xff]
      %v1499 = vld [vmem:[%s1489 + $0x48] sm:$0xff]
      %v1500 = vld [vmem:[%s1489 + $0x50] sm:$0xff]
      %v1501 = vld [vmem:[%s1489 + $0x58] sm:$0xff]
      %v1502 = vld [vmem:[%s1489 + $0x60] sm:$0xff]
      %v1503 = vld [vmem:[%s1489 + $0x68] sm:$0xff]
      %v1504 = vld [vmem:[%s1489 + $0x70] sm:$0xff]
      %v1505 = vld [vmem:[%s1489 + $0x78] sm:$0xff]
      %1506 = vmatprep.subr.mxu0 0.0
      %1507 = vmatpush1.msra.mxu0 %v1505
      %1508 = vmatprep.subr.mxu0 0.0
      %1509 = vmatpush1.msra.mxu0 %v1504
      %1510 = vmatprep.subr.mxu0 0.0
      %1511 = vmatpush1.msra.mxu0 %v1503
      %1512 = vmatprep.subr.mxu0 0.0
      %1513 = vmatpush1.msra.mxu0 %v1502
      %1514 = vmatprep.subr.mxu0 0.0
      %1515 = vmatpush1.msra.mxu0 %v1501
      %1516 = vmatprep.subr.mxu0 0.0
      %1517 = vmatpush1.msra.mxu0 %v1500
      %1518 = vmatprep.subr.mxu0 0.0
      %1519 = vmatpush1.msra.mxu0 %v1499
      %1520 = vmatprep.subr.mxu0 0.0
      %1521 = vmatpush1.msra.mxu0 %v1498
      %1522 = vmatprep.subr.mxu0 0.0
      %1523 = vmatpush1.msra.mxu0 %v1497
      %1524 = vmatprep.subr.mxu0 0.0
      %1525 = vmatpush1.msra.mxu0 %v1496
      %1526 = vmatprep.subr.mxu0 0.0
      %1527 = vmatpush1.msra.mxu0 %v1495
      %1528 = vmatprep.subr.mxu0 0.0
      %1529 = vmatpush1.msra.mxu0 %v1494
      %1530 = vmatprep.subr.mxu0 0.0
      %1531 = vmatpush1.msra.mxu0 %v1493
      %1532 = vmatprep.subr.mxu0 0.0
      %1533 = vmatpush1.msra.mxu0 %v1492
      %1534 = vmatprep.subr.mxu0 0.0
      %1535 = vmatpush1.msra.mxu0 %v1491
      %1536 = vmatprep.subr.mxu0 0.0
      %1537 = vmatpush1.msra.mxu0 %v1490
      %1538 = vmatprep.subr.mxu0 0.0
      %1539 = vmatpush2.msra.mxu0 0.0
      %1540 = vmatprep.subr.mxu0 0.0
      %1541 = vmatpush2.msra.mxu0 0.0
      %1542 = vmatprep.subr.mxu0 0.0
      %1543 = vmatpush2.msra.mxu0 0.0
      %1544 = vmatprep.subr.mxu0 0.0
      %1545 = vmatpush2.msra.mxu0 0.0
      %1546 = vmatprep.subr.mxu0 0.0
      %1547 = vmatpush2.msra.mxu0 0.0
      %1548 = vmatprep.subr.mxu0 0.0
      %1549 = vmatpush2.msra.mxu0 0.0
      %1550 = vmatprep.subr.mxu0 0.0
      %1551 = vmatpush2.msra.mxu0 0.0
      %1552 = vmatprep.subr.mxu0 0.0
      %1553 = vmatpush2.msra.mxu0 0.0
      %1554 = vmatprep.subr.mxu0 0.0
      %1555 = vmatpush2.msra.mxu0 0.0
      %1556 = vmatprep.subr.mxu0 0.0
      %1557 = vmatpush2.msra.mxu0 0.0
      %1558 = vmatprep.subr.mxu0 0.0
      %1559 = vmatpush2.msra.mxu0 0.0
      %1560 = vmatprep.subr.mxu0 0.0
      %1561 = vmatpush2.msra.mxu0 0.0
      %1562 = vmatprep.subr.mxu0 0.0
      %1563 = vmatpush2.msra.mxu0 0.0
      %1564 = vmatprep.subr.mxu0 0.0
      %1565 = vmatpush2.msra.mxu0 0.0
      %1566 = vmatprep.subr.mxu0 0.0
      %1567 = vmatpush2.msra.mxu0 0.0
      %1568 = vmatprep.subr.mxu0 0.0
      %1569 = vmatpush2.msra.mxu0 0.0
      %1570 = vmatprep.mubr.f32.mxu0 0.0
      %1571 = vmatmul.mubr.f32.gmra.mxu0 %v1481
      %v1572 = vpop.f32.mrf.mxu0
      %v1573 = vadd.f32 0.0, %v1572
      %v1574 = vpop.f32.mrf.mxu0
      %1575 = vmatprep.mubr.f32.mxu0 0.0
      %1576 = vmatmul.mubr.f32.gmra.mxu0 %v1482
      %v1577 = vpop.f32.mrf.mxu0
      %v1578 = vadd.f32 0.0, %v1577
      %v1579 = vpop.f32.mrf.mxu0
      %1580 = vmatprep.mubr.f32.mxu0 0.0
      %1581 = vmatmul.mubr.f32.gmra.mxu0 %v1483
      %v1582 = vpop.f32.mrf.mxu0
      %v1583 = vadd.f32 0.0, %v1582
      %v1584 = vpop.f32.mrf.mxu0
      %1585 = vmatprep.mubr.f32.mxu0 0.0
      %1586 = vmatmul.mubr.f32.gmra.mxu0 %v1484
      %v1587 = vpop.f32.mrf.mxu0
      %v1588 = vadd.f32 0.0, %v1587
      %v1589 = vpop.f32.mrf.mxu0
      %1590 = vmatprep.mubr.f32.mxu0 0.0
      %1591 = vmatmul.mubr.f32.gmra.mxu0 %v1485
      %v1592 = vpop.f32.mrf.mxu0
      %v1593 = vadd.f32 0.0, %v1592
      %v1594 = vpop.f32.mrf.mxu0
      %1595 = vmatprep.mubr.f32.mxu0 0.0
      %1596 = vmatmul.mubr.f32.gmra.mxu0 %v1486
      %v1597 = vpop.f32.mrf.mxu0
      %v1598 = vadd.f32 0.0, %v1597
      %v1599 = vpop.f32.mrf.mxu0
      %1600 = vmatprep.mubr.f32.mxu0 0.0
      %1601 = vmatmul.mubr.f32.gmra.mxu0 %v1487
      %v1602 = vpop.f32.mrf.mxu0
      %v1603 = vadd.f32 0.0, %v1602
      %v1604 = vpop.f32.mrf.mxu0
      %1605 = vmatprep.mubr.f32.mxu0 0.0
      %1606 = vmatmul.mubr.f32.gmra.mxu0 %v1488
      %v1607 = vpop.f32.mrf.mxu0
      %v1608 = vadd.f32 0.0, %v1607
      %v1609 = vpop.f32.mrf.mxu0
      %1610 = vdwg.mxu0
      %v1611 = vadd.f32 %v1473, %v1573
      %v1612 = vadd.f32 %v1474, %v1578
      %v1613 = vadd.f32 %v1475, %v1583
      %v1614 = vadd.f32 %v1476, %v1588
      %v1615 = vadd.f32 %v1477, %v1593
      %v1616 = vadd.f32 %v1478, %v1598
      %v1617 = vadd.f32 %v1479, %v1603
      %v1618 = vadd.f32 %v1480, %v1608
      %1619 = vst [vmem:[%s371] sm:$0xff] %v1611
      %1620 = vst [vmem:[%s371 + $0x8] sm:$0xff] %v1612
      %1621 = vst [vmem:[%s371 + $0x10] sm:$0xff] %v1613
      %1622 = vst [vmem:[%s371 + $0x18] sm:$0xff] %v1614
      %1623 = vst [vmem:[%s371 + $0x20] sm:$0xff] %v1615
      %1624 = vst [vmem:[%s371 + $0x28] sm:$0xff] %v1616
      %1625 = vst [vmem:[%s371 + $0x30] sm:$0xff] %v1617
      %1626 = vst [vmem:[%s371 + $0x38] sm:$0xff] %v1618
      %v1627 = vadd.f32 %v1611, %v1612
      %v1628 = vadd.f32 %v1627, %v1613
      %v1629 = vadd.f32 %v1628, %v1614
      %v1630 = vadd.f32 %v1629, %v1615
      %v1631 = vadd.f32 %v1630, %v1616
      %v1632 = vadd.f32 %v1631, %v1617
      %v1633 = vadd.f32 %v1632, %v1618
      %v1634 = vrot.slane %v1633, 4
      %v1635 = vadd.f32 %v1633, %v1634
      %v1636 = vrot.slane %v1635, 2
      %v1637 = vadd.f32 %v1635, %v1636
      %v1638 = vrot.slane %v1637, 1
      %v1639 = vadd.f32 %v1637, %v1638
      %1640 = vst [vmem:[%s377] sm:$0x1] %v1639
      %v1641 = vmul.f32 %v1611, %v1611
      %v1642 = vmul.f32 %v1612, %v1612
      %v1643 = vmul.f32 %v1613, %v1613
      %v1644 = vmul.f32 %v1614, %v1614
      %v1645 = vmul.f32 %v1615, %v1615
      %v1646 = vmul.f32 %v1616, %v1616
      %v1647 = vmul.f32 %v1617, %v1617
      %v1648 = vmul.f32 %v1618, %v1618
      %v1649 = vadd.f32 %v1641, %v1642
      %v1650 = vadd.f32 %v1649, %v1643
      %v1651 = vadd.f32 %v1650, %v1644
      %v1652 = vadd.f32 %v1651, %v1645
      %v1653 = vadd.f32 %v1652, %v1646
      %v1654 = vadd.f32 %v1653, %v1647
      %v1655 = vadd.f32 %v1654, %v1648
      %v1656 = vrot.slane %v1655, 4
      %v1657 = vadd.f32 %v1655, %v1656
      %v1658 = vrot.slane %v1657, 2
      %v1659 = vadd.f32 %v1657, %v1658
      %v1660 = vrot.slane %v1659, 1
      %v1661 = vadd.f32 %v1659, %v1660
      %1662 = vst [vmem:[%s382] sm:$0x1] %v1661
      %s1663 = sadd.s32 %s23, %s24
      %s1664 = smul.u32 8, %s1663
      %p1665 = scmp.lt.s32.totalorder %s1664, 15
      %s1666 = scalar_select %p1665, %s1664, 15
      %s1667 = smul.addr %s1666, 8
      %s1668 = scalar_lea.vmem %s5, %s1667
      %s1669 = sadd.s32 %s23, %s24
      %p1670 = scmp.lt.s32.totalorder %s1669, 1
      %s1671 = scalar_select %p1670, %s1669, 1
      %s1672 = scalar_lea.vmem %s6, %s1671
      %s1673 = sadd.s32 %s23, %s24
      %p1674 = scmp.lt.s32.totalorder %s1673, 1
      %s1675 = scalar_select %p1674, %s1673, 1
      %s1676 = scalar_lea.vmem %s7, %s1675
      // Predicated region
      $region41: #{down_forward.3} parent=39 // pred_check
        %p1677 = pneg %p176
      $region42: #{down_forward.3} parent=39 // pred_check_branch
        %1679 = sbr.rel (%p1677) target = $region44
      $region43: #{down_forward.3} parent=39 // pred_region
        %s1680 = sadd.s32 %s23, %s24
        %s1681 = smul.u32 8, %s1680
      $region44: #{down_forward.3} parent=39 // pred_fallthru
        _
      // Predicated region
      $region45: #{down_forward.3} parent=39 // pred_check
        %p1682 = pneg %p204
      $region46: #{down_forward.3} parent=39 // pred_check_branch
        %1684 = sbr.rel (%p1682) target = $region48
      $region47: #{down_forward.3} parent=39 // pred_region
        %s1685 = sadd.s32 %s23, %s24
      $region48: #{down_forward.3} parent=39 // pred_fallthru
        _
      // Predicated region
      $region49: #{down_forward.3} parent=39 // pred_check
        %p1686 = pneg %p232
      $region50: #{down_forward.3} parent=39 // pred_check_branch
        %1688 = sbr.rel (%p1686) target = $region52
      $region51: #{down_forward.3} parent=39 // pred_region
        %s1689 = sadd.s32 %s23, %s24
      $region52: #{down_forward.3} parent=39 // pred_fallthru
        _
    $region40: #{down_forward.3} parent=5 // pred_fallthru
      _
    %p1690 = scmp.le.s32.totalorder 2, %s14
    // Predicated region
    $region53: #{down_forward.3} parent=5 // pred_check
      %p1691 = pneg %p1690
    $region54: #{down_forward.3} parent=5 // pred_check_branch
      %1693 = sbr.rel (%p1691) target = $region56
    $region55: #{down_forward.3} parent=5 // pred_region
      %s1694 = ssub.s32 %s14, 2
      // Predicated region
      $region57: #{down_forward.3} parent=55 // pred_check
        %p1695 = pneg %p182
      $region58: #{down_forward.3} parent=55 // pred_check_branch
        %1697 = sbr.rel (%p1695) target = $region60
      $region59: #{down_forward.3} parent=55 // pred_region
        %s1698 = sadd.s32 %s25, %s26
        %s1699 = smul.u32 8, %s1698
        %p1700 = scmp.lt.s32.totalorder %s1699, 15
        %s1701 = scalar_select %p1700, %s1699, 15
        %s1702 = smul.addr %s1701, 8
        %s1703 = scalar_lea.vmem %s5, %s1702
      $region60: #{down_forward.3} parent=55 // pred_fallthru
        _
      // Predicated region
      $region61: #{down_forward.3} parent=55 // pred_check
        %p1704 = pneg %p210
      $region62: #{down_forward.3} parent=55 // pred_check_branch
        %1706 = sbr.rel (%p1704) target = $region64
      $region63: #{down_forward.3} parent=55 // pred_region
        %s1707 = sadd.s32 %s25, %s26
        %p1708 = scmp.lt.s32.totalorder %s1707, 1
        %s1709 = scalar_select %p1708, %s1707, 1
        %s1710 = scalar_lea.vmem %s6, %s1709
      $region64: #{down_forward.3} parent=55 // pred_fallthru
        _
      // Predicated region
      $region65: #{down_forward.3} parent=55 // pred_check
        %p1711 = pneg %p238
      $region66: #{down_forward.3} parent=55 // pred_check_branch
        %1713 = sbr.rel (%p1711) target = $region68
      $region67: #{down_forward.3} parent=55 // pred_region
        %s1714 = sadd.s32 %s25, %s26
        %p1715 = scmp.lt.s32.totalorder %s1714, 1
        %s1716 = scalar_select %p1715, %s1714, 1
        %s1717 = scalar_lea.vmem %s7, %s1716
      $region68: #{down_forward.3} parent=55 // pred_fallthru
        _
    $region56: #{down_forward.3} parent=5 // pred_fallthru
      _
  $region6: #{down_forward.3} parent=0 // loop_footer
    %s18 = sadd.s32 1, %s14
  $region7: #{down_forward.3} parent=0 // loop_footer_branch
    %13 = sbr.rel target = $region3
  $region8: #{down_forward.3} parent=0 // loop_exit
    _

// kernel: down_forward.4
$region0: #{down_forward.4}
  #allocation0 [shape = 'u32[]', space=smem, size = 0x4, offset = 0x4, fixed_abs, tag = 'smem constant byte address 0x4 - core index']
  #allocation1 [shape = 'u32[144,128]{1,0:T(1,128)}', space=vmem, size = 0x12000, scoped, tag = 'internal scratch']
  %s0 = inlined_call_operand.vmem [shape: f32[2,10,10,128], index: 0, kind: input, shape index: {}]
  %s1 = inlined_call_operand.vmem [shape: f32[1,128], index: 1, kind: input, shape index: {}]
  %s2 = inlined_call_operand.vmem [shape: f32[1,128], index: 2, kind: input, shape index: {}]
  %s3 = inlined_call_operand.vmem [shape: f32[9,128,128], index: 3, kind: input, shape index: {}]
  %s4 = inlined_call_operand.vmem [shape: f32[128,128], index: 4, kind: output, shape index: {0}]
  %s5 = inlined_call_operand.vmem [shape: f32[2,1,128], index: 5, kind: output, shape index: {1}]
  %s6 = inlined_call_operand.vmem [shape: f32[2,1,128], index: 6, kind: output, shape index: {2}]
  %7 = xla_tuple %s4, %s5, %s6
  %s8 = sld [smem:[#allocation0]]
  $region65: #{down_forward.4} parent=0
    _
  %s10 = ssub.s32 1, %s8
  %s11 = scalar_select 0, %s10, %s8
  loop: start=0, step=1, limit=4
  $region2: #{down_forward.4} parent=0 // loop_pre_header
    _
  $region3: #{down_forward.4} parent=0 // loop_header
    %s13 = sphi 0, %s17
    %p14 = scmp.ge.s32.totalorder %s13, 4
    %s20 = sphi 0, %s32
    %s21 = sphi 0, %s28
    %s22 = sphi 0, %s20
    %s23 = sphi 0, %s21
    %s24 = sphi 0, %s22
    %s25 = sphi 0, %s23
    %s35 = sphi 0, %s37
    %s38 = sphi 0, %s35
    %s39 = sphi 0, %s38
    %s55 = sphi 0, %s39
    %s59 = sphi 0, %s59
    %s61 = sphi 0, %s59
    %s62 = sphi 0, %s61
    %s76 = sphi 0, %s62
    %s80 = sphi 0, %s80
    %s82 = sphi 0, %s80
    %s83 = sphi 0, %s82
    %s97 = sphi 0, %s83
    %s101 = sphi 0, %s101
    %s103 = sphi 0, %s101
    %s104 = sphi 0, %s103
    %s118 = sphi 0, %s104
    %s126 = sphi 0, %s128
    %s129 = sphi 0, %s126
    %s130 = sphi 0, %s129
    %s146 = sphi 0, %s130
    %s154 = sphi 0, %s156
    %s157 = sphi 0, %s154
    %s158 = sphi 0, %s157
    %s174 = sphi 0, %s158
    %s182 = sphi 0, %s184
    %s185 = sphi 0, %s182
    %s186 = sphi 0, %s185
    %s202 = sphi 0, %s186
  $region4: #{down_forward.4} parent=0 // loop_header_branch
    %16 = sbr.rel (%p14) target = $region8
  $region5: #{down_forward.4} parent=0 // loop_body
    %s18 = ssub.s32 %s13, 1
    %s19 = ssub.s32 %s13, 2
    %s26 = sadd.s32 1, %s21
    %p27 = scmp.ge.s32.totalorder %s26, 1
    %s28 = scalar_select %p27, 0, %s26
    %s29 = sadd.s32 1, %s20
    %s30 = scalar_select %p27, %s29, %s20
    %p31 = scmp.ge.s32.totalorder %s30, 2
    %s32 = scalar_select %p31, 0, %s30
    %s33 = ssub.s32 %s20, %s32
    %p34 = scmp.eq.s32.totalorder %s33, 0
    %s36 = sadd.s32 %s35, 1
    %s37 = scalar_select %p34, %s35, %s36
    %p40 = pneg %p34
    %p41 = scmp.eq.s32.totalorder %s13, 1
    %p42 = por %p40, %p41
    %p43 = scmp.ne.s32.totalorder %s35, %s38
    %p44 = scmp.eq.s32.totalorder %s13, 0
    %p45 = por %p43, %p44
    %p46 = scmp.ne.s32.totalorder %s35, %s38
    %p47 = scmp.eq.s32.totalorder %s18, 1
    %p48 = por %p46, %p47
    %p49 = scmp.ne.s32.totalorder %s38, %s39
    %p50 = scmp.eq.s32.totalorder %s18, 0
    %p51 = por %p49, %p50
    %p52 = scmp.ne.s32.totalorder %s38, %s39
    %p53 = scmp.eq.s32.totalorder %s19, 1
    %p54 = por %p52, %p53
    %p56 = scmp.ne.s32.totalorder %s39, %s55
    %p57 = scmp.eq.s32.totalorder %s19, 0
    %p58 = por %p56, %p57
    %s60 = sadd.s32 %s59, 1
    %p63 = scmp.eq.s32.totalorder %s13, 1
    %p64 = scmp.ne.s32.totalorder %s59, %s61
    %p65 = scmp.eq.s32.totalorder %s13, 0
    %p66 = por %p64, %p65
    %p67 = scmp.ne.s32.totalorder %s59, %s61
    %p68 = scmp.eq.s32.totalorder %s18, 1
    %p69 = por %p67, %p68
    %p70 = scmp.ne.s32.totalorder %s61, %s62
    %p71 = scmp.eq.s32.totalorder %s18, 0
    %p72 = por %p70, %p71
    %p73 = scmp.ne.s32.totalorder %s61, %s62
    %p74 = scmp.eq.s32.totalorder %s19, 1
    %p75 = por %p73, %p74
    %p77 = scmp.ne.s32.totalorder %s62, %s76
    %p78 = scmp.eq.s32.totalorder %s19, 0
    %p79 = por %p77, %p78
    %s81 = sadd.s32 %s80, 1
    %p84 = scmp.eq.s32.totalorder %s13, 1
    %p85 = scmp.ne.s32.totalorder %s80, %s82
    %p86 = scmp.eq.s32.totalorder %s13, 0
    %p87 = por %p85, %p86
    %p88 = scmp.ne.s32.totalorder %s80, %s82
    %p89 = scmp.eq.s32.totalorder %s18, 1
    %p90 = por %p88, %p89
    %p91 = scmp.ne.s32.totalorder %s82, %s83
    %p92 = scmp.eq.s32.totalorder %s18, 0
    %p93 = por %p91, %p92
    %p94 = scmp.ne.s32.totalorder %s82, %s83
    %p95 = scmp.eq.s32.totalorder %s19, 1
    %p96 = por %p94, %p95
    %p98 = scmp.ne.s32.totalorder %s83, %s97
    %p99 = scmp.eq.s32.totalorder %s19, 0
    %p100 = por %p98, %p99
    %s102 = sadd.s32 %s101, 1
    %p105 = scmp.eq.s32.totalorder %s13, 1
    %p106 = scmp.ne.s32.totalorder %s101, %s103
    %p107 = scmp.eq.s32.totalorder %s13, 0
    %p108 = por %p106, %p107
    %p109 = scmp.ne.s32.totalorder %s101, %s103
    %p110 = scmp.eq.s32.totalorder %s18, 1
    %p111 = por %p109, %p110
    %p112 = scmp.ne.s32.totalorder %s103, %s104
    %p113 = scmp.eq.s32.totalorder %s18, 0
    %p114 = por %p112, %p113
    %p115 = scmp.ne.s32.totalorder %s103, %s104
    %p116 = scmp.eq.s32.totalorder %s19, 1
    %p117 = por %p115, %p116
    %p119 = scmp.ne.s32.totalorder %s104, %s118
    %p120 = scmp.eq.s32.totalorder %s19, 0
    %p121 = por %p119, %p120
    %s122 = sadd.s32 %s20, %s21
    %s123 = sadd.s32 %s32, %s28
    %s124 = ssub.s32 %s122, %s123
    %p125 = scmp.eq.s32.totalorder %s124, 0
    %s127 = sadd.s32 %s126, 1
    %s128 = scalar_select %p125, %s126, %s127
    %p131 = pneg %p125
    %p132 = scmp.eq.s32.totalorder %s13, 1
    %p133 = por %p131, %p132
    %p134 = scmp.ne.s32.totalorder %s126, %s129
    %p135 = scmp.eq.s32.totalorder %s13, 0
    %p136 = por %p134, %p135
    %p137 = scmp.ne.s32.totalorder %s126, %s129
    %p138 = scmp.eq.s32.totalorder %s18, 1
    %p139 = por %p137, %p138
    %p140 = scmp.ne.s32.totalorder %s129, %s130
    %p141 = scmp.eq.s32.totalorder %s18, 0
    %p142 = por %p140, %p141
    %p143 = scmp.ne.s32.totalorder %s129, %s130
    %p144 = scmp.eq.s32.totalorder %s19, 1
    %p145 = por %p143, %p144
    %p147 = scmp.ne.s32.totalorder %s130, %s146
    %p148 = scmp.eq.s32.totalorder %s19, 0
    %p149 = por %p147, %p148
    %s150 = sadd.s32 %s20, %s21
    %s151 = sadd.s32 %s32, %s28
    %s152 = ssub.s32 %s150, %s151
    %p153 = scmp.eq.s32.totalorder %s152, 0
    %s155 = sadd.s32 %s154, 1
    %s156 = scalar_select %p153, %s154, %s155
    %p159 = pneg %p153
    %p160 = scmp.eq.s32.totalorder %s13, 1
    %p161 = por %p159, %p160
    %p162 = scmp.ne.s32.totalorder %s154, %s157
    %p163 = scmp.eq.s32.totalorder %s13, 0
    %p164 = por %p162, %p163
    %p165 = scmp.ne.s32.totalorder %s154, %s157
    %p166 = scmp.eq.s32.totalorder %s18, 1
    %p167 = por %p165, %p166
    %p168 = scmp.ne.s32.totalorder %s157, %s158
    %p169 = scmp.eq.s32.totalorder %s18, 0
    %p170 = por %p168, %p169
    %p171 = scmp.ne.s32.totalorder %s157, %s158
    %p172 = scmp.eq.s32.totalorder %s19, 1
    %p173 = por %p171, %p172
    %p175 = scmp.ne.s32.totalorder %s158, %s174
    %p176 = scmp.eq.s32.totalorder %s19, 0
    %p177 = por %p175, %p176
    %s178 = sadd.s32 %s20, %s21
    %s179 = sadd.s32 %s32, %s28
    %s180 = ssub.s32 %s178, %s179
    %p181 = scmp.eq.s32.totalorder %s180, 0
    %s183 = sadd.s32 %s182, 1
    %s184 = scalar_select %p181, %s182, %s183
    %p187 = pneg %p181
    %p188 = scmp.eq.s32.totalorder %s13, 1
    %p189 = por %p187, %p188
    %p190 = scmp.ne.s32.totalorder %s182, %s185
    %p191 = scmp.eq.s32.totalorder %s13, 0
    %p192 = por %p190, %p191
    %p193 = scmp.ne.s32.totalorder %s182, %s185
    %p194 = scmp.eq.s32.totalorder %s18, 1
    %p195 = por %p193, %p194
    %p196 = scmp.ne.s32.totalorder %s185, %s186
    %p197 = scmp.eq.s32.totalorder %s18, 0
    %p198 = por %p196, %p197
    %p199 = scmp.ne.s32.totalorder %s185, %s186
    %p200 = scmp.eq.s32.totalorder %s19, 1
    %p201 = por %p199, %p200
    %p203 = scmp.ne.s32.totalorder %s186, %s202
    %p204 = scmp.eq.s32.totalorder %s19, 0
    %p205 = por %p203, %p204
    %p206 = scmp.le.s32.totalorder 1, %s13
    %p207 = scmp.lt.s32.totalorder %s13, 3
    %p208 = pnand %p206, %p207
    %p209 = pneg %p208
    // Predicated region
    $region9: #{down_forward.4} parent=5 // pred_check
      _
    $region10: #{down_forward.4} parent=5 // pred_check_branch
      %211 = sbr.rel (%p208) target = $region12
    $region11: #{down_forward.4} parent=5 // pred_region
      %s212 = ssub.s32 %s13, 1
      // Predicated region
      $region13: #{down_forward.4} parent=11 // pred_check
        %p213 = pneg %p72
      $region14: #{down_forward.4} parent=11 // pred_check_branch
        %215 = sbr.rel (%p213) target = $region16
      $region15: #{down_forward.4} parent=11 // pred_region
        _
      $region16: #{down_forward.4} parent=11 // pred_fallthru
        _
      // Predicated region
      $region17: #{down_forward.4} parent=11 // pred_check
        %p216 = pneg %p93
      $region18: #{down_forward.4} parent=11 // pred_check_branch
        %218 = sbr.rel (%p216) target = $region20
      $region19: #{down_forward.4} parent=11 // pred_region
        _
      $region20: #{down_forward.4} parent=11 // pred_fallthru
        _
      // Predicated region
      $region21: #{down_forward.4} parent=11 // pred_check
        %p219 = pneg %p114
      $region22: #{down_forward.4} parent=11 // pred_check_branch
        %221 = sbr.rel (%p219) target = $region24
      $region23: #{down_forward.4} parent=11 // pred_region
        _
      $region24: #{down_forward.4} parent=11 // pred_fallthru
        _
    $region12: #{down_forward.4} parent=5 // pred_fallthru
      _
    %p222 = scmp.lt.s32.totalorder %s13, 2
    // Predicated region
    $region25: #{down_forward.4} parent=5 // pred_check
      %p223 = pneg %p222
    $region26: #{down_forward.4} parent=5 // pred_check_branch
      %225 = sbr.rel (%p223) target = $region28
    $region27: #{down_forward.4} parent=5 // pred_region
      // Predicated region
      $region29: #{down_forward.4} parent=27 // pred_check
        %p226 = pneg %p45
      $region30: #{down_forward.4} parent=27 // pred_check_branch
        %228 = sbr.rel (%p226) target = $region32
      $region31: #{down_forward.4} parent=27 // pred_region
        %p229 = scmp.lt.s32.totalorder %s20, 1
        %s230 = scalar_select %p229, %s20, 1
        %s231 = smul.addr %s230, 20
        %s232 = smul.addr %s231, 8
        %s233 = scalar_lea.vmem %s0, %s232
      $region32: #{down_forward.4} parent=27 // pred_fallthru
        _
    $region28: #{down_forward.4} parent=5 // pred_fallthru
      _
    %p234 = scmp.le.s32.totalorder 1, %s13
    %p235 = scmp.lt.s32.totalorder %s13, 3
    %p236 = pnand %p234, %p235
    %p237 = pneg %p236
    // Predicated region
    $region33: #{down_forward.4} parent=5 // pred_check
      _
    $region34: #{down_forward.4} parent=5 // pred_check_branch
      %239 = sbr.rel (%p236) target = $region36
    $region35: #{down_forward.4} parent=5 // pred_region
      %s240 = ssub.s32 %s13, 1
      %p241 = scmp.lt.s32.totalorder %s22, 1
      %s242 = scalar_select %p241, %s22, 1
      %s243 = smul.addr %s242, 20
      %s244 = smul.addr %s243, 8
      %s245 = scalar_lea.vmem %s0, %s244
      %p246 = pneg %p51
      %p247 = pneg %p48
      %p248 = pneg %p72
      %p249 = pneg %p69
      %p250 = pneg %p93
      %p251 = pneg %p90
      %p252 = pneg %p114
      %p253 = pneg %p111
      %p254 = pneg %p142
      %p255 = pneg %p139
      %s256 = sadd.s32 %s22, %s23
      %s257 = smul.u32 8, %s256
      %p258 = scmp.lt.s32.totalorder %s257, 15
      %s259 = scalar_select %p258, %s257, 15
      %s260 = smul.addr %s259, 8
      %s261 = scalar_lea.vmem %s4, %s260
      %p262 = pneg %p170
      %p263 = pneg %p167
      %s264 = sadd.s32 %s22, %s23
      %p265 = scmp.lt.s32.totalorder %s264, 1
      %s266 = scalar_select %p265, %s264, 1
      %s267 = scalar_lea.vmem %s5, %s266
      %p268 = pneg %p198
      %p269 = pneg %p195
      %s270 = sadd.s32 %s22, %s23
      %p271 = scmp.lt.s32.totalorder %s270, 1
      %s272 = scalar_select %p271, %s270, 1
      %s273 = scalar_lea.vmem %s6, %s272
      %p274 = scmp.lt.s32.totalorder %s22, 1
      %s275 = scalar_select %p274, %s22, 1
      %s276 = smul.addr %s275, 20
      %s277 = smul.addr %s276, 8
      %s278 = scalar_lea.vmem %s0, %s277
      %s279 = sadd.s32 %s22, %s23
      %s280 = smul.u32 8, %s279
      %p281 = scmp.lt.s32.totalorder %s280, 15
      %s282 = scalar_select %p281, %s280, 15
      %s283 = smul.addr %s282, 8
      %s284 = scalar_lea.vmem %s4, %s283
      %s285 = sadd.s32 %s22, %s23
      %s286 = smul.u32 8, %s285
      %s287 = sadd.s32 %s22, %s23
      %p288 = scmp.lt.s32.totalorder %s287, 1
      %s289 = scalar_select %p288, %s287, 1
      %s290 = scalar_lea.vmem %s5, %s289
      %s291 = sadd.s32 %s22, %s23
      %s292 = sadd.s32 %s22, %s23
      %p293 = scmp.lt.s32.totalorder %s292, 1
      %s294 = scalar_select %p293, %s292, 1
      %s295 = scalar_lea.vmem %s6, %s294
      %s296 = sadd.s32 %s22, %s23
      %s297 = smul.u32 %s23, 8
      %v298 = vld [vmem:[%s1] sm:$0x1]
      %v299 = vld [vmem:[%s2] sm:$0x1]
      %s300 = smul.u32 %s297, 16
      %s301 = scalar_lea.vmem %s278, %s300
      %v302 = vld [vmem:[%s301] sm:$0xff]
      %v303 = vld [vmem:[%s301 + $0x10] sm:$0xff]
      %v304 = vld [vmem:[%s301 + $0x20] sm:$0xff]
      %v305 = vld [vmem:[%s301 + $0x30] sm:$0xff]
      %v306 = vld [vmem:[%s301 + $0x40] sm:$0xff]
      %v307 = vld [vmem:[%s301 + $0x50] sm:$0xff]
      %v308 = vld [vmem:[%s301 + $0x60] sm:$0xff]
      %v309 = vld [vmem:[%s301 + $0x70] sm:$0xff]
      %v311 = vlaneseq
      %v312 = vshrl.u32 %v311, 7
      %v313 = vsub.s32 0, %v312
      %v314 = vrot.slane %v298, %v313
      %v316 = vmul.f32 %v302, %v314
      %v317 = vmul.f32 %v303, %v314
      %v318 = vmul.f32 %v304, %v314
      %v319 = vmul.f32 %v305, %v314
      %v320 = vmul.f32 %v306, %v314
      %v321 = vmul.f32 %v307, %v314
      %v322 = vmul.f32 %v308, %v314
      %v323 = vmul.f32 %v309, %v314
      %v325 = vlaneseq
      %v326 = vshrl.u32 %v325, 7
      %v327 = vsub.s32 0, %v326
      %v328 = vrot.slane %v299, %v327
      %v330 = vadd.f32 %v316, %v328
      %v331 = vadd.f32 %v317, %v328
      %v332 = vadd.f32 %v318, %v328
      %v333 = vadd.f32 %v319, %v328
      %v334 = vadd.f32 %v320, %v328
      %v335 = vadd.f32 %v321, %v328
      %v336 = vadd.f32 %v322, %v328
      %v337 = vadd.f32 %v323, %v328
      %vm338 = vcmp.ge.f32.partialorder %v330, 0.0
      %vm339 = vcmp.ge.f32.partialorder %v331, 0.0
      %vm340 = vcmp.ge.f32.partialorder %v332, 0.0
      %vm341 = vcmp.ge.f32.partialorder %v333, 0.0
      %vm342 = vcmp.ge.f32.partialorder %v334, 0.0
      %vm343 = vcmp.ge.f32.partialorder %v335, 0.0
      %vm344 = vcmp.ge.f32.partialorder %v336, 0.0
      %vm345 = vcmp.ge.f32.partialorder %v337, 0.0
      %v346 = vmul.f32 %v330, 0.2
      %v347 = vmul.f32 %v331, 0.2
      %v348 = vmul.f32 %v332, 0.2
      %v349 = vmul.f32 %v333, 0.2
      %v350 = vmul.f32 %v334, 0.2
      %v351 = vmul.f32 %v335, 0.2
      %v352 = vmul.f32 %v336, 0.2
      %v353 = vmul.f32 %v337, 0.2
      %v354 = vsel %vm338, %v330, %v346
      %v355 = vsel %vm339, %v331, %v347
      %v356 = vsel %vm340, %v332, %v348
      %v357 = vsel %vm341, %v333, %v349
      %v358 = vsel %vm342, %v334, %v350
      %v359 = vsel %vm343, %v335, %v351
      %v360 = vsel %vm344, %v336, %v352
      %v361 = vsel %vm345, %v337, %v353
      %v362 = vld [vmem:[%s3] sm:$0xff]
      %v363 = vld [vmem:[%s3 + $0x8] sm:$0xff]
      %v364 = vld [vmem:[%s3 + $0x10] sm:$0xff]
      %v365 = vld [vmem:[%s3 + $0x18] sm:$0xff]
      %v366 = vld [vmem:[%s3 + $0x20] sm:$0xff]
      %v367 = vld [vmem:[%s3 + $0x28] sm:$0xff]
      %v368 = vld [vmem:[%s3 + $0x30] sm:$0xff]
      %v369 = vld [vmem:[%s3 + $0x38] sm:$0xff]
      %v370 = vld [vmem:[%s3 + $0x40] sm:$0xff]
      %v371 = vld [vmem:[%s3 + $0x48] sm:$0xff]
      %v372 = vld [vmem:[%s3 + $0x50] sm:$0xff]
      %v373 = vld [vmem:[%s3 + $0x58] sm:$0xff]
      %v374 = vld [vmem:[%s3 + $0x60] sm:$0xff]
      %v375 = vld [vmem:[%s3 + $0x68] sm:$0xff]
      %v376 = vld [vmem:[%s3 + $0x70] sm:$0xff]
      %v377 = vld [vmem:[%s3 + $0x78] sm:$0xff]
      %v378 = vld [vmem:[%s301 + $0x1] sm:$0xff]
      %v379 = vld [vmem:[%s301 + $0x11] sm:$0xff]
      %v380 = vld [vmem:[%s301 + $0x21] sm:$0xff]
      %v381 = vld [vmem:[%s301 + $0x31] sm:$0xff]
      %v382 = vld [vmem:[%s301 + $0x41] sm:$0xff]
      %v383 = vld [vmem:[%s301 + $0x51] sm:$0xff]
      %v384 = vld [vmem:[%s301 + $0x61] sm:$0xff]
      %v385 = vld [vmem:[%s301 + $0x71] sm:$0xff]
      %v386 = vmul.f32 %v378, %v314
      %v387 = vmul.f32 %v379, %v314
      %v388 = vmul.f32 %v380, %v314
      %v389 = vmul.f32 %v381, %v314
      %v390 = vmul.f32 %v382, %v314
      %v391 = vmul.f32 %v383, %v314
      %v392 = vmul.f32 %v384, %v314
      %v393 = vmul.f32 %v385, %v314
      %v394 = vadd.f32 %v386, %v328
      %v395 = vadd.f32 %v387, %v328
      %v396 = vadd.f32 %v388, %v328
      %v397 = vadd.f32 %v389, %v328
      %v398 = vadd.f32 %v390, %v328
      %v399 = vadd.f32 %v391, %v328
      %v400 = vadd.f32 %v392, %v328
      %v401 = vadd.f32 %v393, %v328
      %vm402 = vcmp.ge.f32.partialorder %v394, 0.0
      %vm403 = vcmp.ge.f32.partialorder %v395, 0.0
      %vm404 = vcmp.ge.f32.partialorder %v396, 0.0
      %vm405 = vcmp.ge.f32.partialorder %v397, 0.0
      %vm406 = vcmp.ge.f32.partialorder %v398, 0.0
      %vm407 = vcmp.ge.f32.partialorder %v399, 0.0
      %vm408 = vcmp.ge.f32.partialorder %v400, 0.0
      %vm409 = vcmp.ge.f32.partialorder %v401, 0.0
      %v410 = vmul.f32 %v394, 0.2
      %v411 = vmul.f32 %v395, 0.2
      %v412 = vmul.f32 %v396, 0.2
      %v413 = vmul.f32 %v397, 0.2
      %v414 = vmul.f32 %v398, 0.2
      %v415 = vmul.f32 %v399, 0.2
      %v416 = vmul.f32 %v400, 0.2
      %v417 = vmul.f32 %v401, 0.2
      %v418 = vsel %vm402, %v394, %v410
      %v419 = vsel %vm403, %v395, %v411
      %v420 = vsel %vm404, %v396, %v412
      %v421 = vsel %vm405, %v397, %v413
      %v422 = vsel %vm406, %v398, %v414
      %v423 = vsel %vm407, %v399, %v415
      %v424 = vsel %vm408, %v400, %v416
      %v425 = vsel %vm409, %v401, %v417
      %s426 = scalar_lea.vmem %s3, 128
      %v427 = vld [vmem:[%s426] sm:$0xff]
      %v428 = vld [vmem:[%s426 + $0x8] sm:$0xff]
      %v429 = vld [vmem:[%s426 + $0x10] sm:$0xff]
      %v430 = vld [vmem:[%s426 + $0x18] sm:$0xff]
      %v431 = vld [vmem:[%s426 + $0x20] sm:$0xff]
      %v432 = vld [vmem:[%s426 + $0x28] sm:$0xff]
      %v433 = vld [vmem:[%s426 + $0x30] sm:$0xff]
      %v434 = vld [vmem:[%s426 + $0x38] sm:$0xff]
      %v435 = vld [vmem:[%s426 + $0x40] sm:$0xff]
      %v436 = vld [vmem:[%s426 + $0x48] sm:$0xff]
      %v437 = vld [vmem:[%s426 + $0x50] sm:$0xff]
      %v438 = vld [vmem:[%s426 + $0x58] sm:$0xff]
      %v439 = vld [vmem:[%s426 + $0x60] sm:$0xff]
      %v440 = vld [vmem:[%s426 + $0x68] sm:$0xff]
      %v441 = vld [vmem:[%s426 + $0x70] sm:$0xff]
      %v442 = vld [vmem:[%s426 + $0x78] sm:$0xff]
      %443 = vmatprep.subr.mxu0 0.0
      %444 = vmatpush1.msra.mxu0 %v442
      %445 = vmatprep.subr.mxu0 0.0
      %446 = vmatpush1.msra.mxu0 %v441
      %447 = vmatprep.subr.mxu0 0.0
      %448 = vmatpush1.msra.mxu0 %v440
      %449 = vmatprep.subr.mxu0 0.0
      %450 = vmatpush1.msra.mxu0 %v439
      %451 = vmatprep.subr.mxu0 0.0
      %452 = vmatpush1.msra.mxu0 %v438
      %453 = vmatprep.subr.mxu0 0.0
      %454 = vmatpush1.msra.mxu0 %v437
      %455 = vmatprep.subr.mxu0 0.0
      %456 = vmatpush1.msra.mxu0 %v436
      %457 = vmatprep.subr.mxu0 0.0
      %458 = vmatpush1.msra.mxu0 %v435
      %459 = vmatprep.subr.mxu0 0.0
      %460 = vmatpush1.msra.mxu0 %v434
      %461 = vmatprep.subr.mxu0 0.0
      %462 = vmatpush1.msra.mxu0 %v433
      %463 = vmatprep.subr.mxu0 0.0
      %464 = vmatpush1.msra.mxu0 %v432
      %465 = vmatprep.subr.mxu0 0.0
      %466 = vmatpush1.msra.mxu0 %v431
      %467 = vmatprep.subr.mxu0 0.0
      %468 = vmatpush1.msra.mxu0 %v430
      %469 = vmatprep.subr.mxu0 0.0
      %470 = vmatpush1.msra.mxu0 %v429
      %471 = vmatprep.subr.mxu0 0.0
      %472 = vmatpush1.msra.mxu0 %v428
      %473 = vmatprep.subr.mxu0 0.0
      %474 = vmatpush1.msra.mxu0 %v427
      %475 = vmatprep.subr.mxu0 0.0
      %476 = vmatpush2.msra.mxu0 0.0
      %477 = vmatprep.subr.mxu0 0.0
      %478 = vmatpush2.msra.mxu0 0.0
      %479 = vmatprep.subr.mxu0 0.0
      %480 = vmatpush2.msra.mxu0 0.0
      %481 = vmatprep.subr.mxu0 0.0
      %482 = vmatpush2.msra.mxu0 0.0
      %483 = vmatprep.subr.mxu0 0.0
      %484 = vmatpush2.msra.mxu0 0.0
      %485 = vmatprep.subr.mxu0 0.0
      %486 = vmatpush2.msra.mxu0 0.0
      %487 = vmatprep.subr.mxu0 0.0
      %488 = vmatpush2.msra.mxu0 0.0
      %489 = vmatprep.subr.mxu0 0.0
      %490 = vmatpush2.msra.mxu0 0.0
      %491 = vmatprep.subr.mxu0 0.0
      %492 = vmatpush2.msra.mxu0 0.0
      %493 = vmatprep.subr.mxu0 0.0
      %494 = vmatpush2.msra.mxu0 0.0
      %495 = vmatprep.subr.mxu0 0.0
      %496 = vmatpush2.msra.mxu0 0.0
      %497 = vmatprep.subr.mxu0 0.0
      %498 = vmatpush2.msra.mxu0 0.0
      %499 = vmatprep.subr.mxu0 0.0
      %500 = vmatpush2.msra.mxu0 0.0
      %501 = vmatprep.subr.mxu0 0.0
      %502 = vmatpush2.msra.mxu0 0.0
      %503 = vmatprep.subr.mxu0 0.0
      %504 = vmatpush2.msra.mxu0 0.0
      %505 = vmatprep.subr.mxu0 0.0
      %506 = vmatpush2.msra.mxu0 0.0
      %507 = vmatprep.mubr.f32.mxu0 0.0
      %508 = vmatmul.mubr.f32.gmra.mxu0 %v418
      %v509 = vpop.f32.mrf.mxu0
      %v510 = vadd.f32 0.0, %v509
      %v511 = vpop.f32.mrf.mxu0
      %512 = vmatprep.mubr.f32.mxu0 0.0
      %513 = vmatmul.mubr.f32.gmra.mxu0 %v419
      %v514 = vpop.f32.mrf.mxu0
      %v515 = vadd.f32 0.0, %v514
      %v516 = vpop.f32.mrf.mxu0
      %517 = vmatprep.mubr.f32.mxu0 0.0
      %518 = vmatmul.mubr.f32.gmra.mxu0 %v420
      %v519 = vpop.f32.mrf.mxu0
      %v520 = vadd.f32 0.0, %v519
      %v521 = vpop.f32.mrf.mxu0
      %522 = vmatprep.mubr.f32.mxu0 0.0
      %523 = vmatmul.mubr.f32.gmra.mxu0 %v421
      %v524 = vpop.f32.mrf.mxu0
      %v525 = vadd.f32 0.0, %v524
      %v526 = vpop.f32.mrf.mxu0
      %527 = vmatprep.mubr.f32.mxu0 0.0
      %528 = vmatmul.mubr.f32.gmra.mxu0 %v422
      %v529 = vpop.f32.mrf.mxu0
      %v530 = vadd.f32 0.0, %v529
      %v531 = vpop.f32.mrf.mxu0
      %532 = vmatprep.mubr.f32.mxu0 0.0
      %533 = vmatmul.mubr.f32.gmra.mxu0 %v423
      %v534 = vpop.f32.mrf.mxu0
      %v535 = vadd.f32 0.0, %v534
      %v536 = vpop.f32.mrf.mxu0
      %537 = vmatprep.mubr.f32.mxu0 0.0
      %538 = vmatmul.mubr.f32.gmra.mxu0 %v424
      %v539 = vpop.f32.mrf.mxu0
      %v540 = vadd.f32 0.0, %v539
      %v541 = vpop.f32.mrf.mxu0
      %542 = vmatprep.mubr.f32.mxu0 0.0
      %543 = vmatmul.mubr.f32.gmra.mxu0 %v425
      %v544 = vpop.f32.mrf.mxu0
      %v545 = vadd.f32 0.0, %v544
      %v546 = vpop.f32.mrf.mxu0
      %547 = vdwg.mxu0
      %548 = vmatprep.subr.mxu0 0.0
      %549 = vmatpush1.msra.mxu0 %v377
      %550 = vmatprep.subr.mxu0 0.0
      %551 = vmatpush1.msra.mxu0 %v376
      %552 = vmatprep.subr.mxu0 0.0
      %553 = vmatpush1.msra.mxu0 %v375
      %554 = vmatprep.subr.mxu0 0.0
      %555 = vmatpush1.msra.mxu0 %v374
      %556 = vmatprep.subr.mxu0 0.0
      %557 = vmatpush1.msra.mxu0 %v373
      %558 = vmatprep.subr.mxu0 0.0
      %559 = vmatpush1.msra.mxu0 %v372
      %560 = vmatprep.subr.mxu0 0.0
      %561 = vmatpush1.msra.mxu0 %v371
      %562 = vmatprep.subr.mxu0 0.0
      %563 = vmatpush1.msra.mxu0 %v370
      %564 = vmatprep.subr.mxu0 0.0
      %565 = vmatpush1.msra.mxu0 %v369
      %566 = vmatprep.subr.mxu0 0.0
      %567 = vmatpush1.msra.mxu0 %v368
      %568 = vmatprep.subr.mxu0 0.0
      %569 = vmatpush1.msra.mxu0 %v367
      %570 = vmatprep.subr.mxu0 0.0
      %571 = vmatpush1.msra.mxu0 %v366
      %572 = vmatprep.subr.mxu0 0.0
      %573 = vmatpush1.msra.mxu0 %v365
      %574 = vmatprep.subr.mxu0 0.0
      %575 = vmatpush1.msra.mxu0 %v364
      %576 = vmatprep.subr.mxu0 0.0
      %577 = vmatpush1.msra.mxu0 %v363
      %578 = vmatprep.subr.mxu0 0.0
      %579 = vmatpush1.msra.mxu0 %v362
      %580 = vmatprep.subr.mxu0 0.0
      %581 = vmatpush2.msra.mxu0 0.0
      %582 = vmatprep.subr.mxu0 0.0
      %583 = vmatpush2.msra.mxu0 0.0
      %584 = vmatprep.subr.mxu0 0.0
      %585 = vmatpush2.msra.mxu0 0.0
      %586 = vmatprep.subr.mxu0 0.0
      %587 = vmatpush2.msra.mxu0 0.0
      %588 = vmatprep.subr.mxu0 0.0
      %589 = vmatpush2.msra.mxu0 0.0
      %590 = vmatprep.subr.mxu0 0.0
      %591 = vmatpush2.msra.mxu0 0.0
      %592 = vmatprep.subr.mxu0 0.0
      %593 = vmatpush2.msra.mxu0 0.0
      %594 = vmatprep.subr.mxu0 0.0
      %595 = vmatpush2.msra.mxu0 0.0
      %596 = vmatprep.subr.mxu0 0.0
      %597 = vmatpush2.msra.mxu0 0.0
      %598 = vmatprep.subr.mxu0 0.0
      %599 = vmatpush2.msra.mxu0 0.0
      %600 = vmatprep.subr.mxu0 0.0
      %601 = vmatpush2.msra.mxu0 0.0
      %602 = vmatprep.subr.mxu0 0.0
      %603 = vmatpush2.msra.mxu0 0.0
      %604 = vmatprep.subr.mxu0 0.0
      %605 = vmatpush2.msra.mxu0 0.0
      %606 = vmatprep.subr.mxu0 0.0
      %607 = vmatpush2.msra.mxu0 0.0
      %608 = vmatprep.subr.mxu0 0.0
      %609 = vmatpush2.msra.mxu0 0.0
      %610 = vmatprep.subr.mxu0 0.0
      %611 = vmatpush2.msra.mxu0 0.0
      %612 = vmatprep.mubr.f32.mxu0 0.0
      %613 = vmatmul.mubr.f32.gmra.mxu0 %v354
      %v614 = vpop.f32.mrf.mxu0
      %v615 = vadd.f32 %v510, %v614
      %v616 = vpop.f32.mrf.mxu0
      %617 = vmatprep.mubr.f32.mxu0 0.0
      %618 = vmatmul.mubr.f32.gmra.mxu0 %v355
      %v619 = vpop.f32.mrf.mxu0
      %v620 = vadd.f32 %v515, %v619
      %v621 = vpop.f32.mrf.mxu0
      %622 = vmatprep.mubr.f32.mxu0 0.0
      %623 = vmatmul.mubr.f32.gmra.mxu0 %v356
      %v624 = vpop.f32.mrf.mxu0
      %v625 = vadd.f32 %v520, %v624
      %v626 = vpop.f32.mrf.mxu0
      %627 = vmatprep.mubr.f32.mxu0 0.0
      %628 = vmatmul.mubr.f32.gmra.mxu0 %v357
      %v629 = vpop.f32.mrf.mxu0
      %v630 = vadd.f32 %v525, %v629
      %v631 = vpop.f32.mrf.mxu0
      %632 = vmatprep.mubr.f32.mxu0 0.0
      %633 = vmatmul.mubr.f32.gmra.mxu0 %v358
      %v634 = vpop.f32.mrf.mxu0
      %v635 = vadd.f32 %v530, %v634
      %v636 = vpop.f32.mrf.mxu0
      %637 = vmatprep.mubr.f32.mxu0 0.0
      %638 = vmatmul.mubr.f32.gmra.mxu0 %v359
      %v639 = vpop.f32.mrf.mxu0
      %v640 = vadd.f32 %v535, %v639
      %v641 = vpop.f32.mrf.mxu0
      %642 = vmatprep.mubr.f32.mxu0 0.0
      %643 = vmatmul.mubr.f32.gmra.mxu0 %v360
      %v644 = vpop.f32.mrf.mxu0
      %v645 = vadd.f32 %v540, %v644
      %v646 = vpop.f32.mrf.mxu0
      %647 = vmatprep.mubr.f32.mxu0 0.0
      %648 = vmatmul.mubr.f32.gmra.mxu0 %v361
      %v649 = vpop.f32.mrf.mxu0
      %v650 = vadd.f32 %v545, %v649
      %v651 = vpop.f32.mrf.mxu0
      %652 = vdwg.mxu0
      %v653 = vld [vmem:[%s301 + $0x2] sm:$0xff]
      %v654 = vld [vmem:[%s301 + $0x12] sm:$0xff]
      %v655 = vld [vmem:[%s301 + $0x22] sm:$0xff]
      %v656 = vld [vmem:[%s301 + $0x32] sm:$0xff]
      %v657 = vld [vmem:[%s301 + $0x42] sm:$0xff]
      %v658 = vld [vmem:[%s301 + $0x52] sm:$0xff]
      %v659 = vld [vmem:[%s301 + $0x62] sm:$0xff]
      %v660 = vld [vmem:[%s301 + $0x72] sm:$0xff]
      %v661 = vmul.f32 %v653, %v314
      %v662 = vmul.f32 %v654, %v314
      %v663 = vmul.f32 %v655, %v314
      %v664 = vmul.f32 %v656, %v314
      %v665 = vmul.f32 %v657, %v314
      %v666 = vmul.f32 %v658, %v314
      %v667 = vmul.f32 %v659, %v314
      %v668 = vmul.f32 %v660, %v314
      %v669 = vadd.f32 %v661, %v328
      %v670 = vadd.f32 %v662, %v328
      %v671 = vadd.f32 %v663, %v328
      %v672 = vadd.f32 %v664, %v328
      %v673 = vadd.f32 %v665, %v328
      %v674 = vadd.f32 %v666, %v328
      %v675 = vadd.f32 %v667, %v328
      %v676 = vadd.f32 %v668, %v328
      %vm677 = vcmp.ge.f32.partialorder %v669, 0.0
      %vm678 = vcmp.ge.f32.partialorder %v670, 0.0
      %vm679 = vcmp.ge.f32.partialorder %v671, 0.0
      %vm680 = vcmp.ge.f32.partialorder %v672, 0.0
      %vm681 = vcmp.ge.f32.partialorder %v673, 0.0
      %vm682 = vcmp.ge.f32.partialorder %v674, 0.0
      %vm683 = vcmp.ge.f32.partialorder %v675, 0.0
      %vm684 = vcmp.ge.f32.partialorder %v676, 0.0
      %v685 = vmul.f32 %v669, 0.2
      %v686 = vmul.f32 %v670, 0.2
      %v687 = vmul.f32 %v671, 0.2
      %v688 = vmul.f32 %v672, 0.2
      %v689 = vmul.f32 %v673, 0.2
      %v690 = vmul.f32 %v674, 0.2
      %v691 = vmul.f32 %v675, 0.2
      %v692 = vmul.f32 %v676, 0.2
      %v693 = vsel %vm677, %v669, %v685
      %v694 = vsel %vm678, %v670, %v686
      %v695 = vsel %vm679, %v671, %v687
      %v696 = vsel %vm680, %v672, %v688
      %v697 = vsel %vm681, %v673, %v689
      %v698 = vsel %vm682, %v674, %v690
      %v699 = vsel %vm683, %v675, %v691
      %v700 = vsel %vm684, %v676, %v692
      %s701 = scalar_lea.vmem %s3, 256
      %v702 = vld [vmem:[%s701] sm:$0xff]
      %v703 = vld [vmem:[%s701 + $0x8] sm:$0xff]
      %v704 = vld [vmem:[%s701 + $0x10] sm:$0xff]
      %v705 = vld [vmem:[%s701 + $0x18] sm:$0xff]
      %v706 = vld [vmem:[%s701 + $0x20] sm:$0xff]
      %v707 = vld [vmem:[%s701 + $0x28] sm:$0xff]
      %v708 = vld [vmem:[%s701 + $0x30] sm:$0xff]
      %v709 = vld [vmem:[%s701 + $0x38] sm:$0xff]
      %v710 = vld [vmem:[%s701 + $0x40] sm:$0xff]
      %v711 = vld [vmem:[%s701 + $0x48] sm:$0xff]
      %v712 = vld [vmem:[%s701 + $0x50] sm:$0xff]
      %v713 = vld [vmem:[%s701 + $0x58] sm:$0xff]
      %v714 = vld [vmem:[%s701 + $0x60] sm:$0xff]
      %v715 = vld [vmem:[%s701 + $0x68] sm:$0xff]
      %v716 = vld [vmem:[%s701 + $0x70] sm:$0xff]
      %v717 = vld [vmem:[%s701 + $0x78] sm:$0xff]
      %718 = vmatprep.subr.mxu0 0.0
      %719 = vmatpush1.msra.mxu0 %v717
      %720 = vmatprep.subr.mxu0 0.0
      %721 = vmatpush1.msra.mxu0 %v716
      %722 = vmatprep.subr.mxu0 0.0
      %723 = vmatpush1.msra.mxu0 %v715
      %724 = vmatprep.subr.mxu0 0.0
      %725 = vmatpush1.msra.mxu0 %v714
      %726 = vmatprep.subr.mxu0 0.0
      %727 = vmatpush1.msra.mxu0 %v713
      %728 = vmatprep.subr.mxu0 0.0
      %729 = vmatpush1.msra.mxu0 %v712
      %730 = vmatprep.subr.mxu0 0.0
      %731 = vmatpush1.msra.mxu0 %v711
      %732 = vmatprep.subr.mxu0 0.0
      %733 = vmatpush1.msra.mxu0 %v710
      %734 = vmatprep.subr.mxu0 0.0
      %735 = vmatpush1.msra.mxu0 %v709
      %736 = vmatprep.subr.mxu0 0.0
      %737 = vmatpush1.msra.mxu0 %v708
      %738 = vmatprep.subr.mxu0 0.0
      %739 = vmatpush1.msra.mxu0 %v707
      %740 = vmatprep.subr.mxu0 0.0
      %741 = vmatpush1.msra.mxu0 %v706
      %742 = vmatprep.subr.mxu0 0.0
      %743 = vmatpush1.msra.mxu0 %v705
      %744 = vmatprep.subr.mxu0 0.0
      %745 = vmatpush1.msra.mxu0 %v704
      %746 = vmatprep.subr.mxu0 0.0
      %747 = vmatpush1.msra.mxu0 %v703
      %748 = vmatprep.subr.mxu0 0.0
      %749 = vmatpush1.msra.mxu0 %v702
      %750 = vmatprep.subr.mxu0 0.0
      %751 = vmatpush2.msra.mxu0 0.0
      %752 = vmatprep.subr.mxu0 0.0
      %753 = vmatpush2.msra.mxu0 0.0
      %754 = vmatprep.subr.mxu0 0.0
      %755 = vmatpush2.msra.mxu0 0.0
      %756 = vmatprep.subr.mxu0 0.0
      %757 = vmatpush2.msra.mxu0 0.0
      %758 = vmatprep.subr.mxu0 0.0
      %759 = vmatpush2.msra.mxu0 0.0
      %760 = vmatprep.subr.mxu0 0.0
      %761 = vmatpush2.msra.mxu0 0.0
      %762 = vmatprep.subr.mxu0 0.0
      %763 = vmatpush2.msra.mxu0 0.0
      %764 = vmatprep.subr.mxu0 0.0
      %765 = vmatpush2.msra.mxu0 0.0
      %766 = vmatprep.subr.mxu0 0.0
      %767 = vmatpush2.msra.mxu0 0.0
      %768 = vmatprep.subr.mxu0 0.0
      %769 = vmatpush2.msra.mxu0 0.0
      %770 = vmatprep.subr.mxu0 0.0
      %771 = vmatpush2.msra.mxu0 0.0
      %772 = vmatprep.subr.mxu0 0.0
      %773 = vmatpush2.msra.mxu0 0.0
      %774 = vmatprep.subr.mxu0 0.0
      %775 = vmatpush2.msra.mxu0 0.0
      %776 = vmatprep.subr.mxu0 0.0
      %777 = vmatpush2.msra.mxu0 0.0
      %778 = vmatprep.subr.mxu0 0.0
      %779 = vmatpush2.msra.mxu0 0.0
      %780 = vmatprep.subr.mxu0 0.0
      %781 = vmatpush2.msra.mxu0 0.0
      %782 = vmatprep.mubr.f32.mxu0 0.0
      %783 = vmatmul.mubr.f32.gmra.mxu0 %v693
      %v784 = vpop.f32.mrf.mxu0
      %v785 = vadd.f32 0.0, %v784
      %v786 = vpop.f32.mrf.mxu0
      %787 = vmatprep.mubr.f32.mxu0 0.0
      %788 = vmatmul.mubr.f32.gmra.mxu0 %v694
      %v789 = vpop.f32.mrf.mxu0
      %v790 = vadd.f32 0.0, %v789
      %v791 = vpop.f32.mrf.mxu0
      %792 = vmatprep.mubr.f32.mxu0 0.0
      %793 = vmatmul.mubr.f32.gmra.mxu0 %v695
      %v794 = vpop.f32.mrf.mxu0
      %v795 = vadd.f32 0.0, %v794
      %v796 = vpop.f32.mrf.mxu0
      %797 = vmatprep.mubr.f32.mxu0 0.0
      %798 = vmatmul.mubr.f32.gmra.mxu0 %v696
      %v799 = vpop.f32.mrf.mxu0
      %v800 = vadd.f32 0.0, %v799
      %v801 = vpop.f32.mrf.mxu0
      %802 = vmatprep.mubr.f32.mxu0 0.0
      %803 = vmatmul.mubr.f32.gmra.mxu0 %v697
      %v804 = vpop.f32.mrf.mxu0
      %v805 = vadd.f32 0.0, %v804
      %v806 = vpop.f32.mrf.mxu0
      %807 = vmatprep.mubr.f32.mxu0 0.0
      %808 = vmatmul.mubr.f32.gmra.mxu0 %v698
      %v809 = vpop.f32.mrf.mxu0
      %v810 = vadd.f32 0.0, %v809
      %v811 = vpop.f32.mrf.mxu0
      %812 = vmatprep.mubr.f32.mxu0 0.0
      %813 = vmatmul.mubr.f32.gmra.mxu0 %v699
      %v814 = vpop.f32.mrf.mxu0
      %v815 = vadd.f32 0.0, %v814
      %v816 = vpop.f32.mrf.mxu0
      %817 = vmatprep.mubr.f32.mxu0 0.0
      %818 = vmatmul.mubr.f32.gmra.mxu0 %v700
      %v819 = vpop.f32.mrf.mxu0
      %v820 = vadd.f32 0.0, %v819
      %v821 = vpop.f32.mrf.mxu0
      %822 = vdwg.mxu0
      %v823 = vadd.f32 %v615, %v785
      %v824 = vadd.f32 %v620, %v790
      %v825 = vadd.f32 %v625, %v795
      %v826 = vadd.f32 %v630, %v800
      %v827 = vadd.f32 %v635, %v805
      %v828 = vadd.f32 %v640, %v810
      %v829 = vadd.f32 %v645, %v815
      %v830 = vadd.f32 %v650, %v820
      %s831 = sadd.s32 %s297, 1
      %s832 = smul.u32 %s831, 16
      %s833 = scalar_lea.vmem %s278, %s832
      %v834 = vld [vmem:[%s833] sm:$0xff]
      %v835 = vld [vmem:[%s833 + $0x10] sm:$0xff]
      %v836 = vld [vmem:[%s833 + $0x20] sm:$0xff]
      %v837 = vld [vmem:[%s833 + $0x30] sm:$0xff]
      %v838 = vld [vmem:[%s833 + $0x40] sm:$0xff]
      %v839 = vld [vmem:[%s833 + $0x50] sm:$0xff]
      %v840 = vld [vmem:[%s833 + $0x60] sm:$0xff]
      %v841 = vld [vmem:[%s833 + $0x70] sm:$0xff]
      %v842 = vmul.f32 %v834, %v314
      %v843 = vmul.f32 %v835, %v314
      %v844 = vmul.f32 %v836, %v314
      %v845 = vmul.f32 %v837, %v314
      %v846 = vmul.f32 %v838, %v314
      %v847 = vmul.f32 %v839, %v314
      %v848 = vmul.f32 %v840, %v314
      %v849 = vmul.f32 %v841, %v314
      %v850 = vadd.f32 %v842, %v328
      %v851 = vadd.f32 %v843, %v328
      %v852 = vadd.f32 %v844, %v328
      %v853 = vadd.f32 %v845, %v328
      %v854 = vadd.f32 %v846, %v328
      %v855 = vadd.f32 %v847, %v328
      %v856 = vadd.f32 %v848, %v328
      %v857 = vadd.f32 %v849, %v328
      %vm858 = vcmp.ge.f32.partialorder %v850, 0.0
      %vm859 = vcmp.ge.f32.partialorder %v851, 0.0
      %vm860 = vcmp.ge.f32.partialorder %v852, 0.0
      %vm861 = vcmp.ge.f32.partialorder %v853, 0.0
      %vm862 = vcmp.ge.f32.partialorder %v854, 0.0
      %vm863 = vcmp.ge.f32.partialorder %v855, 0.0
      %vm864 = vcmp.ge.f32.partialorder %v856, 0.0
      %vm865 = vcmp.ge.f32.partialorder %v857, 0.0
      %v866 = vmul.f32 %v850, 0.2
      %v867 = vmul.f32 %v851, 0.2
      %v868 = vmul.f32 %v852, 0.2
      %v869 = vmul.f32 %v853, 0.2
      %v870 = vmul.f32 %v854, 0.2
      %v871 = vmul.f32 %v855, 0.2
      %v872 = vmul.f32 %v856, 0.2
      %v873 = vmul.f32 %v857, 0.2
      %v874 = vsel %vm858, %v850, %v866
      %v875 = vsel %vm859, %v851, %v867
      %v876 = vsel %vm860, %v852, %v868
      %v877 = vsel %vm861, %v853, %v869
      %v878 = vsel %vm862, %v854, %v870
      %v879 = vsel %vm863, %v855, %v871
      %v880 = vsel %vm864, %v856, %v872
      %v881 = vsel %vm865, %v857, %v873
      %s882 = scalar_lea.vmem %s3, 384
      %v883 = vld [vmem:[%s882] sm:$0xff]
      %v884 = vld [vmem:[%s882 + $0x8] sm:$0xff]
      %v885 = vld [vmem:[%s882 + $0x10] sm:$0xff]
      %v886 = vld [vmem:[%s882 + $0x18] sm:$0xff]
      %v887 = vld [vmem:[%s882 + $0x20] sm:$0xff]
      %v888 = vld [vmem:[%s882 + $0x28] sm:$0xff]
      %v889 = vld [vmem:[%s882 + $0x30] sm:$0xff]
      %v890 = vld [vmem:[%s882 + $0x38] sm:$0xff]
      %v891 = vld [vmem:[%s882 + $0x40] sm:$0xff]
      %v892 = vld [vmem:[%s882 + $0x48] sm:$0xff]
      %v893 = vld [vmem:[%s882 + $0x50] sm:$0xff]
      %v894 = vld [vmem:[%s882 + $0x58] sm:$0xff]
      %v895 = vld [vmem:[%s882 + $0x60] sm:$0xff]
      %v896 = vld [vmem:[%s882 + $0x68] sm:$0xff]
      %v897 = vld [vmem:[%s882 + $0x70] sm:$0xff]
      %v898 = vld [vmem:[%s882 + $0x78] sm:$0xff]
      %899 = vmatprep.subr.mxu0 0.0
      %900 = vmatpush1.msra.mxu0 %v898
      %901 = vmatprep.subr.mxu0 0.0
      %902 = vmatpush1.msra.mxu0 %v897
      %903 = vmatprep.subr.mxu0 0.0
      %904 = vmatpush1.msra.mxu0 %v896
      %905 = vmatprep.subr.mxu0 0.0
      %906 = vmatpush1.msra.mxu0 %v895
      %907 = vmatprep.subr.mxu0 0.0
      %908 = vmatpush1.msra.mxu0 %v894
      %909 = vmatprep.subr.mxu0 0.0
      %910 = vmatpush1.msra.mxu0 %v893
      %911 = vmatprep.subr.mxu0 0.0
      %912 = vmatpush1.msra.mxu0 %v892
      %913 = vmatprep.subr.mxu0 0.0
      %914 = vmatpush1.msra.mxu0 %v891
      %915 = vmatprep.subr.mxu0 0.0
      %916 = vmatpush1.msra.mxu0 %v890
      %917 = vmatprep.subr.mxu0 0.0
      %918 = vmatpush1.msra.mxu0 %v889
      %919 = vmatprep.subr.mxu0 0.0
      %920 = vmatpush1.msra.mxu0 %v888
      %921 = vmatprep.subr.mxu0 0.0
      %922 = vmatpush1.msra.mxu0 %v887
      %923 = vmatprep.subr.mxu0 0.0
      %924 = vmatpush1.msra.mxu0 %v886
      %925 = vmatprep.subr.mxu0 0.0
      %926 = vmatpush1.msra.mxu0 %v885
      %927 = vmatprep.subr.mxu0 0.0
      %928 = vmatpush1.msra.mxu0 %v884
      %929 = vmatprep.subr.mxu0 0.0
      %930 = vmatpush1.msra.mxu0 %v883
      %931 = vmatprep.subr.mxu0 0.0
      %932 = vmatpush2.msra.mxu0 0.0
      %933 = vmatprep.subr.mxu0 0.0
      %934 = vmatpush2.msra.mxu0 0.0
      %935 = vmatprep.subr.mxu0 0.0
      %936 = vmatpush2.msra.mxu0 0.0
      %937 = vmatprep.subr.mxu0 0.0
      %938 = vmatpush2.msra.mxu0 0.0
      %939 = vmatprep.subr.mxu0 0.0
      %940 = vmatpush2.msra.mxu0 0.0
      %941 = vmatprep.subr.mxu0 0.0
      %942 = vmatpush2.msra.mxu0 0.0
      %943 = vmatprep.subr.mxu0 0.0
      %944 = vmatpush2.msra.mxu0 0.0
      %945 = vmatprep.subr.mxu0 0.0
      %946 = vmatpush2.msra.mxu0 0.0
      %947 = vmatprep.subr.mxu0 0.0
      %948 = vmatpush2.msra.mxu0 0.0
      %949 = vmatprep.subr.mxu0 0.0
      %950 = vmatpush2.msra.mxu0 0.0
      %951 = vmatprep.subr.mxu0 0.0
      %952 = vmatpush2.msra.mxu0 0.0
      %953 = vmatprep.subr.mxu0 0.0
      %954 = vmatpush2.msra.mxu0 0.0
      %955 = vmatprep.subr.mxu0 0.0
      %956 = vmatpush2.msra.mxu0 0.0
      %957 = vmatprep.subr.mxu0 0.0
      %958 = vmatpush2.msra.mxu0 0.0
      %959 = vmatprep.subr.mxu0 0.0
      %960 = vmatpush2.msra.mxu0 0.0
      %961 = vmatprep.subr.mxu0 0.0
      %962 = vmatpush2.msra.mxu0 0.0
      %963 = vmatprep.mubr.f32.mxu0 0.0
      %964 = vmatmul.mubr.f32.gmra.mxu0 %v874
      %v965 = vpop.f32.mrf.mxu0
      %v966 = vadd.f32 0.0, %v965
      %v967 = vpop.f32.mrf.mxu0
      %968 = vmatprep.mubr.f32.mxu0 0.0
      %969 = vmatmul.mubr.f32.gmra.mxu0 %v875
      %v970 = vpop.f32.mrf.mxu0
      %v971 = vadd.f32 0.0, %v970
      %v972 = vpop.f32.mrf.mxu0
      %973 = vmatprep.mubr.f32.mxu0 0.0
      %974 = vmatmul.mubr.f32.gmra.mxu0 %v876
      %v975 = vpop.f32.mrf.mxu0
      %v976 = vadd.f32 0.0, %v975
      %v977 = vpop.f32.mrf.mxu0
      %978 = vmatprep.mubr.f32.mxu0 0.0
      %979 = vmatmul.mubr.f32.gmra.mxu0 %v877
      %v980 = vpop.f32.mrf.mxu0
      %v981 = vadd.f32 0.0, %v980
      %v982 = vpop.f32.mrf.mxu0
      %983 = vmatprep.mubr.f32.mxu0 0.0
      %984 = vmatmul.mubr.f32.gmra.mxu0 %v878
      %v985 = vpop.f32.mrf.mxu0
      %v986 = vadd.f32 0.0, %v985
      %v987 = vpop.f32.mrf.mxu0
      %988 = vmatprep.mubr.f32.mxu0 0.0
      %989 = vmatmul.mubr.f32.gmra.mxu0 %v879
      %v990 = vpop.f32.mrf.mxu0
      %v991 = vadd.f32 0.0, %v990
      %v992 = vpop.f32.mrf.mxu0
      %993 = vmatprep.mubr.f32.mxu0 0.0
      %994 = vmatmul.mubr.f32.gmra.mxu0 %v880
      %v995 = vpop.f32.mrf.mxu0
      %v996 = vadd.f32 0.0, %v995
      %v997 = vpop.f32.mrf.mxu0
      %998 = vmatprep.mubr.f32.mxu0 0.0
      %999 = vmatmul.mubr.f32.gmra.mxu0 %v881
      %v1000 = vpop.f32.mrf.mxu0
      %v1001 = vadd.f32 0.0, %v1000
      %v1002 = vpop.f32.mrf.mxu0
      %1003 = vdwg.mxu0
      %v1004 = vadd.f32 %v823, %v966
      %v1005 = vadd.f32 %v824, %v971
      %v1006 = vadd.f32 %v825, %v976
      %v1007 = vadd.f32 %v826, %v981
      %v1008 = vadd.f32 %v827, %v986
      %v1009 = vadd.f32 %v828, %v991
      %v1010 = vadd.f32 %v829, %v996
      %v1011 = vadd.f32 %v830, %v1001
      %v1012 = vld [vmem:[%s833 + $0x1] sm:$0xff]
      %v1013 = vld [vmem:[%s833 + $0x11] sm:$0xff]
      %v1014 = vld [vmem:[%s833 + $0x21] sm:$0xff]
      %v1015 = vld [vmem:[%s833 + $0x31] sm:$0xff]
      %v1016 = vld [vmem:[%s833 + $0x41] sm:$0xff]
      %v1017 = vld [vmem:[%s833 + $0x51] sm:$0xff]
      %v1018 = vld [vmem:[%s833 + $0x61] sm:$0xff]
      %v1019 = vld [vmem:[%s833 + $0x71] sm:$0xff]
      %v1020 = vmul.f32 %v1012, %v314
      %v1021 = vmul.f32 %v1013, %v314
      %v1022 = vmul.f32 %v1014, %v314
      %v1023 = vmul.f32 %v1015, %v314
      %v1024 = vmul.f32 %v1016, %v314
      %v1025 = vmul.f32 %v1017, %v314
      %v1026 = vmul.f32 %v1018, %v314
      %v1027 = vmul.f32 %v1019, %v314
      %v1028 = vadd.f32 %v1020, %v328
      %v1029 = vadd.f32 %v1021, %v328
      %v1030 = vadd.f32 %v1022, %v328
      %v1031 = vadd.f32 %v1023, %v328
      %v1032 = vadd.f32 %v1024, %v328
      %v1033 = vadd.f32 %v1025, %v328
      %v1034 = vadd.f32 %v1026, %v328
      %v1035 = vadd.f32 %v1027, %v328
      %vm1036 = vcmp.ge.f32.partialorder %v1028, 0.0
      %vm1037 = vcmp.ge.f32.partialorder %v1029, 0.0
      %vm1038 = vcmp.ge.f32.partialorder %v1030, 0.0
      %vm1039 = vcmp.ge.f32.partialorder %v1031, 0.0
      %vm1040 = vcmp.ge.f32.partialorder %v1032, 0.0
      %vm1041 = vcmp.ge.f32.partialorder %v1033, 0.0
      %vm1042 = vcmp.ge.f32.partialorder %v1034, 0.0
      %vm1043 = vcmp.ge.f32.partialorder %v1035, 0.0
      %v1044 = vmul.f32 %v1028, 0.2
      %v1045 = vmul.f32 %v1029, 0.2
      %v1046 = vmul.f32 %v1030, 0.2
      %v1047 = vmul.f32 %v1031, 0.2
      %v1048 = vmul.f32 %v1032, 0.2
      %v1049 = vmul.f32 %v1033, 0.2
      %v1050 = vmul.f32 %v1034, 0.2
      %v1051 = vmul.f32 %v1035, 0.2
      %v1052 = vsel %vm1036, %v1028, %v1044
      %v1053 = vsel %vm1037, %v1029, %v1045
      %v1054 = vsel %vm1038, %v1030, %v1046
      %v1055 = vsel %vm1039, %v1031, %v1047
      %v1056 = vsel %vm1040, %v1032, %v1048
      %v1057 = vsel %vm1041, %v1033, %v1049
      %v1058 = vsel %vm1042, %v1034, %v1050
      %v1059 = vsel %vm1043, %v1035, %v1051
      %s1060 = scalar_lea.vmem %s3, 512
      %v1061 = vld [vmem:[%s1060] sm:$0xff]
      %v1062 = vld [vmem:[%s1060 + $0x8] sm:$0xff]
      %v1063 = vld [vmem:[%s1060 + $0x10] sm:$0xff]
      %v1064 = vld [vmem:[%s1060 + $0x18] sm:$0xff]
      %v1065 = vld [vmem:[%s1060 + $0x20] sm:$0xff]
      %v1066 = vld [vmem:[%s1060 + $0x28] sm:$0xff]
      %v1067 = vld [vmem:[%s1060 + $0x30] sm:$0xff]
      %v1068 = vld [vmem:[%s1060 + $0x38] sm:$0xff]
      %v1069 = vld [vmem:[%s1060 + $0x40] sm:$0xff]
      %v1070 = vld [vmem:[%s1060 + $0x48] sm:$0xff]
      %v1071 = vld [vmem:[%s1060 + $0x50] sm:$0xff]
      %v1072 = vld [vmem:[%s1060 + $0x58] sm:$0xff]
      %v1073 = vld [vmem:[%s1060 + $0x60] sm:$0xff]
      %v1074 = vld [vmem:[%s1060 + $0x68] sm:$0xff]
      %v1075 = vld [vmem:[%s1060 + $0x70] sm:$0xff]
      %v1076 = vld [vmem:[%s1060 + $0x78] sm:$0xff]
      %1077 = vmatprep.subr.mxu0 0.0
      %1078 = vmatpush1.msra.mxu0 %v1076
      %1079 = vmatprep.subr.mxu0 0.0
      %1080 = vmatpush1.msra.mxu0 %v1075
      %1081 = vmatprep.subr.mxu0 0.0
      %1082 = vmatpush1.msra.mxu0 %v1074
      %1083 = vmatprep.subr.mxu0 0.0
      %1084 = vmatpush1.msra.mxu0 %v1073
      %1085 = vmatprep.subr.mxu0 0.0
      %1086 = vmatpush1.msra.mxu0 %v1072
      %1087 = vmatprep.subr.mxu0 0.0
      %1088 = vmatpush1.msra.mxu0 %v1071
      %1089 = vmatprep.subr.mxu0 0.0
      %1090 = vmatpush1.msra.mxu0 %v1070
      %1091 = vmatprep.subr.mxu0 0.0
      %1092 = vmatpush1.msra.mxu0 %v1069
      %1093 = vmatprep.subr.mxu0 0.0
      %1094 = vmatpush1.msra.mxu0 %v1068
      %1095 = vmatprep.subr.mxu0 0.0
      %1096 = vmatpush1.msra.mxu0 %v1067
      %1097 = vmatprep.subr.mxu0 0.0
      %1098 = vmatpush1.msra.mxu0 %v1066
      %1099 = vmatprep.subr.mxu0 0.0
      %1100 = vmatpush1.msra.mxu0 %v1065
      %1101 = vmatprep.subr.mxu0 0.0
      %1102 = vmatpush1.msra.mxu0 %v1064
      %1103 = vmatprep.subr.mxu0 0.0
      %1104 = vmatpush1.msra.mxu0 %v1063
      %1105 = vmatprep.subr.mxu0 0.0
      %1106 = vmatpush1.msra.mxu0 %v1062
      %1107 = vmatprep.subr.mxu0 0.0
      %1108 = vmatpush1.msra.mxu0 %v1061
      %1109 = vmatprep.subr.mxu0 0.0
      %1110 = vmatpush2.msra.mxu0 0.0
      %1111 = vmatprep.subr.mxu0 0.0
      %1112 = vmatpush2.msra.mxu0 0.0
      %1113 = vmatprep.subr.mxu0 0.0
      %1114 = vmatpush2.msra.mxu0 0.0
      %1115 = vmatprep.subr.mxu0 0.0
      %1116 = vmatpush2.msra.mxu0 0.0
      %1117 = vmatprep.subr.mxu0 0.0
      %1118 = vmatpush2.msra.mxu0 0.0
      %1119 = vmatprep.subr.mxu0 0.0
      %1120 = vmatpush2.msra.mxu0 0.0
      %1121 = vmatprep.subr.mxu0 0.0
      %1122 = vmatpush2.msra.mxu0 0.0
      %1123 = vmatprep.subr.mxu0 0.0
      %1124 = vmatpush2.msra.mxu0 0.0
      %1125 = vmatprep.subr.mxu0 0.0
      %1126 = vmatpush2.msra.mxu0 0.0
      %1127 = vmatprep.subr.mxu0 0.0
      %1128 = vmatpush2.msra.mxu0 0.0
      %1129 = vmatprep.subr.mxu0 0.0
      %1130 = vmatpush2.msra.mxu0 0.0
      %1131 = vmatprep.subr.mxu0 0.0
      %1132 = vmatpush2.msra.mxu0 0.0
      %1133 = vmatprep.subr.mxu0 0.0
      %1134 = vmatpush2.msra.mxu0 0.0
      %1135 = vmatprep.subr.mxu0 0.0
      %1136 = vmatpush2.msra.mxu0 0.0
      %1137 = vmatprep.subr.mxu0 0.0
      %1138 = vmatpush2.msra.mxu0 0.0
      %1139 = vmatprep.subr.mxu0 0.0
      %1140 = vmatpush2.msra.mxu0 0.0
      %1141 = vmatprep.mubr.f32.mxu0 0.0
      %1142 = vmatmul.mubr.f32.gmra.mxu0 %v1052
      %v1143 = vpop.f32.mrf.mxu0
      %v1144 = vadd.f32 0.0, %v1143
      %v1145 = vpop.f32.mrf.mxu0
      %1146 = vmatprep.mubr.f32.mxu0 0.0
      %1147 = vmatmul.mubr.f32.gmra.mxu0 %v1053
      %v1148 = vpop.f32.mrf.mxu0
      %v1149 = vadd.f32 0.0, %v1148
      %v1150 = vpop.f32.mrf.mxu0
      %1151 = vmatprep.mubr.f32.mxu0 0.0
      %1152 = vmatmul.mubr.f32.gmra.mxu0 %v1054
      %v1153 = vpop.f32.mrf.mxu0
      %v1154 = vadd.f32 0.0, %v1153
      %v1155 = vpop.f32.mrf.mxu0
      %1156 = vmatprep.mubr.f32.mxu0 0.0
      %1157 = vmatmul.mubr.f32.gmra.mxu0 %v1055
      %v1158 = vpop.f32.mrf.mxu0
      %v1159 = vadd.f32 0.0, %v1158
      %v1160 = vpop.f32.mrf.mxu0
      %1161 = vmatprep.mubr.f32.mxu0 0.0
      %1162 = vmatmul.mubr.f32.gmra.mxu0 %v1056
      %v1163 = vpop.f32.mrf.mxu0
      %v1164 = vadd.f32 0.0, %v1163
      %v1165 = vpop.f32.mrf.mxu0
      %1166 = vmatprep.mubr.f32.mxu0 0.0
      %1167 = vmatmul.mubr.f32.gmra.mxu0 %v1057
      %v1168 = vpop.f32.mrf.mxu0
      %v1169 = vadd.f32 0.0, %v1168
      %v1170 = vpop.f32.mrf.mxu0
      %1171 = vmatprep.mubr.f32.mxu0 0.0
      %1172 = vmatmul.mubr.f32.gmra.mxu0 %v1058
      %v1173 = vpop.f32.mrf.mxu0
      %v1174 = vadd.f32 0.0, %v1173
      %v1175 = vpop.f32.mrf.mxu0
      %1176 = vmatprep.mubr.f32.mxu0 0.0
      %1177 = vmatmul.mubr.f32.gmra.mxu0 %v1059
      %v1178 = vpop.f32.mrf.mxu0
      %v1179 = vadd.f32 0.0, %v1178
      %v1180 = vpop.f32.mrf.mxu0
      %1181 = vdwg.mxu0
      %v1182 = vadd.f32 %v1004, %v1144
      %v1183 = vadd.f32 %v1005, %v1149
      %v1184 = vadd.f32 %v1006, %v1154
      %v1185 = vadd.f32 %v1007, %v1159
      %v1186 = vadd.f32 %v1008, %v1164
      %v1187 = vadd.f32 %v1009, %v1169
      %v1188 = vadd.f32 %v1010, %v1174
      %v1189 = vadd.f32 %v1011, %v1179
      %v1190 = vld [vmem:[%s833 + $0x2] sm:$0xff]
      %v1191 = vld [vmem:[%s833 + $0x12] sm:$0xff]
      %v1192 = vld [vmem:[%s833 + $0x22] sm:$0xff]
      %v1193 = vld [vmem:[%s833 + $0x32] sm:$0xff]
      %v1194 = vld [vmem:[%s833 + $0x42] sm:$0xff]
      %v1195 = vld [vmem:[%s833 + $0x52] sm:$0xff]
      %v1196 = vld [vmem:[%s833 + $0x62] sm:$0xff]
      %v1197 = vld [vmem:[%s833 + $0x72] sm:$0xff]
      %v1198 = vmul.f32 %v1190, %v314
      %v1199 = vmul.f32 %v1191, %v314
      %v1200 = vmul.f32 %v1192, %v314
      %v1201 = vmul.f32 %v1193, %v314
      %v1202 = vmul.f32 %v1194, %v314
      %v1203 = vmul.f32 %v1195, %v314
      %v1204 = vmul.f32 %v1196, %v314
      %v1205 = vmul.f32 %v1197, %v314
      %v1206 = vadd.f32 %v1198, %v328
      %v1207 = vadd.f32 %v1199, %v328
      %v1208 = vadd.f32 %v1200, %v328
      %v1209 = vadd.f32 %v1201, %v328
      %v1210 = vadd.f32 %v1202, %v328
      %v1211 = vadd.f32 %v1203, %v328
      %v1212 = vadd.f32 %v1204, %v328
      %v1213 = vadd.f32 %v1205, %v328
      %vm1214 = vcmp.ge.f32.partialorder %v1206, 0.0
      %vm1215 = vcmp.ge.f32.partialorder %v1207, 0.0
      %vm1216 = vcmp.ge.f32.partialorder %v1208, 0.0
      %vm1217 = vcmp.ge.f32.partialorder %v1209, 0.0
      %vm1218 = vcmp.ge.f32.partialorder %v1210, 0.0
      %vm1219 = vcmp.ge.f32.partialorder %v1211, 0.0
      %vm1220 = vcmp.ge.f32.partialorder %v1212, 0.0
      %vm1221 = vcmp.ge.f32.partialorder %v1213, 0.0
      %v1222 = vmul.f32 %v1206, 0.2
      %v1223 = vmul.f32 %v1207, 0.2
      %v1224 = vmul.f32 %v1208, 0.2
      %v1225 = vmul.f32 %v1209, 0.2
      %v1226 = vmul.f32 %v1210, 0.2
      %v1227 = vmul.f32 %v1211, 0.2
      %v1228 = vmul.f32 %v1212, 0.2
      %v1229 = vmul.f32 %v1213, 0.2
      %v1230 = vsel %vm1214, %v1206, %v1222
      %v1231 = vsel %vm1215, %v1207, %v1223
      %v1232 = vsel %vm1216, %v1208, %v1224
      %v1233 = vsel %vm1217, %v1209, %v1225
      %v1234 = vsel %vm1218, %v1210, %v1226
      %v1235 = vsel %vm1219, %v1211, %v1227
      %v1236 = vsel %vm1220, %v1212, %v1228
      %v1237 = vsel %vm1221, %v1213, %v1229
      %s1238 = scalar_lea.vmem %s3, 640
      %v1239 = vld [vmem:[%s1238] sm:$0xff]
      %v1240 = vld [vmem:[%s1238 + $0x8] sm:$0xff]
      %v1241 = vld [vmem:[%s1238 + $0x10] sm:$0xff]
      %v1242 = vld [vmem:[%s1238 + $0x18] sm:$0xff]
      %v1243 = vld [vmem:[%s1238 + $0x20] sm:$0xff]
      %v1244 = vld [vmem:[%s1238 + $0x28] sm:$0xff]
      %v1245 = vld [vmem:[%s1238 + $0x30] sm:$0xff]
      %v1246 = vld [vmem:[%s1238 + $0x38] sm:$0xff]
      %v1247 = vld [vmem:[%s1238 + $0x40] sm:$0xff]
      %v1248 = vld [vmem:[%s1238 + $0x48] sm:$0xff]
      %v1249 = vld [vmem:[%s1238 + $0x50] sm:$0xff]
      %v1250 = vld [vmem:[%s1238 + $0x58] sm:$0xff]
      %v1251 = vld [vmem:[%s1238 + $0x60] sm:$0xff]
      %v1252 = vld [vmem:[%s1238 + $0x68] sm:$0xff]
      %v1253 = vld [vmem:[%s1238 + $0x70] sm:$0xff]
      %v1254 = vld [vmem:[%s1238 + $0x78] sm:$0xff]
      %1255 = vmatprep.subr.mxu0 0.0
      %1256 = vmatpush1.msra.mxu0 %v1254
      %1257 = vmatprep.subr.mxu0 0.0
      %1258 = vmatpush1.msra.mxu0 %v1253
      %1259 = vmatprep.subr.mxu0 0.0
      %1260 = vmatpush1.msra.mxu0 %v1252
      %1261 = vmatprep.subr.mxu0 0.0
      %1262 = vmatpush1.msra.mxu0 %v1251
      %1263 = vmatprep.subr.mxu0 0.0
      %1264 = vmatpush1.msra.mxu0 %v1250
      %1265 = vmatprep.subr.mxu0 0.0
      %1266 = vmatpush1.msra.mxu0 %v1249
      %1267 = vmatprep.subr.mxu0 0.0
      %1268 = vmatpush1.msra.mxu0 %v1248
      %1269 = vmatprep.subr.mxu0 0.0
      %1270 = vmatpush1.msra.mxu0 %v1247
      %1271 = vmatprep.subr.mxu0 0.0
      %1272 = vmatpush1.msra.mxu0 %v1246
      %1273 = vmatprep.subr.mxu0 0.0
      %1274 = vmatpush1.msra.mxu0 %v1245
      %1275 = vmatprep.subr.mxu0 0.0
      %1276 = vmatpush1.msra.mxu0 %v1244
      %1277 = vmatprep.subr.mxu0 0.0
      %1278 = vmatpush1.msra.mxu0 %v1243
      %1279 = vmatprep.subr.mxu0 0.0
      %1280 = vmatpush1.msra.mxu0 %v1242
      %1281 = vmatprep.subr.mxu0 0.0
      %1282 = vmatpush1.msra.mxu0 %v1241
      %1283 = vmatprep.subr.mxu0 0.0
      %1284 = vmatpush1.msra.mxu0 %v1240
      %1285 = vmatprep.subr.mxu0 0.0
      %1286 = vmatpush1.msra.mxu0 %v1239
      %1287 = vmatprep.subr.mxu0 0.0
      %1288 = vmatpush2.msra.mxu0 0.0
      %1289 = vmatprep.subr.mxu0 0.0
      %1290 = vmatpush2.msra.mxu0 0.0
      %1291 = vmatprep.subr.mxu0 0.0
      %1292 = vmatpush2.msra.mxu0 0.0
      %1293 = vmatprep.subr.mxu0 0.0
      %1294 = vmatpush2.msra.mxu0 0.0
      %1295 = vmatprep.subr.mxu0 0.0
      %1296 = vmatpush2.msra.mxu0 0.0
      %1297 = vmatprep.subr.mxu0 0.0
      %1298 = vmatpush2.msra.mxu0 0.0
      %1299 = vmatprep.subr.mxu0 0.0
      %1300 = vmatpush2.msra.mxu0 0.0
      %1301 = vmatprep.subr.mxu0 0.0
      %1302 = vmatpush2.msra.mxu0 0.0
      %1303 = vmatprep.subr.mxu0 0.0
      %1304 = vmatpush2.msra.mxu0 0.0
      %1305 = vmatprep.subr.mxu0 0.0
      %1306 = vmatpush2.msra.mxu0 0.0
      %1307 = vmatprep.subr.mxu0 0.0
      %1308 = vmatpush2.msra.mxu0 0.0
      %1309 = vmatprep.subr.mxu0 0.0
      %1310 = vmatpush2.msra.mxu0 0.0
      %1311 = vmatprep.subr.mxu0 0.0
      %1312 = vmatpush2.msra.mxu0 0.0
      %1313 = vmatprep.subr.mxu0 0.0
      %1314 = vmatpush2.msra.mxu0 0.0
      %1315 = vmatprep.subr.mxu0 0.0
      %1316 = vmatpush2.msra.mxu0 0.0
      %1317 = vmatprep.subr.mxu0 0.0
      %1318 = vmatpush2.msra.mxu0 0.0
      %1319 = vmatprep.mubr.f32.mxu0 0.0
      %1320 = vmatmul.mubr.f32.gmra.mxu0 %v1230
      %v1321 = vpop.f32.mrf.mxu0
      %v1322 = vadd.f32 0.0, %v1321
      %v1323 = vpop.f32.mrf.mxu0
      %1324 = vmatprep.mubr.f32.mxu0 0.0
      %1325 = vmatmul.mubr.f32.gmra.mxu0 %v1231
      %v1326 = vpop.f32.mrf.mxu0
      %v1327 = vadd.f32 0.0, %v1326
      %v1328 = vpop.f32.mrf.mxu0
      %1329 = vmatprep.mubr.f32.mxu0 0.0
      %1330 = vmatmul.mubr.f32.gmra.mxu0 %v1232
      %v1331 = vpop.f32.mrf.mxu0
      %v1332 = vadd.f32 0.0, %v1331
      %v1333 = vpop.f32.mrf.mxu0
      %1334 = vmatprep.mubr.f32.mxu0 0.0
      %1335 = vmatmul.mubr.f32.gmra.mxu0 %v1233
      %v1336 = vpop.f32.mrf.mxu0
      %v1337 = vadd.f32 0.0, %v1336
      %v1338 = vpop.f32.mrf.mxu0
      %1339 = vmatprep.mubr.f32.mxu0 0.0
      %1340 = vmatmul.mubr.f32.gmra.mxu0 %v1234
      %v1341 = vpop.f32.mrf.mxu0
      %v1342 = vadd.f32 0.0, %v1341
      %v1343 = vpop.f32.mrf.mxu0
      %1344 = vmatprep.mubr.f32.mxu0 0.0
      %1345 = vmatmul.mubr.f32.gmra.mxu0 %v1235
      %v1346 = vpop.f32.mrf.mxu0
      %v1347 = vadd.f32 0.0, %v1346
      %v1348 = vpop.f32.mrf.mxu0
      %1349 = vmatprep.mubr.f32.mxu0 0.0
      %1350 = vmatmul.mubr.f32.gmra.mxu0 %v1236
      %v1351 = vpop.f32.mrf.mxu0
      %v1352 = vadd.f32 0.0, %v1351
      %v1353 = vpop.f32.mrf.mxu0
      %1354 = vmatprep.mubr.f32.mxu0 0.0
      %1355 = vmatmul.mubr.f32.gmra.mxu0 %v1237
      %v1356 = vpop.f32.mrf.mxu0
      %v1357 = vadd.f32 0.0, %v1356
      %v1358 = vpop.f32.mrf.mxu0
      %1359 = vdwg.mxu0
      %v1360 = vadd.f32 %v1182, %v1322
      %v1361 = vadd.f32 %v1183, %v1327
      %v1362 = vadd.f32 %v1184, %v1332
      %v1363 = vadd.f32 %v1185, %v1337
      %v1364 = vadd.f32 %v1186, %v1342
      %v1365 = vadd.f32 %v1187, %v1347
      %v1366 = vadd.f32 %v1188, %v1352
      %v1367 = vadd.f32 %v1189, %v1357
      %s1368 = sadd.s32 %s297, 2
      %s1369 = smul.u32 %s1368, 16
      %s1370 = scalar_lea.vmem %s278, %s1369
      %v1371 = vld [vmem:[%s1370] sm:$0xff]
      %v1372 = vld [vmem:[%s1370 + $0x10] sm:$0xff]
      %v1373 = vld [vmem:[%s1370 + $0x20] sm:$0xff]
      %v1374 = vld [vmem:[%s1370 + $0x30] sm:$0xff]
      %v1375 = vld [vmem:[%s1370 + $0x40] sm:$0xff]
      %v1376 = vld [vmem:[%s1370 + $0x50] sm:$0xff]
      %v1377 = vld [vmem:[%s1370 + $0x60] sm:$0xff]
      %v1378 = vld [vmem:[%s1370 + $0x70] sm:$0xff]
      %v1379 = vmul.f32 %v1371, %v314
      %v1380 = vmul.f32 %v1372, %v314
      %v1381 = vmul.f32 %v1373, %v314
      %v1382 = vmul.f32 %v1374, %v314
      %v1383 = vmul.f32 %v1375, %v314
      %v1384 = vmul.f32 %v1376, %v314
      %v1385 = vmul.f32 %v1377, %v314
      %v1386 = vmul.f32 %v1378, %v314
      %v1387 = vadd.f32 %v1379, %v328
      %v1388 = vadd.f32 %v1380, %v328
      %v1389 = vadd.f32 %v1381, %v328
      %v1390 = vadd.f32 %v1382, %v328
      %v1391 = vadd.f32 %v1383, %v328
      %v1392 = vadd.f32 %v1384, %v328
      %v1393 = vadd.f32 %v1385, %v328
      %v1394 = vadd.f32 %v1386, %v328
      %vm1395 = vcmp.ge.f32.partialorder %v1387, 0.0
      %vm1396 = vcmp.ge.f32.partialorder %v1388, 0.0
      %vm1397 = vcmp.ge.f32.partialorder %v1389, 0.0
      %vm1398 = vcmp.ge.f32.partialorder %v1390, 0.0
      %vm1399 = vcmp.ge.f32.partialorder %v1391, 0.0
      %vm1400 = vcmp.ge.f32.partialorder %v1392, 0.0
      %vm1401 = vcmp.ge.f32.partialorder %v1393, 0.0
      %vm1402 = vcmp.ge.f32.partialorder %v1394, 0.0
      %v1403 = vmul.f32 %v1387, 0.2
      %v1404 = vmul.f32 %v1388, 0.2
      %v1405 = vmul.f32 %v1389, 0.2
      %v1406 = vmul.f32 %v1390, 0.2
      %v1407 = vmul.f32 %v1391, 0.2
      %v1408 = vmul.f32 %v1392, 0.2
      %v1409 = vmul.f32 %v1393, 0.2
      %v1410 = vmul.f32 %v1394, 0.2
      %v1411 = vsel %vm1395, %v1387, %v1403
      %v1412 = vsel %vm1396, %v1388, %v1404
      %v1413 = vsel %vm1397, %v1389, %v1405
      %v1414 = vsel %vm1398, %v1390, %v1406
      %v1415 = vsel %vm1399, %v1391, %v1407
      %v1416 = vsel %vm1400, %v1392, %v1408
      %v1417 = vsel %vm1401, %v1393, %v1409
      %v1418 = vsel %vm1402, %v1394, %v1410
      %s1419 = scalar_lea.vmem %s3, 768
      %v1420 = vld [vmem:[%s1419] sm:$0xff]
      %v1421 = vld [vmem:[%s1419 + $0x8] sm:$0xff]
      %v1422 = vld [vmem:[%s1419 + $0x10] sm:$0xff]
      %v1423 = vld [vmem:[%s1419 + $0x18] sm:$0xff]
      %v1424 = vld [vmem:[%s1419 + $0x20] sm:$0xff]
      %v1425 = vld [vmem:[%s1419 + $0x28] sm:$0xff]
      %v1426 = vld [vmem:[%s1419 + $0x30] sm:$0xff]
      %v1427 = vld [vmem:[%s1419 + $0x38] sm:$0xff]
      %v1428 = vld [vmem:[%s1419 + $0x40] sm:$0xff]
      %v1429 = vld [vmem:[%s1419 + $0x48] sm:$0xff]
      %v1430 = vld [vmem:[%s1419 + $0x50] sm:$0xff]
      %v1431 = vld [vmem:[%s1419 + $0x58] sm:$0xff]
      %v1432 = vld [vmem:[%s1419 + $0x60] sm:$0xff]
      %v1433 = vld [vmem:[%s1419 + $0x68] sm:$0xff]
      %v1434 = vld [vmem:[%s1419 + $0x70] sm:$0xff]
      %v1435 = vld [vmem:[%s1419 + $0x78] sm:$0xff]
      %1436 = vmatprep.subr.mxu0 0.0
      %1437 = vmatpush1.msra.mxu0 %v1435
      %1438 = vmatprep.subr.mxu0 0.0
      %1439 = vmatpush1.msra.mxu0 %v1434
      %1440 = vmatprep.subr.mxu0 0.0
      %1441 = vmatpush1.msra.mxu0 %v1433
      %1442 = vmatprep.subr.mxu0 0.0
      %1443 = vmatpush1.msra.mxu0 %v1432
      %1444 = vmatprep.subr.mxu0 0.0
      %1445 = vmatpush1.msra.mxu0 %v1431
      %1446 = vmatprep.subr.mxu0 0.0
      %1447 = vmatpush1.msra.mxu0 %v1430
      %1448 = vmatprep.subr.mxu0 0.0
      %1449 = vmatpush1.msra.mxu0 %v1429
      %1450 = vmatprep.subr.mxu0 0.0
      %1451 = vmatpush1.msra.mxu0 %v1428
      %1452 = vmatprep.subr.mxu0 0.0
      %1453 = vmatpush1.msra.mxu0 %v1427
      %1454 = vmatprep.subr.mxu0 0.0
      %1455 = vmatpush1.msra.mxu0 %v1426
      %1456 = vmatprep.subr.mxu0 0.0
      %1457 = vmatpush1.msra.mxu0 %v1425
      %1458 = vmatprep.subr.mxu0 0.0
      %1459 = vmatpush1.msra.mxu0 %v1424
      %1460 = vmatprep.subr.mxu0 0.0
      %1461 = vmatpush1.msra.mxu0 %v1423
      %1462 = vmatprep.subr.mxu0 0.0
      %1463 = vmatpush1.msra.mxu0 %v1422
      %1464 = vmatprep.subr.mxu0 0.0
      %1465 = vmatpush1.msra.mxu0 %v1421
      %1466 = vmatprep.subr.mxu0 0.0
      %1467 = vmatpush1.msra.mxu0 %v1420
      %1468 = vmatprep.subr.mxu0 0.0
      %1469 = vmatpush2.msra.mxu0 0.0
      %1470 = vmatprep.subr.mxu0 0.0
      %1471 = vmatpush2.msra.mxu0 0.0
      %1472 = vmatprep.subr.mxu0 0.0
      %1473 = vmatpush2.msra.mxu0 0.0
      %1474 = vmatprep.subr.mxu0 0.0
      %1475 = vmatpush2.msra.mxu0 0.0
      %1476 = vmatprep.subr.mxu0 0.0
      %1477 = vmatpush2.msra.mxu0 0.0
      %1478 = vmatprep.subr.mxu0 0.0
      %1479 = vmatpush2.msra.mxu0 0.0
      %1480 = vmatprep.subr.mxu0 0.0
      %1481 = vmatpush2.msra.mxu0 0.0
      %1482 = vmatprep.subr.mxu0 0.0
      %1483 = vmatpush2.msra.mxu0 0.0
      %1484 = vmatprep.subr.mxu0 0.0
      %1485 = vmatpush2.msra.mxu0 0.0
      %1486 = vmatprep.subr.mxu0 0.0
      %1487 = vmatpush2.msra.mxu0 0.0
      %1488 = vmatprep.subr.mxu0 0.0
      %1489 = vmatpush2.msra.mxu0 0.0
      %1490 = vmatprep.subr.mxu0 0.0
      %1491 = vmatpush2.msra.mxu0 0.0
      %1492 = vmatprep.subr.mxu0 0.0
      %1493 = vmatpush2.msra.mxu0 0.0
      %1494 = vmatprep.subr.mxu0 0.0
      %1495 = vmatpush2.msra.mxu0 0.0
      %1496 = vmatprep.subr.mxu0 0.0
      %1497 = vmatpush2.msra.mxu0 0.0
      %1498 = vmatprep.subr.mxu0 0.0
      %1499 = vmatpush2.msra.mxu0 0.0
      %1500 = vmatprep.mubr.f32.mxu0 0.0
      %1501 = vmatmul.mubr.f32.gmra.mxu0 %v1411
      %v1502 = vpop.f32.mrf.mxu0
      %v1503 = vadd.f32 0.0, %v1502
      %v1504 = vpop.f32.mrf.mxu0
      %1505 = vmatprep.mubr.f32.mxu0 0.0
      %1506 = vmatmul.mubr.f32.gmra.mxu0 %v1412
      %v1507 = vpop.f32.mrf.mxu0
      %v1508 = vadd.f32 0.0, %v1507
      %v1509 = vpop.f32.mrf.mxu0
      %1510 = vmatprep.mubr.f32.mxu0 0.0
      %1511 = vmatmul.mubr.f32.gmra.mxu0 %v1413
      %v1512 = vpop.f32.mrf.mxu0
      %v1513 = vadd.f32 0.0, %v1512
      %v1514 = vpop.f32.mrf.mxu0
      %1515 = vmatprep.mubr.f32.mxu0 0.0
      %1516 = vmatmul.mubr.f32.gmra.mxu0 %v1414
      %v1517 = vpop.f32.mrf.mxu0
      %v1518 = vadd.f32 0.0, %v1517
      %v1519 = vpop.f32.mrf.mxu0
      %1520 = vmatprep.mubr.f32.mxu0 0.0
      %1521 = vmatmul.mubr.f32.gmra.mxu0 %v1415
      %v1522 = vpop.f32.mrf.mxu0
      %v1523 = vadd.f32 0.0, %v1522
      %v1524 = vpop.f32.mrf.mxu0
      %1525 = vmatprep.mubr.f32.mxu0 0.0
      %1526 = vmatmul.mubr.f32.gmra.mxu0 %v1416
      %v1527 = vpop.f32.mrf.mxu0
      %v1528 = vadd.f32 0.0, %v1527
      %v1529 = vpop.f32.mrf.mxu0
      %1530 = vmatprep.mubr.f32.mxu0 0.0
      %1531 = vmatmul.mubr.f32.gmra.mxu0 %v1417
      %v1532 = vpop.f32.mrf.mxu0
      %v1533 = vadd.f32 0.0, %v1532
      %v1534 = vpop.f32.mrf.mxu0
      %1535 = vmatprep.mubr.f32.mxu0 0.0
      %1536 = vmatmul.mubr.f32.gmra.mxu0 %v1418
      %v1537 = vpop.f32.mrf.mxu0
      %v1538 = vadd.f32 0.0, %v1537
      %v1539 = vpop.f32.mrf.mxu0
      %1540 = vdwg.mxu0
      %v1541 = vadd.f32 %v1360, %v1503
      %v1542 = vadd.f32 %v1361, %v1508
      %v1543 = vadd.f32 %v1362, %v1513
      %v1544 = vadd.f32 %v1363, %v1518
      %v1545 = vadd.f32 %v1364, %v1523
      %v1546 = vadd.f32 %v1365, %v1528
      %v1547 = vadd.f32 %v1366, %v1533
      %v1548 = vadd.f32 %v1367, %v1538
      %v1549 = vld [vmem:[%s1370 + $0x1] sm:$0xff]
      %v1550 = vld [vmem:[%s1370 + $0x11] sm:$0xff]
      %v1551 = vld [vmem:[%s1370 + $0x21] sm:$0xff]
      %v1552 = vld [vmem:[%s1370 + $0x31] sm:$0xff]
      %v1553 = vld [vmem:[%s1370 + $0x41] sm:$0xff]
      %v1554 = vld [vmem:[%s1370 + $0x51] sm:$0xff]
      %v1555 = vld [vmem:[%s1370 + $0x61] sm:$0xff]
      %v1556 = vld [vmem:[%s1370 + $0x71] sm:$0xff]
      %v1557 = vmul.f32 %v1549, %v314
      %v1558 = vmul.f32 %v1550, %v314
      %v1559 = vmul.f32 %v1551, %v314
      %v1560 = vmul.f32 %v1552, %v314
      %v1561 = vmul.f32 %v1553, %v314
      %v1562 = vmul.f32 %v1554, %v314
      %v1563 = vmul.f32 %v1555, %v314
      %v1564 = vmul.f32 %v1556, %v314
      %v1565 = vadd.f32 %v1557, %v328
      %v1566 = vadd.f32 %v1558, %v328
      %v1567 = vadd.f32 %v1559, %v328
      %v1568 = vadd.f32 %v1560, %v328
      %v1569 = vadd.f32 %v1561, %v328
      %v1570 = vadd.f32 %v1562, %v328
      %v1571 = vadd.f32 %v1563, %v328
      %v1572 = vadd.f32 %v1564, %v328
      %vm1573 = vcmp.ge.f32.partialorder %v1565, 0.0
      %vm1574 = vcmp.ge.f32.partialorder %v1566, 0.0
      %vm1575 = vcmp.ge.f32.partialorder %v1567, 0.0
      %vm1576 = vcmp.ge.f32.partialorder %v1568, 0.0
      %vm1577 = vcmp.ge.f32.partialorder %v1569, 0.0
      %vm1578 = vcmp.ge.f32.partialorder %v1570, 0.0
      %vm1579 = vcmp.ge.f32.partialorder %v1571, 0.0
      %vm1580 = vcmp.ge.f32.partialorder %v1572, 0.0
      %v1581 = vmul.f32 %v1565, 0.2
      %v1582 = vmul.f32 %v1566, 0.2
      %v1583 = vmul.f32 %v1567, 0.2
      %v1584 = vmul.f32 %v1568, 0.2
      %v1585 = vmul.f32 %v1569, 0.2
      %v1586 = vmul.f32 %v1570, 0.2
      %v1587 = vmul.f32 %v1571, 0.2
      %v1588 = vmul.f32 %v1572, 0.2
      %v1589 = vsel %vm1573, %v1565, %v1581
      %v1590 = vsel %vm1574, %v1566, %v1582
      %v1591 = vsel %vm1575, %v1567, %v1583
      %v1592 = vsel %vm1576, %v1568, %v1584
      %v1593 = vsel %vm1577, %v1569, %v1585
      %v1594 = vsel %vm1578, %v1570, %v1586
      %v1595 = vsel %vm1579, %v1571, %v1587
      %v1596 = vsel %vm1580, %v1572, %v1588
      %s1597 = scalar_lea.vmem %s3, 896
      %v1598 = vld [vmem:[%s1597] sm:$0xff]
      %v1599 = vld [vmem:[%s1597 + $0x8] sm:$0xff]
      %v1600 = vld [vmem:[%s1597 + $0x10] sm:$0xff]
      %v1601 = vld [vmem:[%s1597 + $0x18] sm:$0xff]
      %v1602 = vld [vmem:[%s1597 + $0x20] sm:$0xff]
      %v1603 = vld [vmem:[%s1597 + $0x28] sm:$0xff]
      %v1604 = vld [vmem:[%s1597 + $0x30] sm:$0xff]
      %v1605 = vld [vmem:[%s1597 + $0x38] sm:$0xff]
      %v1606 = vld [vmem:[%s1597 + $0x40] sm:$0xff]
      %v1607 = vld [vmem:[%s1597 + $0x48] sm:$0xff]
      %v1608 = vld [vmem:[%s1597 + $0x50] sm:$0xff]
      %v1609 = vld [vmem:[%s1597 + $0x58] sm:$0xff]
      %v1610 = vld [vmem:[%s1597 + $0x60] sm:$0xff]
      %v1611 = vld [vmem:[%s1597 + $0x68] sm:$0xff]
      %v1612 = vld [vmem:[%s1597 + $0x70] sm:$0xff]
      %v1613 = vld [vmem:[%s1597 + $0x78] sm:$0xff]
      %1614 = vmatprep.subr.mxu0 0.0
      %1615 = vmatpush1.msra.mxu0 %v1613
      %1616 = vmatprep.subr.mxu0 0.0
      %1617 = vmatpush1.msra.mxu0 %v1612
      %1618 = vmatprep.subr.mxu0 0.0
      %1619 = vmatpush1.msra.mxu0 %v1611
      %1620 = vmatprep.subr.mxu0 0.0
      %1621 = vmatpush1.msra.mxu0 %v1610
      %1622 = vmatprep.subr.mxu0 0.0
      %1623 = vmatpush1.msra.mxu0 %v1609
      %1624 = vmatprep.subr.mxu0 0.0
      %1625 = vmatpush1.msra.mxu0 %v1608
      %1626 = vmatprep.subr.mxu0 0.0
      %1627 = vmatpush1.msra.mxu0 %v1607
      %1628 = vmatprep.subr.mxu0 0.0
      %1629 = vmatpush1.msra.mxu0 %v1606
      %1630 = vmatprep.subr.mxu0 0.0
      %1631 = vmatpush1.msra.mxu0 %v1605
      %1632 = vmatprep.subr.mxu0 0.0
      %1633 = vmatpush1.msra.mxu0 %v1604
      %1634 = vmatprep.subr.mxu0 0.0
      %1635 = vmatpush1.msra.mxu0 %v1603
      %1636 = vmatprep.subr.mxu0 0.0
      %1637 = vmatpush1.msra.mxu0 %v1602
      %1638 = vmatprep.subr.mxu0 0.0
      %1639 = vmatpush1.msra.mxu0 %v1601
      %1640 = vmatprep.subr.mxu0 0.0
      %1641 = vmatpush1.msra.mxu0 %v1600
      %1642 = vmatprep.subr.mxu0 0.0
      %1643 = vmatpush1.msra.mxu0 %v1599
      %1644 = vmatprep.subr.mxu0 0.0
      %1645 = vmatpush1.msra.mxu0 %v1598
      %1646 = vmatprep.subr.mxu0 0.0
      %1647 = vmatpush2.msra.mxu0 0.0
      %1648 = vmatprep.subr.mxu0 0.0
      %1649 = vmatpush2.msra.mxu0 0.0
      %1650 = vmatprep.subr.mxu0 0.0
      %1651 = vmatpush2.msra.mxu0 0.0
      %1652 = vmatprep.subr.mxu0 0.0
      %1653 = vmatpush2.msra.mxu0 0.0
      %1654 = vmatprep.subr.mxu0 0.0
      %1655 = vmatpush2.msra.mxu0 0.0
      %1656 = vmatprep.subr.mxu0 0.0
      %1657 = vmatpush2.msra.mxu0 0.0
      %1658 = vmatprep.subr.mxu0 0.0
      %1659 = vmatpush2.msra.mxu0 0.0
      %1660 = vmatprep.subr.mxu0 0.0
      %1661 = vmatpush2.msra.mxu0 0.0
      %1662 = vmatprep.subr.mxu0 0.0
      %1663 = vmatpush2.msra.mxu0 0.0
      %1664 = vmatprep.subr.mxu0 0.0
      %1665 = vmatpush2.msra.mxu0 0.0
      %1666 = vmatprep.subr.mxu0 0.0
      %1667 = vmatpush2.msra.mxu0 0.0
      %1668 = vmatprep.subr.mxu0 0.0
      %1669 = vmatpush2.msra.mxu0 0.0
      %1670 = vmatprep.subr.mxu0 0.0
      %1671 = vmatpush2.msra.mxu0 0.0
      %1672 = vmatprep.subr.mxu0 0.0
      %1673 = vmatpush2.msra.mxu0 0.0
      %1674 = vmatprep.subr.mxu0 0.0
      %1675 = vmatpush2.msra.mxu0 0.0
      %1676 = vmatprep.subr.mxu0 0.0
      %1677 = vmatpush2.msra.mxu0 0.0
      %1678 = vmatprep.mubr.f32.mxu0 0.0
      %1679 = vmatmul.mubr.f32.gmra.mxu0 %v1589
      %v1680 = vpop.f32.mrf.mxu0
      %v1681 = vadd.f32 0.0, %v1680
      %v1682 = vpop.f32.mrf.mxu0
      %1683 = vmatprep.mubr.f32.mxu0 0.0
      %1684 = vmatmul.mubr.f32.gmra.mxu0 %v1590
      %v1685 = vpop.f32.mrf.mxu0
      %v1686 = vadd.f32 0.0, %v1685
      %v1687 = vpop.f32.mrf.mxu0
      %1688 = vmatprep.mubr.f32.mxu0 0.0
      %1689 = vmatmul.mubr.f32.gmra.mxu0 %v1591
      %v1690 = vpop.f32.mrf.mxu0
      %v1691 = vadd.f32 0.0, %v1690
      %v1692 = vpop.f32.mrf.mxu0
      %1693 = vmatprep.mubr.f32.mxu0 0.0
      %1694 = vmatmul.mubr.f32.gmra.mxu0 %v1592
      %v1695 = vpop.f32.mrf.mxu0
      %v1696 = vadd.f32 0.0, %v1695
      %v1697 = vpop.f32.mrf.mxu0
      %1698 = vmatprep.mubr.f32.mxu0 0.0
      %1699 = vmatmul.mubr.f32.gmra.mxu0 %v1593
      %v1700 = vpop.f32.mrf.mxu0
      %v1701 = vadd.f32 0.0, %v1700
      %v1702 = vpop.f32.mrf.mxu0
      %1703 = vmatprep.mubr.f32.mxu0 0.0
      %1704 = vmatmul.mubr.f32.gmra.mxu0 %v1594
      %v1705 = vpop.f32.mrf.mxu0
      %v1706 = vadd.f32 0.0, %v1705
      %v1707 = vpop.f32.mrf.mxu0
      %1708 = vmatprep.mubr.f32.mxu0 0.0
      %1709 = vmatmul.mubr.f32.gmra.mxu0 %v1595
      %v1710 = vpop.f32.mrf.mxu0
      %v1711 = vadd.f32 0.0, %v1710
      %v1712 = vpop.f32.mrf.mxu0
      %1713 = vmatprep.mubr.f32.mxu0 0.0
      %1714 = vmatmul.mubr.f32.gmra.mxu0 %v1596
      %v1715 = vpop.f32.mrf.mxu0
      %v1716 = vadd.f32 0.0, %v1715
      %v1717 = vpop.f32.mrf.mxu0
      %1718 = vdwg.mxu0
      %v1719 = vadd.f32 %v1541, %v1681
      %v1720 = vadd.f32 %v1542, %v1686
      %v1721 = vadd.f32 %v1543, %v1691
      %v1722 = vadd.f32 %v1544, %v1696
      %v1723 = vadd.f32 %v1545, %v1701
      %v1724 = vadd.f32 %v1546, %v1706
      %v1725 = vadd.f32 %v1547, %v1711
      %v1726 = vadd.f32 %v1548, %v1716
      %v1727 = vld [vmem:[%s1370 + $0x2] sm:$0xff]
      %v1728 = vld [vmem:[%s1370 + $0x12] sm:$0xff]
      %v1729 = vld [vmem:[%s1370 + $0x22] sm:$0xff]
      %v1730 = vld [vmem:[%s1370 + $0x32] sm:$0xff]
      %v1731 = vld [vmem:[%s1370 + $0x42] sm:$0xff]
      %v1732 = vld [vmem:[%s1370 + $0x52] sm:$0xff]
      %v1733 = vld [vmem:[%s1370 + $0x62] sm:$0xff]
      %v1734 = vld [vmem:[%s1370 + $0x72] sm:$0xff]
      %v1735 = vmul.f32 %v1727, %v314
      %v1736 = vmul.f32 %v1728, %v314
      %v1737 = vmul.f32 %v1729, %v314
      %v1738 = vmul.f32 %v1730, %v314
      %v1739 = vmul.f32 %v1731, %v314
      %v1740 = vmul.f32 %v1732, %v314
      %v1741 = vmul.f32 %v1733, %v314
      %v1742 = vmul.f32 %v1734, %v314
      %v1743 = vadd.f32 %v1735, %v328
      %v1744 = vadd.f32 %v1736, %v328
      %v1745 = vadd.f32 %v1737, %v328
      %v1746 = vadd.f32 %v1738, %v328
      %v1747 = vadd.f32 %v1739, %v328
      %v1748 = vadd.f32 %v1740, %v328
      %v1749 = vadd.f32 %v1741, %v328
      %v1750 = vadd.f32 %v1742, %v328
      %vm1751 = vcmp.ge.f32.partialorder %v1743, 0.0
      %vm1752 = vcmp.ge.f32.partialorder %v1744, 0.0
      %vm1753 = vcmp.ge.f32.partialorder %v1745, 0.0
      %vm1754 = vcmp.ge.f32.partialorder %v1746, 0.0
      %vm1755 = vcmp.ge.f32.partialorder %v1747, 0.0
      %vm1756 = vcmp.ge.f32.partialorder %v1748, 0.0
      %vm1757 = vcmp.ge.f32.partialorder %v1749, 0.0
      %vm1758 = vcmp.ge.f32.partialorder %v1750, 0.0
      %v1759 = vmul.f32 %v1743, 0.2
      %v1760 = vmul.f32 %v1744, 0.2
      %v1761 = vmul.f32 %v1745, 0.2
      %v1762 = vmul.f32 %v1746, 0.2
      %v1763 = vmul.f32 %v1747, 0.2
      %v1764 = vmul.f32 %v1748, 0.2
      %v1765 = vmul.f32 %v1749, 0.2
      %v1766 = vmul.f32 %v1750, 0.2
      %v1767 = vsel %vm1751, %v1743, %v1759
      %v1768 = vsel %vm1752, %v1744, %v1760
      %v1769 = vsel %vm1753, %v1745, %v1761
      %v1770 = vsel %vm1754, %v1746, %v1762
      %v1771 = vsel %vm1755, %v1747, %v1763
      %v1772 = vsel %vm1756, %v1748, %v1764
      %v1773 = vsel %vm1757, %v1749, %v1765
      %v1774 = vsel %vm1758, %v1750, %v1766
      %s1775 = scalar_lea.vmem %s3, 1024
      %v1776 = vld [vmem:[%s1775] sm:$0xff]
      %v1777 = vld [vmem:[%s1775 + $0x8] sm:$0xff]
      %v1778 = vld [vmem:[%s1775 + $0x10] sm:$0xff]
      %v1779 = vld [vmem:[%s1775 + $0x18] sm:$0xff]
      %v1780 = vld [vmem:[%s1775 + $0x20] sm:$0xff]
      %v1781 = vld [vmem:[%s1775 + $0x28] sm:$0xff]
      %v1782 = vld [vmem:[%s1775 + $0x30] sm:$0xff]
      %v1783 = vld [vmem:[%s1775 + $0x38] sm:$0xff]
      %v1784 = vld [vmem:[%s1775 + $0x40] sm:$0xff]
      %v1785 = vld [vmem:[%s1775 + $0x48] sm:$0xff]
      %v1786 = vld [vmem:[%s1775 + $0x50] sm:$0xff]
      %v1787 = vld [vmem:[%s1775 + $0x58] sm:$0xff]
      %v1788 = vld [vmem:[%s1775 + $0x60] sm:$0xff]
      %v1789 = vld [vmem:[%s1775 + $0x68] sm:$0xff]
      %v1790 = vld [vmem:[%s1775 + $0x70] sm:$0xff]
      %v1791 = vld [vmem:[%s1775 + $0x78] sm:$0xff]
      %1792 = vmatprep.subr.mxu0 0.0
      %1793 = vmatpush1.msra.mxu0 %v1791
      %1794 = vmatprep.subr.mxu0 0.0
      %1795 = vmatpush1.msra.mxu0 %v1790
      %1796 = vmatprep.subr.mxu0 0.0
      %1797 = vmatpush1.msra.mxu0 %v1789
      %1798 = vmatprep.subr.mxu0 0.0
      %1799 = vmatpush1.msra.mxu0 %v1788
      %1800 = vmatprep.subr.mxu0 0.0
      %1801 = vmatpush1.msra.mxu0 %v1787
      %1802 = vmatprep.subr.mxu0 0.0
      %1803 = vmatpush1.msra.mxu0 %v1786
      %1804 = vmatprep.subr.mxu0 0.0
      %1805 = vmatpush1.msra.mxu0 %v1785
      %1806 = vmatprep.subr.mxu0 0.0
      %1807 = vmatpush1.msra.mxu0 %v1784
      %1808 = vmatprep.subr.mxu0 0.0
      %1809 = vmatpush1.msra.mxu0 %v1783
      %1810 = vmatprep.subr.mxu0 0.0
      %1811 = vmatpush1.msra.mxu0 %v1782
      %1812 = vmatprep.subr.mxu0 0.0
      %1813 = vmatpush1.msra.mxu0 %v1781
      %1814 = vmatprep.subr.mxu0 0.0
      %1815 = vmatpush1.msra.mxu0 %v1780
      %1816 = vmatprep.subr.mxu0 0.0
      %1817 = vmatpush1.msra.mxu0 %v1779
      %1818 = vmatprep.subr.mxu0 0.0
      %1819 = vmatpush1.msra.mxu0 %v1778
      %1820 = vmatprep.subr.mxu0 0.0
      %1821 = vmatpush1.msra.mxu0 %v1777
      %1822 = vmatprep.subr.mxu0 0.0
      %1823 = vmatpush1.msra.mxu0 %v1776
      %1824 = vmatprep.subr.mxu0 0.0
      %1825 = vmatpush2.msra.mxu0 0.0
      %1826 = vmatprep.subr.mxu0 0.0
      %1827 = vmatpush2.msra.mxu0 0.0
      %1828 = vmatprep.subr.mxu0 0.0
      %1829 = vmatpush2.msra.mxu0 0.0
      %1830 = vmatprep.subr.mxu0 0.0
      %1831 = vmatpush2.msra.mxu0 0.0
      %1832 = vmatprep.subr.mxu0 0.0
      %1833 = vmatpush2.msra.mxu0 0.0
      %1834 = vmatprep.subr.mxu0 0.0
      %1835 = vmatpush2.msra.mxu0 0.0
      %1836 = vmatprep.subr.mxu0 0.0
      %1837 = vmatpush2.msra.mxu0 0.0
      %1838 = vmatprep.subr.mxu0 0.0
      %1839 = vmatpush2.msra.mxu0 0.0
      %1840 = vmatprep.subr.mxu0 0.0
      %1841 = vmatpush2.msra.mxu0 0.0
      %1842 = vmatprep.subr.mxu0 0.0
      %1843 = vmatpush2.msra.mxu0 0.0
      %1844 = vmatprep.subr.mxu0 0.0
      %1845 = vmatpush2.msra.mxu0 0.0
      %1846 = vmatprep.subr.mxu0 0.0
      %1847 = vmatpush2.msra.mxu0 0.0
      %1848 = vmatprep.subr.mxu0 0.0
      %1849 = vmatpush2.msra.mxu0 0.0
      %1850 = vmatprep.subr.mxu0 0.0
      %1851 = vmatpush2.msra.mxu0 0.0
      %1852 = vmatprep.subr.mxu0 0.0
      %1853 = vmatpush2.msra.mxu0 0.0
      %1854 = vmatprep.subr.mxu0 0.0
      %1855 = vmatpush2.msra.mxu0 0.0
      %1856 = vmatprep.mubr.f32.mxu0 0.0
      %1857 = vmatmul.mubr.f32.gmra.mxu0 %v1767
      %v1858 = vpop.f32.mrf.mxu0
      %v1859 = vadd.f32 0.0, %v1858
      %v1860 = vpop.f32.mrf.mxu0
      %1861 = vmatprep.mubr.f32.mxu0 0.0
      %1862 = vmatmul.mubr.f32.gmra.mxu0 %v1768
      %v1863 = vpop.f32.mrf.mxu0
      %v1864 = vadd.f32 0.0, %v1863
      %v1865 = vpop.f32.mrf.mxu0
      %1866 = vmatprep.mubr.f32.mxu0 0.0
      %1867 = vmatmul.mubr.f32.gmra.mxu0 %v1769
      %v1868 = vpop.f32.mrf.mxu0
      %v1869 = vadd.f32 0.0, %v1868
      %v1870 = vpop.f32.mrf.mxu0
      %1871 = vmatprep.mubr.f32.mxu0 0.0
      %1872 = vmatmul.mubr.f32.gmra.mxu0 %v1770
      %v1873 = vpop.f32.mrf.mxu0
      %v1874 = vadd.f32 0.0, %v1873
      %v1875 = vpop.f32.mrf.mxu0
      %1876 = vmatprep.mubr.f32.mxu0 0.0
      %1877 = vmatmul.mubr.f32.gmra.mxu0 %v1771
      %v1878 = vpop.f32.mrf.mxu0
      %v1879 = vadd.f32 0.0, %v1878
      %v1880 = vpop.f32.mrf.mxu0
      %1881 = vmatprep.mubr.f32.mxu0 0.0
      %1882 = vmatmul.mubr.f32.gmra.mxu0 %v1772
      %v1883 = vpop.f32.mrf.mxu0
      %v1884 = vadd.f32 0.0, %v1883
      %v1885 = vpop.f32.mrf.mxu0
      %1886 = vmatprep.mubr.f32.mxu0 0.0
      %1887 = vmatmul.mubr.f32.gmra.mxu0 %v1773
      %v1888 = vpop.f32.mrf.mxu0
      %v1889 = vadd.f32 0.0, %v1888
      %v1890 = vpop.f32.mrf.mxu0
      %1891 = vmatprep.mubr.f32.mxu0 0.0
      %1892 = vmatmul.mubr.f32.gmra.mxu0 %v1774
      %v1893 = vpop.f32.mrf.mxu0
      %v1894 = vadd.f32 0.0, %v1893
      %v1895 = vpop.f32.mrf.mxu0
      %1896 = vdwg.mxu0
      %v1897 = vadd.f32 %v1719, %v1859
      %v1898 = vadd.f32 %v1720, %v1864
      %v1899 = vadd.f32 %v1721, %v1869
      %v1900 = vadd.f32 %v1722, %v1874
      %v1901 = vadd.f32 %v1723, %v1879
      %v1902 = vadd.f32 %v1724, %v1884
      %v1903 = vadd.f32 %v1725, %v1889
      %v1904 = vadd.f32 %v1726, %v1894
      %1905 = vst [vmem:[%s284] sm:$0xff] %v1897
      %1906 = vst [vmem:[%s284 + $0x8] sm:$0xff] %v1898
      %1907 = vst [vmem:[%s284 + $0x10] sm:$0xff] %v1899
      %1908 = vst [vmem:[%s284 + $0x18] sm:$0xff] %v1900
      %1909 = vst [vmem:[%s284 + $0x20] sm:$0xff] %v1901
      %1910 = vst [vmem:[%s284 + $0x28] sm:$0xff] %v1902
      %1911 = vst [vmem:[%s284 + $0x30] sm:$0xff] %v1903
      %1912 = vst [vmem:[%s284 + $0x38] sm:$0xff] %v1904
      %v1913 = vadd.f32 %v1897, %v1898
      %v1914 = vadd.f32 %v1913, %v1899
      %v1915 = vadd.f32 %v1914, %v1900
      %v1916 = vadd.f32 %v1915, %v1901
      %v1917 = vadd.f32 %v1916, %v1902
      %v1918 = vadd.f32 %v1917, %v1903
      %v1919 = vadd.f32 %v1918, %v1904
      %v1920 = vrot.slane %v1919, 4
      %v1921 = vadd.f32 %v1919, %v1920
      %v1922 = vrot.slane %v1921, 2
      %v1923 = vadd.f32 %v1921, %v1922
      %v1924 = vrot.slane %v1923, 1
      %v1925 = vadd.f32 %v1923, %v1924
      %1926 = vst [vmem:[%s290] sm:$0x1] %v1925
      %v1927 = vmul.f32 %v1897, %v1897
      %v1928 = vmul.f32 %v1898, %v1898
      %v1929 = vmul.f32 %v1899, %v1899
      %v1930 = vmul.f32 %v1900, %v1900
      %v1931 = vmul.f32 %v1901, %v1901
      %v1932 = vmul.f32 %v1902, %v1902
      %v1933 = vmul.f32 %v1903, %v1903
      %v1934 = vmul.f32 %v1904, %v1904
      %v1935 = vadd.f32 %v1927, %v1928
      %v1936 = vadd.f32 %v1935, %v1929
      %v1937 = vadd.f32 %v1936, %v1930
      %v1938 = vadd.f32 %v1937, %v1931
      %v1939 = vadd.f32 %v1938, %v1932
      %v1940 = vadd.f32 %v1939, %v1933
      %v1941 = vadd.f32 %v1940, %v1934
      %v1942 = vrot.slane %v1941, 4
      %v1943 = vadd.f32 %v1941, %v1942
      %v1944 = vrot.slane %v1943, 2
      %v1945 = vadd.f32 %v1943, %v1944
      %v1946 = vrot.slane %v1945, 1
      %v1947 = vadd.f32 %v1945, %v1946
      %1948 = vst [vmem:[%s295] sm:$0x1] %v1947
      %s1949 = sadd.s32 %s22, %s23
      %s1950 = smul.u32 8, %s1949
      %p1951 = scmp.lt.s32.totalorder %s1950, 15
      %s1952 = scalar_select %p1951, %s1950, 15
      %s1953 = smul.addr %s1952, 8
      %s1954 = scalar_lea.vmem %s4, %s1953
      %s1955 = sadd.s32 %s22, %s23
      %p1956 = scmp.lt.s32.totalorder %s1955, 1
      %s1957 = scalar_select %p1956, %s1955, 1
      %s1958 = scalar_lea.vmem %s5, %s1957
      %s1959 = sadd.s32 %s22, %s23
      %p1960 = scmp.lt.s32.totalorder %s1959, 1
      %s1961 = scalar_select %p1960, %s1959, 1
      %s1962 = scalar_lea.vmem %s6, %s1961
      // Predicated region
      $region37: #{down_forward.4} parent=35 // pred_check
        %p1963 = pneg %p139
      $region38: #{down_forward.4} parent=35 // pred_check_branch
        %1965 = sbr.rel (%p1963) target = $region40
      $region39: #{down_forward.4} parent=35 // pred_region
        %s1966 = sadd.s32 %s22, %s23
        %s1967 = smul.u32 8, %s1966
      $region40: #{down_forward.4} parent=35 // pred_fallthru
        _
      // Predicated region
      $region41: #{down_forward.4} parent=35 // pred_check
        %p1968 = pneg %p167
      $region42: #{down_forward.4} parent=35 // pred_check_branch
        %1970 = sbr.rel (%p1968) target = $region44
      $region43: #{down_forward.4} parent=35 // pred_region
        %s1971 = sadd.s32 %s22, %s23
      $region44: #{down_forward.4} parent=35 // pred_fallthru
        _
      // Predicated region
      $region45: #{down_forward.4} parent=35 // pred_check
        %p1972 = pneg %p195
      $region46: #{down_forward.4} parent=35 // pred_check_branch
        %1974 = sbr.rel (%p1972) target = $region48
      $region47: #{down_forward.4} parent=35 // pred_region
        %s1975 = sadd.s32 %s22, %s23
      $region48: #{down_forward.4} parent=35 // pred_fallthru
        _
    $region36: #{down_forward.4} parent=5 // pred_fallthru
      _
    %p1976 = scmp.le.s32.totalorder 2, %s13
    // Predicated region
    $region49: #{down_forward.4} parent=5 // pred_check
      %p1977 = pneg %p1976
    $region50: #{down_forward.4} parent=5 // pred_check_branch
      %1979 = sbr.rel (%p1977) target = $region52
    $region51: #{down_forward.4} parent=5 // pred_region
      %s1980 = ssub.s32 %s13, 2
      // Predicated region
      $region53: #{down_forward.4} parent=51 // pred_check
        %p1981 = pneg %p145
      $region54: #{down_forward.4} parent=51 // pred_check_branch
        %1983 = sbr.rel (%p1981) target = $region56
      $region55: #{down_forward.4} parent=51 // pred_region
        %s1984 = sadd.s32 %s24, %s25
        %s1985 = smul.u32 8, %s1984
        %p1986 = scmp.lt.s32.totalorder %s1985, 15
        %s1987 = scalar_select %p1986, %s1985, 15
        %s1988 = smul.addr %s1987, 8
        %s1989 = scalar_lea.vmem %s4, %s1988
      $region56: #{down_forward.4} parent=51 // pred_fallthru
        _
      // Predicated region
      $region57: #{down_forward.4} parent=51 // pred_check
        %p1990 = pneg %p173
      $region58: #{down_forward.4} parent=51 // pred_check_branch
        %1992 = sbr.rel (%p1990) target = $region60
      $region59: #{down_forward.4} parent=51 // pred_region
        %s1993 = sadd.s32 %s24, %s25
        %p1994 = scmp.lt.s32.totalorder %s1993, 1
        %s1995 = scalar_select %p1994, %s1993, 1
        %s1996 = scalar_lea.vmem %s5, %s1995
      $region60: #{down_forward.4} parent=51 // pred_fallthru
        _
      // Predicated region
      $region61: #{down_forward.4} parent=51 // pred_check
        %p1997 = pneg %p201
      $region62: #{down_forward.4} parent=51 // pred_check_branch
        %1999 = sbr.rel (%p1997) target = $region64
      $region63: #{down_forward.4} parent=51 // pred_region
        %s2000 = sadd.s32 %s24, %s25
        %p2001 = scmp.lt.s32.totalorder %s2000, 1
        %s2002 = scalar_select %p2001, %s2000, 1
        %s2003 = scalar_lea.vmem %s6, %s2002
      $region64: #{down_forward.4} parent=51 // pred_fallthru
        _
    $region52: #{down_forward.4} parent=5 // pred_fallthru
      _
  $region6: #{down_forward.4} parent=0 // loop_footer
    %s17 = sadd.s32 1, %s13
  $region7: #{down_forward.4} parent=0 // loop_footer_branch
    %12 = sbr.rel target = $region3
  $region8: #{down_forward.4} parent=0 // loop_exit
    _

</llo_original>
